<compile_context>
chip_gen: v6e
topology: v6e:2x2x1
jax: 0.10.0
libtpu: 0.0.40
codegen_flags: <defaults>
</compile_context>

<pallas_src>
import functools

import jax
import jax.numpy as jnp
import numpy as np
from jax.experimental import pallas as pl
from jax.experimental.pallas import tpu as pltpu


def _round_up(x, m):
    return ((x + m - 1) // m) * m


# ----------------------------------------------------------------------------
# Pallas kernel
# ----------------------------------------------------------------------------
def _bidaf_kernel(
    idx_ref,      # (TN, W)   int32 char indices
    word_ref,     # (TN, Dw)  word embeddings (compute dtype)
    rep_ref,      # (W, Kp)   f32 0/1 "repeat" matrix
    within_ref,   # (1, Kp)   f32 per-lane within-block target (-1 on pad lanes)
    cw_ref,       # (Kp, LFp) fused char-table x banded-conv filter bank
    cbias_ref,    # (1, LFp)  f32 conv bias per position
    cscale_ref,   # (1, LFp)  f32 BN scale per position (slab-affine path only)
    cshift_ref,   # (1, LFp)  f32 BN shift per position (slab-affine path only)
    wpw_ref,      # (Dw, Hp)  projection slice for word features
    wp1_ref,      # (Fp, Hp)  projection slice for conv1 pooled features
    wp2_ref,      # (Fp, Hp)  projection slice for conv2 pooled features
    pbias_ref,    # (1, Hp)   f32 folded BN shift through projection
    h0w_ref, h0b_ref,   # highway 0: (Hp, 2Hp), (1, 2Hp)
    h1w_ref, h1b_ref,   # highway 1: (Hp, 2Hp), (1, 2Hp)
    out_ref,      # (TN, Hp)  f32 (lane-dense)
    *,
    F, L1p, L2p, Hp, GP, compute_dtype, slab_affine,
):
    cd = compute_dtype

    # --- fused char gather + both convolutions as ONE K = W*V matmul --------
    # rep[n, k] = idx[n, k // V]   (each char index repeated across its V-lane
    # block via one tiny MXU matmul; kept in f32 so the equality below stays
    # exact for any char-vocab size).
    idx_f = idx_ref[...].astype(jnp.float32)                        # (TN, W)
    rep = jnp.dot(idx_f, rep_ref[...], preferred_element_type=jnp.float32)
    onehot = (rep == within_ref[...]).astype(cd)                    # exact 0/1
    y = jnp.dot(onehot, cw_ref[...],
                preferred_element_type=jnp.float32)                 # (TN, LFp)

    # conv bias + ReLU (+ optional eval-BN affine on the full slab; the fast
    # path folds the affine into the projection instead).
    y = jnp.maximum(y + cbias_ref[...], 0.0)
    if slab_affine:
        y = y * cscale_ref[...] + cshift_ref[...]

    # --- AdaptiveMaxPool1d(1): tree over full 128-lane vregs + XLU rolls -----
    def pool(base_pos, n_pos):
        base = base_pos * F
        if GP > 1:
            width = GP * F                         # == 128 lanes
            m = y[:, base:base + width]
            for g in range(1, n_pos // GP):
                m = jnp.maximum(m, y[:, base + g * width: base + (g + 1) * width])
            s = width // 2
            while s >= F:                          # butterfly within the vreg
                m = jnp.maximum(m, pltpu.roll(m, shift=s, axis=1))
                s //= 2
            return m                               # (TN, 128); lanes >= F dup
        # fallback for F not dividing 128
        m = y[:, base:base + F]
        for p in range(1, n_pos):
            m = jnp.maximum(m, y[:, base + p * F: base + (p + 1) * F])
        return m                                   # (TN, F)

    m1 = pool(0, L1p)
    m2 = pool(L1p, L2p)

    # --- projection (bias-free Linear) as three partial matmuls --------------
    # (wp1/wp2 carry folded BN scales and zero rows for the duplicated pool
    # lanes, pbias carries the folded BN shifts; no VMEM concat materialized.)
    x = (jnp.dot(word_ref[...], wpw_ref[...], preferred_element_type=jnp.float32)
         + jnp.dot(m1.astype(cd), wp1_ref[...], preferred_element_type=jnp.float32)
         + jnp.dot(m2.astype(cd), wp2_ref[...], preferred_element_type=jnp.float32)
         + pbias_ref[...])

    # --- 2-layer highway, gate+transform fused into one (Hp, 2Hp) matmul -----
    for hw_ref, hb_ref in ((h0w_ref, h0b_ref), (h1w_ref, h1b_ref)):
        z = jnp.dot(x.astype(cd), hw_ref[...],
                    preferred_element_type=jnp.float32) + hb_ref[...]
        g = jax.nn.sigmoid(z[:, :Hp])              # 128-aligned slices
        t = jnp.maximum(z[:, Hp:], 0.0)
        x = g * t + (1.0 - g) * x

    out_ref[...] = x.astype(out_ref.dtype)         # lane-dense (TN, Hp) store


# ----------------------------------------------------------------------------
# Host-side parameter fusion
# ----------------------------------------------------------------------------
def _prepare(params, W, compute_dtype):
    cv = np.asarray(params["char_vectors"], np.float32)    # (V, Cin)
    w1 = np.asarray(params["conv1_w"], np.float32)         # (K1, Cin, F)
    w2 = np.asarray(params["conv2_w"], np.float32)         # (K2, Cin, F)
    b1 = np.asarray(params["conv1_b"], np.float32).reshape(1, -1)
    b2 = np.asarray(params["conv2_b"], np.float32).reshape(1, -1)
    s1 = np.asarray(params["bn1_scale"], np.float32).reshape(1, -1)
    sh1 = np.asarray(params["bn1_shift"], np.float32).reshape(1, -1)
    s2 = np.asarray(params["bn2_scale"], np.float32).reshape(1, -1)
    sh2 = np.asarray(params["bn2_shift"], np.float32).reshape(1, -1)
    proj = np.asarray(params["proj_w"], np.float32)         # (Dw + 2F, H)

    V, _ = cv.shape
    K1, Cin, F = w1.shape
    K2 = w2.shape[0]
    H = proj.shape[1]
    Dw = proj.shape[0] - 2 * F

    L1, L2 = W - K1 + 1, W - K2 + 1
    GP = (128 // F) if (128 % F == 0) else 1        # conv positions per 128 lanes
    L1p, L2p = _round_up(L1, GP), _round_up(L2, GP)
    LFp = (L1p + L2p) * F
    Kp = _round_up(W * V, 128)
    Hp = _round_up(H, 128)
    Fp_pool = GP * F if GP > 1 else F

    # Banded conv weights -> fused char-table filter bank (Kp, LFp).
    big = np.zeros((W, Cin, LFp), np.float32)
    for p in range(L1):
        for k in range(K1):
            big[p + k, :, p * F:(p + 1) * F] = w1[k]
    off = L1p * F
    for p in range(L2):
        for k in range(K2):
            big[p + k, :, off + p * F: off + (p + 1) * F] = w2[k]
    cw = np.zeros((Kp, LFp), np.float32)
    cw[: W * V] = np.einsum("vc,wcf->wvf", cv, big).reshape(W * V, LFp)

    # "Repeat" matrix and per-lane within-block targets for the fused one-hot.
    R = np.zeros((W, Kp), np.float32)
    within = np.full((1, Kp), -1.0, np.float32)
    for w in range(W):
        R[w, w * V:(w + 1) * V] = 1.0
        within[0, w * V:(w + 1) * V] = np.arange(V, dtype=np.float32)

    def tile_block(v1, v2, pad_val):
        out = np.full((1, LFp), pad_val, np.float32)
        out[0, :L1 * F] = np.tile(v1, (1, L1))
        out[0, off: off + L2 * F] = np.tile(v2, (1, L2))
        return out

    cbias = tile_block(b1, b2, 0.0)     # padded positions: conv=0, bias=0 -> relu 0

    # BN affine: fold into projection when scales >= 0 (max/affine commute);
    # otherwise apply on the full slab before the pool (fallback).
    slab_affine = not (bool(np.all(s1 >= 0.0)) and bool(np.all(s2 >= 0.0)))
    if slab_affine:
        cscale = tile_block(s1, s2, 0.0)
        cshift = tile_block(sh1, sh2, -1e30)   # padded positions can never win
        scale1_fold = np.ones((F,), np.float32)
        scale2_fold = np.ones((F,), np.float32)
        pbias_h = np.zeros((1, H), np.float32)
    else:
        cscale = np.ones((1, LFp), np.float32)   # unused on this path
        cshift = np.zeros((1, LFp), np.float32)  # unused on this path
        scale1_fold = s1.reshape(F)
        scale2_fold = s2.reshape(F)
        pbias_h = sh1 @ proj[Dw:Dw + F] + sh2 @ proj[Dw + F:]

    # H-padded projection slices (lane-dense output / 128-aligned matmul N).
    wpw = np.zeros((Dw, Hp), np.float32)
    wpw[:, :H] = proj[:Dw]
    wp1 = np.zeros((Fp_pool, Hp), np.float32)
    wp1[:F, :H] = proj[Dw:Dw + F] * scale1_fold[:, None]
    wp2 = np.zeros((Fp_pool, Hp), np.float32)
    wp2[:F, :H] = proj[Dw + F:] * scale2_fold[:, None]
    pbias = np.zeros((1, Hp), np.float32)
    pbias[:, :H] = pbias_h

    def highway(layer):
        gw = np.asarray(params[f"hwy_gate_w{layer}"], np.float32)
        gb = np.asarray(params[f"hwy_gate_b{layer}"], np.float32).reshape(1, -1)
        tw = np.asarray(params[f"hwy_trans_w{layer}"], np.float32)
        tb = np.asarray(params[f"hwy_trans_b{layer}"], np.float32).reshape(1, -1)
        hw = np.zeros((Hp, 2 * Hp), np.float32)
        hw[:H, :H] = gw
        hw[:H, Hp:Hp + H] = tw
        hb = np.zeros((1, 2 * Hp), np.float32)
        hb[0, :H] = gb
        hb[0, Hp:Hp + H] = tb
        return hw, hb

    h0w, h0b = highway(0)
    h1w, h1b = highway(1)

    cd = compute_dtype
    weights = dict(
        R=jnp.asarray(R),                       # f32 (keeps the compare exact)
        within=jnp.asarray(within),
        cw=jnp.asarray(cw, dtype=cd),
        cbias=jnp.asarray(cbias),
        cscale=jnp.asarray(cscale),
        cshift=jnp.asarray(cshift),
        wpw=jnp.asarray(wpw, dtype=cd),
        wp1=jnp.asarray(wp1, dtype=cd),
        wp2=jnp.asarray(wp2, dtype=cd),
        pbias=jnp.asarray(pbias),
        h0w=jnp.asarray(h0w, dtype=cd), h0b=jnp.asarray(h0b),
        h1w=jnp.asarray(h1w, dtype=cd), h1b=jnp.asarray(h1b),
    )
    dims = dict(V=V, F=F, Dw=Dw, H=H, Hp=Hp, Kp=Kp, LFp=LFp,
                L1p=L1p, L2p=L2p, GP=GP, Fp_pool=Fp_pool,
                slab_affine=slab_affine)
    return weights, dims


# ----------------------------------------------------------------------------
# Wrapper
# ----------------------------------------------------------------------------
def bidaf_word_plus_char_embedding(word_idxs, char_idxs, params, *,
                                   tn=512, compute_dtype=jnp.bfloat16):
    """word_idxs: (B, S) int32, char_idxs: (B, S, W) int32 -> (B, S, H) f32."""
    B, S = word_idxs.shape
    W = char_idxs.shape[-1]
    N = B * S

    weights, d = _prepare(params, W, compute_dtype)
    F, H, Hp, Kp, LFp = d["F"], d["H"], d["Hp"], d["Kp"], d["LFp"]
    Dw, Fp_pool = d["Dw"], d["Fp_pool"]

    # Row-tile size: clamp for small inputs, keep >=2 grid steps when rows
    # allow it (v7x has 2 TensorCores), always a multiple of 128.
    tn = _round_up(max(128, min(tn, N)), 128)
    n128 = _round_up(N, 128)
    if n128 >= 256:
        tn = min(tn, _round_up(n128 // 2, 128))
    N_pad = _round_up(N, tn)

    word_flat = word_idxs.reshape(N).astype(jnp.int32)
    char_flat = char_idxs.reshape(N, W).astype(jnp.int32)
    if N_pad != N:
        word_flat = jnp.pad(word_flat, (0, N_pad - N))
        char_flat = jnp.pad(char_flat, ((0, N_pad - N), (0, 0)))

    # TODO(synk): word-table gather stays in JAX glue (production tables exceed
    # VMEM); an in-kernel HBM DMA gather via scalar prefetch would remove this
    # HBM round trip (largest remaining win on v5e).
    word_emb = params["word_vectors"][word_flat].astype(compute_dtype)  # (N_pad, Dw)

    grid = (N_pad // tn,)

    def full(shape):
        return pl.BlockSpec(shape, lambda i: (0, 0))

    in_specs = [
        pl.BlockSpec((tn, W), lambda i: (i, 0)),      # char indices
        pl.BlockSpec((tn, Dw), lambda i: (i, 0)),     # word embeddings
        full(weights["R"].shape),
        full(weights["within"].shape),
        full(weights["cw"].shape),
        full(weights["cbias"].shape),
        full(weights["cscale"].shape),
        full(weights["cshift"].shape),
        full(weights["wpw"].shape),
        full(weights["wp1"].shape),
        full(weights["wp2"].shape),
        full(weights["pbias"].shape),
        full(weights["h0w"].shape), full(weights["h0b"].shape),
        full(weights["h1w"].shape), full(weights["h1b"].shape),
    ]

    operands = (char_flat, word_emb,
                weights["R"], weights["within"], weights["cw"],
                weights["cbias"], weights["cscale"], weights["cshift"],
                weights["wpw"], weights["wp1"], weights["wp2"], weights["pbias"],
                weights["h0w"], weights["h0b"], weights["h1w"], weights["h1b"])

    kernel = functools.partial(
        _bidaf_kernel, F=F, L1p=d["L1p"], L2p=d["L2p"], Hp=Hp, GP=d["GP"],
        compute_dtype=compute_dtype, slab_affine=d["slab_affine"])

    flops_per_row = 2 * (W * Kp + Kp * LFp + (Dw + 2 * Fp_pool) * Hp
                         + 2 * Hp * 2 * Hp)
    bytes_accessed = (sum(int(np.prod(a.shape)) * a.dtype.itemsize for a in operands)
                      + N_pad * Hp * 4)
    cost = pl.CostEstimate(flops=int(N_pad * flops_per_row),
                           transcendentals=int(N_pad * 2 * Hp),
                           bytes_accessed=int(bytes_accessed))

    out = pl.pallas_call(
        kernel,
        out_shape=jax.ShapeDtypeStruct((N_pad, Hp), jnp.float32),
        grid=grid,
        in_specs=in_specs,
        out_specs=pl.BlockSpec((tn, Hp), lambda i: (i, 0)),
        compiler_params=pltpu.CompilerParams(
            dimension_semantics=("parallel",)),
        cost_estimate=cost,
    )(*operands)

    return out[:N, :H].reshape(B, S, H)


# ----------------------------------------------------------------------------
# Pure-JAX reference (same math, used for verification)
# ----------------------------------------------------------------------------
def reference(word_idxs, char_idxs, params):
    B, S = word_idxs.shape
    W = char_idxs.shape[-1]
    N = B * S
    we = params["word_vectors"][word_idxs.reshape(N)]
    ce = params["char_vectors"][char_idxs.reshape(N, W)]

    def conv_pool(w, b, scale, shift, K):
        L = W - K + 1
        ys = []
        for p in range(L):
            s = jnp.einsum("nkc,kcf->nf", ce[:, p:p + K, :], w) + b
            ys.append(jnp.maximum(s, 0.0) * scale + shift)
        return jnp.max(jnp.stack(ys, 0), axis=0)

    m1 = conv_pool(params["conv1_w"], params["conv1_b"],
                   params["bn1_scale"], params["bn1_shift"], 3)
    m2 = conv_pool(params["conv2_w"], params["conv2_b"],
                   params["bn2_scale"], params["bn2_shift"], 5)
    x = jnp.concatenate([we, m1, m2], axis=1) @ params["proj_w"]
    for i in range(2):
        g = jax.nn.sigmoid(x @ params[f"hwy_gate_w{i}"] + params[f"hwy_gate_b{i}"])
        t = jnp.maximum(x @ params[f"hwy_trans_w{i}"] + params[f"hwy_trans_b{i}"], 0.0)
        x = g * t + (1.0 - g) * x
    H = params["proj_w"].shape[-1]
    return x.reshape(B, S, H)


# ----------------------------------------------------------------------------
# Parameter construction (deterministic, synthetic)
# ----------------------------------------------------------------------------
def make_params(key, *, word_vocab, char_vocab, word_dim, char_dim, num_filters, hidden):
    ks = jax.random.split(key, 20)
    F, H = num_filters, hidden
    p = {}
    p["word_vectors"] = jax.random.normal(ks[0], (word_vocab, word_dim), jnp.float32) * 0.5
    p["char_vectors"] = jax.random.normal(ks[1], (char_vocab, char_dim), jnp.float32) * 0.5

    # Conv weights stored as (K, Cin, F)  (PyTorch layout is (F, Cin, K))
    p["conv1_w"] = jax.random.normal(ks[2], (3, char_dim, F), jnp.float32) * 0.1
    p["conv1_b"] = jax.random.normal(ks[3], (1, F), jnp.float32) * 0.1
    p["conv2_w"] = jax.random.normal(ks[4], (5, char_dim, F), jnp.float32) * 0.1
    p["conv2_b"] = jax.random.normal(ks[5], (1, F), jnp.float32) * 0.1

    # Eval-mode BatchNorm folded into scale/shift.
    eps = 1e-5
    for idx, (kg, kb, km, kv) in enumerate(((6, 7, 8, 9), (10, 11, 12, 13)), start=1):
        gamma = 1.0 + 0.1 * jax.random.normal(ks[kg], (1, F), jnp.float32)
        beta = 0.1 * jax.random.normal(ks[kb], (1, F), jnp.float32)
        mean = 0.1 * jax.random.normal(ks[km], (1, F), jnp.float32)
        var = jnp.abs(1.0 + 0.1 * jax.random.normal(ks[kv], (1, F), jnp.float32))
        scale = gamma / jnp.sqrt(var + eps)
        p[f"bn{idx}_scale"] = scale
        p[f"bn{idx}_shift"] = beta - mean * scale

    # Projection (bias=False), pre-transposed to (in, out)
    p["proj_w"] = jax.random.normal(ks[14], (word_dim + 2 * F, H), jnp.float32) * 0.1

    # Highway layers (weights pre-transposed to (in, out))
    p["hwy_gate_w0"] = jax.random.normal(ks[15], (H, H), jnp.float32) * 0.1
    p["hwy_gate_b0"] = jax.random.normal(ks[16], (1, H), jnp.float32) * 0.1
    p["hwy_trans_w0"] = jax.random.normal(ks[17], (H, H), jnp.float32) * 0.1
    p["hwy_trans_b0"] = jax.random.normal(ks[18], (1, H), jnp.float32) * 0.1
    k2 = jax.random.split(ks[19], 4)
    p["hwy_gate_w1"] = jax.random.normal(k2[0], (H, H), jnp.float32) * 0.1
    p["hwy_gate_b1"] = jax.random.normal(k2[1], (1, H), jnp.float32) * 0.1
    p["hwy_trans_w1"] = jax.random.normal(k2[2], (H, H), jnp.float32) * 0.1
    p["hwy_trans_b1"] = jax.random.normal(k2[3], (1, H), jnp.float32) * 0.1
    return p


if __name__ == "__main__":
    # Small shapes consistent with the module's forward.
    B, S, W = 2, 8, 12            # batch, seq_len, max chars per word
    word_vocab, word_dim = 50, 64
    char_vocab, char_dim = 30, 16
    num_filters, hidden = 32, 32

    key = jax.random.PRNGKey(0)
    kp, kw, kc = jax.random.split(key, 3)
    params = make_params(kp, word_vocab=word_vocab, char_vocab=char_vocab,
                         word_dim=word_dim, char_dim=char_dim,
                         num_filters=num_filters, hidden=hidden)

    word_idxs = jax.random.randint(kw, (B, S), 0, word_vocab, dtype=jnp.int32)
    char_idxs = jax.random.randint(kc, (B, S, W), 0, char_vocab, dtype=jnp.int32)

    ref = jax.block_until_ready(reference(word_idxs, char_idxs, params))

    # 1) f32 matmul inputs: tight comparison (folded-BN fast path).
    out = jax.block_until_ready(
        bidaf_word_plus_char_embedding(word_idxs, char_idxs, params,
                                       compute_dtype=jnp.float32))
    assert out.shape == (B, S, hidden), out.shape
    np.testing.assert_allclose(np.asarray(out), np.asarray(ref), rtol=1e-4, atol=1e-4)

    # 2) default bf16 matmul inputs (f32 accumulation/elementwise): looser tolerance.
    out_bf16 = jax.block_until_ready(
        bidaf_word_plus_char_embedding(word_idxs, char_idxs, params))
    np.testing.assert_allclose(np.asarray(out_bf16), np.asarray(ref),
                               rtol=1e-1, atol=1e-1)

    # 3) negative BN scale exercises the full-slab affine fallback path.
    params_neg = dict(params)
    params_neg["bn1_scale"] = -params["bn1_scale"]
    ref_neg = jax.block_until_ready(reference(word_idxs, char_idxs, params_neg))
    out_neg = jax.block_until_ready(
        bidaf_word_plus_char_embedding(word_idxs, char_idxs, params_neg,
                                       compute_dtype=jnp.float32))
    np.testing.assert_allclose(np.asarray(out_neg), np.asarray(ref_neg),
                               rtol=1e-4, atol=1e-4)

    # 4) larger case: multi-step grid + row padding (N=300 -> 512, grid=2).
    B2, S2 = 3, 100
    kw2, kc2 = jax.random.split(jax.random.PRNGKey(1), 2)
    word_idxs2 = jax.random.randint(kw2, (B2, S2), 0, word_vocab, dtype=jnp.int32)
    char_idxs2 = jax.random.randint(kc2, (B2, S2, W), 0, char_vocab, dtype=jnp.int32)
    out2 = jax.block_until_ready(
        bidaf_word_plus_char_embedding(word_idxs2, char_idxs2, params,
                                       compute_dtype=jnp.float32))
    ref2 = jax.block_until_ready(reference(word_idxs2, char_idxs2, params))
    np.testing.assert_allclose(np.asarray(out2), np.asarray(ref2), rtol=1e-4, atol=1e-4)

    print("KERNEL_OK")
</pallas_src>

<mosaic_0001>
module attributes {stable_mosaic.version = 11 : i64} {
  func.func @_bidaf_kernel(%arg0: i32, %arg1: memref<128x12xi32, #tpu.memory_space<vmem>>, %arg2: memref<128x64xf32, #tpu.memory_space<vmem>>, %arg3: memref<12x384xf32, #tpu.memory_space<vmem>>, %arg4: memref<1x384xf32, #tpu.memory_space<vmem>>, %arg5: memref<384x640xf32, #tpu.memory_space<vmem>>, %arg6: memref<1x640xf32, #tpu.memory_space<vmem>>, %arg7: memref<1x640xf32, #tpu.memory_space<vmem>>, %arg8: memref<1x640xf32, #tpu.memory_space<vmem>>, %arg9: memref<64x128xf32, #tpu.memory_space<vmem>>, %arg10: memref<128x128xf32, #tpu.memory_space<vmem>>, %arg11: memref<128x128xf32, #tpu.memory_space<vmem>>, %arg12: memref<1x128xf32, #tpu.memory_space<vmem>>, %arg13: memref<128x256xf32, #tpu.memory_space<vmem>>, %arg14: memref<1x256xf32, #tpu.memory_space<vmem>>, %arg15: memref<128x256xf32, #tpu.memory_space<vmem>>, %arg16: memref<1x256xf32, #tpu.memory_space<vmem>>, %arg17: memref<128x128xf32, #tpu.memory_space<vmem>>) attributes {dimension_semantics = [#tpu.dimension_semantics<parallel>], iteration_bounds = array<i64: 1>, scalar_prefetch = 0 : i64, scratch_operands = 0 : i64, tpu.core_type = #tpu.core_type<tc>, window_params = [{transform_indices = @transform_0, window_bounds = array<i64: 128, 12>}, {transform_indices = @transform_1, window_bounds = array<i64: 128, 64>}, {pipeline_mode = #tpu.pipeline_mode<synchronous>, transform_indices = @transform_2, window_bounds = array<i64: 12, 384>}, {pipeline_mode = #tpu.pipeline_mode<synchronous>, transform_indices = @transform_3, window_bounds = array<i64: 1, 384>}, {pipeline_mode = #tpu.pipeline_mode<synchronous>, transform_indices = @transform_4, window_bounds = array<i64: 384, 640>}, {pipeline_mode = #tpu.pipeline_mode<synchronous>, transform_indices = @transform_5, window_bounds = array<i64: 1, 640>}, {pipeline_mode = #tpu.pipeline_mode<synchronous>, transform_indices = @transform_6, window_bounds = array<i64: 1, 640>}, {pipeline_mode = #tpu.pipeline_mode<synchronous>, transform_indices = @transform_7, window_bounds = array<i64: 1, 640>}, {pipeline_mode = #tpu.pipeline_mode<synchronous>, transform_indices = @transform_8, window_bounds = array<i64: 64, 128>}, {pipeline_mode = #tpu.pipeline_mode<synchronous>, transform_indices = @transform_9, window_bounds = array<i64: 128, 128>}, {pipeline_mode = #tpu.pipeline_mode<synchronous>, transform_indices = @transform_10, window_bounds = array<i64: 128, 128>}, {pipeline_mode = #tpu.pipeline_mode<synchronous>, transform_indices = @transform_11, window_bounds = array<i64: 1, 128>}, {pipeline_mode = #tpu.pipeline_mode<synchronous>, transform_indices = @transform_12, window_bounds = array<i64: 128, 256>}, {pipeline_mode = #tpu.pipeline_mode<synchronous>, transform_indices = @transform_13, window_bounds = array<i64: 1, 256>}, {pipeline_mode = #tpu.pipeline_mode<synchronous>, transform_indices = @transform_14, window_bounds = array<i64: 128, 256>}, {pipeline_mode = #tpu.pipeline_mode<synchronous>, transform_indices = @transform_15, window_bounds = array<i64: 1, 256>}, {transform_indices = @transform_16, window_bounds = array<i64: 128, 128>}]} {
    %c0 = arith.constant 0 : index
    %c0_0 = arith.constant 0 : index
    %0 = vector.load %arg1[%c0, %c0_0] : memref<128x12xi32, #tpu.memory_space<vmem>>, vector<128x12xi32>
    %1 = arith.sitofp %0 : vector<128x12xi32> to vector<128x12xf32>
    %c0_1 = arith.constant 0 : index
    %c0_2 = arith.constant 0 : index
    %2 = vector.load %arg3[%c0_1, %c0_2] : memref<12x384xf32, #tpu.memory_space<vmem>>, vector<12x384xf32>
    %cst = arith.constant dense<0.000000e+00> : vector<128x384xf32>
    %3 = tpu.matmul %1, %2, %cst {dimension_numbers = #tpu.dot_dimension_numbers<[1], [0], [0], [1], [0, 0, 1, 1], [], []>} : vector<128x12xf32>, vector<12x384xf32>, vector<128x384xf32> -> vector<128x384xf32>
    %c0_3 = arith.constant 0 : index
    %c0_4 = arith.constant 0 : index
    %4 = vector.load %arg4[%c0_3, %c0_4] : memref<1x384xf32, #tpu.memory_space<vmem>>, vector<1x384xf32>
    %5 = vector.broadcast %4 : vector<1x384xf32> to vector<128x384xf32>
    %6 = arith.cmpf oeq, %3, %5 : vector<128x384xf32>
    %7 = arith.extui %6 : vector<128x384xi1> to vector<128x384xi32>
    %8 = arith.sitofp %7 : vector<128x384xi32> to vector<128x384xf32>
    %c0_5 = arith.constant 0 : index
    %c0_6 = arith.constant 0 : index
    %9 = vector.load %arg5[%c0_5, %c0_6] : memref<384x640xf32, #tpu.memory_space<vmem>>, vector<384x640xf32>
    %cst_7 = arith.constant dense<0.000000e+00> : vector<128x640xf32>
    %10 = tpu.matmul %8, %9, %cst_7 {dimension_numbers = #tpu.dot_dimension_numbers<[1], [0], [0], [1], [0, 0, 1, 1], [], []>} : vector<128x384xf32>, vector<384x640xf32>, vector<128x640xf32> -> vector<128x640xf32>
    %c0_8 = arith.constant 0 : index
    %c0_9 = arith.constant 0 : index
    %11 = vector.load %arg6[%c0_8, %c0_9] : memref<1x640xf32, #tpu.memory_space<vmem>>, vector<1x640xf32>
    %12 = vector.broadcast %11 : vector<1x640xf32> to vector<128x640xf32>
    %13 = arith.addf %10, %12 : vector<128x640xf32>
    %cst_10 = arith.constant 0.000000e+00 : f32
    %14 = vector.broadcast %cst_10 : f32 to vector<128x640xf32>
    %15 = arith.maximumf %13, %14 : vector<128x640xf32>
    %16 = vector.extract_strided_slice %15 {offsets = [0, 0], sizes = [128, 128], strides = [1, 1]} : vector<128x640xf32> to vector<128x128xf32>
    %17 = vector.extract_strided_slice %15 {offsets = [0, 128], sizes = [128, 128], strides = [1, 1]} : vector<128x640xf32> to vector<128x128xf32>
    %18 = arith.maximumf %16, %17 : vector<128x128xf32>
    %19 = vector.extract_strided_slice %15 {offsets = [0, 256], sizes = [128, 128], strides = [1, 1]} : vector<128x640xf32> to vector<128x128xf32>
    %20 = arith.maximumf %18, %19 : vector<128x128xf32>
    %c64_i32 = arith.constant 64 : i32
    %21 = tpu.dynamic_rotate %20 by %c64_i32 dim 1 : vector<128x128xf32>, i32 -> vector<128x128xf32>
    %22 = arith.maximumf %20, %21 : vector<128x128xf32>
    %c32_i32 = arith.constant 32 : i32
    %23 = tpu.dynamic_rotate %22 by %c32_i32 dim 1 : vector<128x128xf32>, i32 -> vector<128x128xf32>
    %24 = arith.maximumf %22, %23 : vector<128x128xf32>
    %25 = vector.extract_strided_slice %15 {offsets = [0, 384], sizes = [128, 128], strides = [1, 1]} : vector<128x640xf32> to vector<128x128xf32>
    %26 = vector.extract_strided_slice %15 {offsets = [0, 512], sizes = [128, 128], strides = [1, 1]} : vector<128x640xf32> to vector<128x128xf32>
    %27 = arith.maximumf %25, %26 : vector<128x128xf32>
    %c64_i32_11 = arith.constant 64 : i32
    %28 = tpu.dynamic_rotate %27 by %c64_i32_11 dim 1 : vector<128x128xf32>, i32 -> vector<128x128xf32>
    %29 = arith.maximumf %27, %28 : vector<128x128xf32>
    %c32_i32_12 = arith.constant 32 : i32
    %30 = tpu.dynamic_rotate %29 by %c32_i32_12 dim 1 : vector<128x128xf32>, i32 -> vector<128x128xf32>
    %31 = arith.maximumf %29, %30 : vector<128x128xf32>
    %c0_13 = arith.constant 0 : index
    %c0_14 = arith.constant 0 : index
    %32 = vector.load %arg2[%c0_13, %c0_14] : memref<128x64xf32, #tpu.memory_space<vmem>>, vector<128x64xf32>
    %c0_15 = arith.constant 0 : index
    %c0_16 = arith.constant 0 : index
    %33 = vector.load %arg9[%c0_15, %c0_16] : memref<64x128xf32, #tpu.memory_space<vmem>>, vector<64x128xf32>
    %cst_17 = arith.constant dense<0.000000e+00> : vector<128x128xf32>
    %34 = tpu.matmul %32, %33, %cst_17 {dimension_numbers = #tpu.dot_dimension_numbers<[1], [0], [0], [1], [0, 0, 1, 1], [], []>} : vector<128x64xf32>, vector<64x128xf32>, vector<128x128xf32> -> vector<128x128xf32>
    %c0_18 = arith.constant 0 : index
    %c0_19 = arith.constant 0 : index
    %35 = vector.load %arg10[%c0_18, %c0_19] : memref<128x128xf32, #tpu.memory_space<vmem>>, vector<128x128xf32>
    %cst_20 = arith.constant dense<0.000000e+00> : vector<128x128xf32>
    %36 = tpu.matmul %24, %35, %cst_20 {dimension_numbers = #tpu.dot_dimension_numbers<[1], [0], [0], [1], [0, 0, 1, 1], [], []>} : vector<128x128xf32>, vector<128x128xf32>, vector<128x128xf32> -> vector<128x128xf32>
    %37 = arith.addf %34, %36 : vector<128x128xf32>
    %c0_21 = arith.constant 0 : index
    %c0_22 = arith.constant 0 : index
    %38 = vector.load %arg11[%c0_21, %c0_22] : memref<128x128xf32, #tpu.memory_space<vmem>>, vector<128x128xf32>
    %cst_23 = arith.constant dense<0.000000e+00> : vector<128x128xf32>
    %39 = tpu.matmul %31, %38, %cst_23 {dimension_numbers = #tpu.dot_dimension_numbers<[1], [0], [0], [1], [0, 0, 1, 1], [], []>} : vector<128x128xf32>, vector<128x128xf32>, vector<128x128xf32> -> vector<128x128xf32>
    %40 = arith.addf %37, %39 : vector<128x128xf32>
    %c0_24 = arith.constant 0 : index
    %c0_25 = arith.constant 0 : index
    %41 = vector.load %arg12[%c0_24, %c0_25] : memref<1x128xf32, #tpu.memory_space<vmem>>, vector<1x128xf32>
    %42 = vector.broadcast %41 : vector<1x128xf32> to vector<128x128xf32>
    %43 = arith.addf %40, %42 : vector<128x128xf32>
    %c0_26 = arith.constant 0 : index
    %c0_27 = arith.constant 0 : index
    %44 = vector.load %arg13[%c0_26, %c0_27] : memref<128x256xf32, #tpu.memory_space<vmem>>, vector<128x256xf32>
    %cst_28 = arith.constant dense<0.000000e+00> : vector<128x256xf32>
    %45 = tpu.matmul %43, %44, %cst_28 {dimension_numbers = #tpu.dot_dimension_numbers<[1], [0], [0], [1], [0, 0, 1, 1], [], []>} : vector<128x128xf32>, vector<128x256xf32>, vector<128x256xf32> -> vector<128x256xf32>
    %c0_29 = arith.constant 0 : index
    %c0_30 = arith.constant 0 : index
    %46 = vector.load %arg14[%c0_29, %c0_30] : memref<1x256xf32, #tpu.memory_space<vmem>>, vector<1x256xf32>
    %47 = vector.broadcast %46 : vector<1x256xf32> to vector<128x256xf32>
    %48 = arith.addf %45, %47 : vector<128x256xf32>
    %49 = vector.extract_strided_slice %48 {offsets = [0, 0], sizes = [128, 128], strides = [1, 1]} : vector<128x256xf32> to vector<128x128xf32>
    %50 = arith.negf %49 : vector<128x128xf32>
    %51 = math.exp %50 : vector<128x128xf32>
    %cst_31 = arith.constant 1.000000e+00 : f32
    %52 = vector.broadcast %cst_31 : f32 to vector<128x128xf32>
    %53 = arith.addf %52, %51 : vector<128x128xf32>
    %54 = arith.divf %52, %53 : vector<128x128xf32>
    %55 = vector.extract_strided_slice %48 {offsets = [0, 128], sizes = [128, 128], strides = [1, 1]} : vector<128x256xf32> to vector<128x128xf32>
    %cst_32 = arith.constant 0.000000e+00 : f32
    %56 = vector.broadcast %cst_32 : f32 to vector<128x128xf32>
    %57 = arith.maximumf %55, %56 : vector<128x128xf32>
    %58 = arith.mulf %54, %57 : vector<128x128xf32>
    %cst_33 = arith.constant 1.000000e+00 : f32
    %59 = vector.broadcast %cst_33 : f32 to vector<128x128xf32>
    %60 = arith.subf %59, %54 : vector<128x128xf32>
    %61 = arith.mulf %60, %43 : vector<128x128xf32>
    %62 = arith.addf %58, %61 : vector<128x128xf32>
    %c0_34 = arith.constant 0 : index
    %c0_35 = arith.constant 0 : index
    %63 = vector.load %arg15[%c0_34, %c0_35] : memref<128x256xf32, #tpu.memory_space<vmem>>, vector<128x256xf32>
    %cst_36 = arith.constant dense<0.000000e+00> : vector<128x256xf32>
    %64 = tpu.matmul %62, %63, %cst_36 {dimension_numbers = #tpu.dot_dimension_numbers<[1], [0], [0], [1], [0, 0, 1, 1], [], []>} : vector<128x128xf32>, vector<128x256xf32>, vector<128x256xf32> -> vector<128x256xf32>
    %c0_37 = arith.constant 0 : index
    %c0_38 = arith.constant 0 : index
    %65 = vector.load %arg16[%c0_37, %c0_38] : memref<1x256xf32, #tpu.memory_space<vmem>>, vector<1x256xf32>
    %66 = vector.broadcast %65 : vector<1x256xf32> to vector<128x256xf32>
    %67 = arith.addf %64, %66 : vector<128x256xf32>
    %68 = vector.extract_strided_slice %67 {offsets = [0, 0], sizes = [128, 128], strides = [1, 1]} : vector<128x256xf32> to vector<128x128xf32>
    %69 = arith.negf %68 : vector<128x128xf32>
    %70 = math.exp %69 : vector<128x128xf32>
    %cst_39 = arith.constant 1.000000e+00 : f32
    %71 = vector.broadcast %cst_39 : f32 to vector<128x128xf32>
    %72 = arith.addf %71, %70 : vector<128x128xf32>
    %73 = arith.divf %71, %72 : vector<128x128xf32>
    %74 = vector.extract_strided_slice %67 {offsets = [0, 128], sizes = [128, 128], strides = [1, 1]} : vector<128x256xf32> to vector<128x128xf32>
    %cst_40 = arith.constant 0.000000e+00 : f32
    %75 = vector.broadcast %cst_40 : f32 to vector<128x128xf32>
    %76 = arith.maximumf %74, %75 : vector<128x128xf32>
    %77 = arith.mulf %73, %76 : vector<128x128xf32>
    %cst_41 = arith.constant 1.000000e+00 : f32
    %78 = vector.broadcast %cst_41 : f32 to vector<128x128xf32>
    %79 = arith.subf %78, %73 : vector<128x128xf32>
    %80 = arith.mulf %79, %62 : vector<128x128xf32>
    %81 = arith.addf %77, %80 : vector<128x128xf32>
    %c0_42 = arith.constant 0 : index
    %c0_43 = arith.constant 0 : index
    %82 = vector.load %arg17[%c0_42, %c0_43] : memref<128x128xf32, #tpu.memory_space<vmem>>, vector<128x128xf32>
    tpu.vector_store %arg17[%c0_42, %c0_43], %81 {strides = array<i32>} : memref<128x128xf32, #tpu.memory_space<vmem>>, vector<128x128xf32>,
    return
  }
  func.func @transform_0(%arg0: i32) -> (i32, i32) {
    %c0_i32 = arith.constant 0 : i32
    %c0_i32_0 = arith.constant 0 : i32
    return %arg0, %c0_i32 : i32, i32
  }
  func.func @transform_1(%arg0: i32) -> (i32, i32) {
    %c0_i32 = arith.constant 0 : i32
    %c0_i32_0 = arith.constant 0 : i32
    return %arg0, %c0_i32 : i32, i32
  }
  func.func @transform_2(%arg0: i32) -> (i32, i32) {
    %c0_i32 = arith.constant 0 : i32
    %c0_i32_0 = arith.constant 0 : i32
    %c0_i32_1 = arith.constant 0 : i32
    return %c0_i32, %c0_i32_0 : i32, i32
  }
  func.func @transform_3(%arg0: i32) -> (i32, i32) {
    %c0_i32 = arith.constant 0 : i32
    %c0_i32_0 = arith.constant 0 : i32
    %c0_i32_1 = arith.constant 0 : i32
    return %c0_i32, %c0_i32_0 : i32, i32
  }
  func.func @transform_4(%arg0: i32) -> (i32, i32) {
    %c0_i32 = arith.constant 0 : i32
    %c0_i32_0 = arith.constant 0 : i32
    %c0_i32_1 = arith.constant 0 : i32
    return %c0_i32, %c0_i32_0 : i32, i32
  }
  func.func @transform_5(%arg0: i32) -> (i32, i32) {
    %c0_i32 = arith.constant 0 : i32
    %c0_i32_0 = arith.constant 0 : i32
    %c0_i32_1 = arith.constant 0 : i32
    return %c0_i32, %c0_i32_0 : i32, i32
  }
  func.func @transform_6(%arg0: i32) -> (i32, i32) {
    %c0_i32 = arith.constant 0 : i32
    %c0_i32_0 = arith.constant 0 : i32
    %c0_i32_1 = arith.constant 0 : i32
    return %c0_i32, %c0_i32_0 : i32, i32
  }
  func.func @transform_7(%arg0: i32) -> (i32, i32) {
    %c0_i32 = arith.constant 0 : i32
    %c0_i32_0 = arith.constant 0 : i32
    %c0_i32_1 = arith.constant 0 : i32
    return %c0_i32, %c0_i32_0 : i32, i32
  }
  func.func @transform_8(%arg0: i32) -> (i32, i32) {
    %c0_i32 = arith.constant 0 : i32
    %c0_i32_0 = arith.constant 0 : i32
    %c0_i32_1 = arith.constant 0 : i32
    return %c0_i32, %c0_i32_0 : i32, i32
  }
  func.func @transform_9(%arg0: i32) -> (i32, i32) {
    %c0_i32 = arith.constant 0 : i32
    %c0_i32_0 = arith.constant 0 : i32
    %c0_i32_1 = arith.constant 0 : i32
    return %c0_i32, %c0_i32_0 : i32, i32
  }
  func.func @transform_10(%arg0: i32) -> (i32, i32) {
    %c0_i32 = arith.constant 0 : i32
    %c0_i32_0 = arith.constant 0 : i32
    %c0_i32_1 = arith.constant 0 : i32
    return %c0_i32, %c0_i32_0 : i32, i32
  }
  func.func @transform_11(%arg0: i32) -> (i32, i32) {
    %c0_i32 = arith.constant 0 : i32
    %c0_i32_0 = arith.constant 0 : i32
    %c0_i32_1 = arith.constant 0 : i32
    return %c0_i32, %c0_i32_0 : i32, i32
  }
  func.func @transform_12(%arg0: i32) -> (i32, i32) {
    %c0_i32 = arith.constant 0 : i32
    %c0_i32_0 = arith.constant 0 : i32
    %c0_i32_1 = arith.constant 0 : i32
    return %c0_i32, %c0_i32_0 : i32, i32
  }
  func.func @transform_13(%arg0: i32) -> (i32, i32) {
    %c0_i32 = arith.constant 0 : i32
    %c0_i32_0 = arith.constant 0 : i32
    %c0_i32_1 = arith.constant 0 : i32
    return %c0_i32, %c0_i32_0 : i32, i32
  }
  func.func @transform_14(%arg0: i32) -> (i32, i32) {
    %c0_i32 = arith.constant 0 : i32
    %c0_i32_0 = arith.constant 0 : i32
    %c0_i32_1 = arith.constant 0 : i32
    return %c0_i32, %c0_i32_0 : i32, i32
  }
  func.func @transform_15(%arg0: i32) -> (i32, i32) {
    %c0_i32 = arith.constant 0 : i32
    %c0_i32_0 = arith.constant 0 : i32
    %c0_i32_1 = arith.constant 0 : i32
    return %c0_i32, %c0_i32_0 : i32, i32
  }
  func.func @transform_16(%arg0: i32) -> (i32, i32) {
    %c0_i32 = arith.constant 0 : i32
    %c0_i32_0 = arith.constant 0 : i32
    return %arg0, %c0_i32 : i32, i32
  }
}

</mosaic_0001>

<llo_original>
// kernel: tpu_custom_call.1
$region0: #{tpu_custom_call.1}
  #allocation0 [shape = 'u32[]', space=smem, size = 0x4, offset = 0x4, fixed_abs, tag = 'smem constant byte address 0x4 - core index']
  #allocation1 [shape = 'u32[144,128]{1,0:T(1,128)}', space=vmem, size = 0x12000, scoped, tag = 'internal scratch']
  %s0 = inlined_call_operand.vmem [shape: s32[128,12], index: 0, kind: input, shape index: {}]
  %s1 = inlined_call_operand.vmem [shape: f32[128,64], index: 1, kind: input, shape index: {}]
  %s2 = inlined_call_operand.hbm [shape: f32[12,384], index: 2, kind: input, shape index: {}]
  %s3 = inlined_call_operand.vmem [shape: f32[1,384], index: 3, kind: input, shape index: {}]
  %s4 = inlined_call_operand.hbm [shape: f32[384,640], index: 4, kind: input, shape index: {}]
  %s5 = inlined_call_operand.vmem [shape: f32[1,640], index: 5, kind: input, shape index: {}]
  %s6 = inlined_call_operand.vmem [shape: f32[1,640], index: 6, kind: input, shape index: {}]
  %s7 = inlined_call_operand.vmem [shape: f32[1,640], index: 7, kind: input, shape index: {}]
  %s8 = inlined_call_operand.vmem [shape: f32[64,128], index: 8, kind: input, shape index: {}]
  %s9 = inlined_call_operand.hbm [shape: f32[128,128], index: 9, kind: input, shape index: {}]
  %s10 = inlined_call_operand.hbm [shape: f32[128,128], index: 10, kind: input, shape index: {}]
  %s11 = inlined_call_operand.vmem [shape: f32[1,128], index: 11, kind: input, shape index: {}]
  %s12 = inlined_call_operand.vmem [shape: f32[128,256], index: 12, kind: input, shape index: {}]
  %s13 = inlined_call_operand.vmem [shape: f32[1,256], index: 13, kind: input, shape index: {}]
  %s14 = inlined_call_operand.hbm [shape: f32[128,256], index: 14, kind: input, shape index: {}]
  %s15 = inlined_call_operand.vmem [shape: f32[1,256], index: 15, kind: input, shape index: {}]
  %s16 = inlined_call_operand.hbm [shape: f32[128,128], index: 16, kind: output, shape index: {}]
  %s17 = sld [smem:[#allocation0]]
  $region94: #{tpu_custom_call.1} parent=0
    _
  %s19 = ssub.s32 1, %s17
  %s20 = scalar_select 0, %s19, %s17
  $region1: #{tpu_custom_call.1} parent=0
    #allocation2 [shape = 'u8[24576]{0}', space=vmem, size = 0x6000, scoped, tag = 'input window, operand 2, single buffered']
    #allocation3 [shape = 's32[1]{0}', space=sflag, size = 0x4, scoped, tag = 'scoped memory for tpu_custom_call.1']
    #allocation4 [shape = 's32[1]{0}', space=sflag, size = 0x4, scoped, tag = 'scoped memory for tpu_custom_call.1']
    #allocation5 [shape = 'u8[983040]{0}', space=vmem, size = 0xf0000, scoped, tag = 'input window, operand 4, single buffered']
    #allocation6 [shape = 's32[1]{0}', space=sflag, size = 0x4, scoped, tag = 'scoped memory for tpu_custom_call.1']
    #allocation7 [shape = 'u8[65536]{0}', space=vmem, size = 0x10000, scoped, tag = 'input window, operand 9, single buffered']
    #allocation8 [shape = 'u8[65536]{0}', space=vmem, size = 0x10000, scoped, tag = 'input window, operand 10, single buffered']
    #allocation9 [shape = 's32[1]{0}', space=sflag, size = 0x4, scoped, tag = 'scoped memory for tpu_custom_call.1']
    #allocation10 [shape = 'u8[131072]{0}', space=vmem, size = 0x20000, scoped, tag = 'input window, operand 14, single buffered']
    #allocation11 [shape = 'u8[65536]{0}', space=vmem, size = 0x10000, scoped, tag = 'output window, operand 0, single buffered']
    %21 = vsyncpa [#allocation3], 0
    %22 = vsyncpa [#allocation6], 0
    %23 = vsyncpa [#allocation9], 0
    %24 = vsyncpa [#allocation4], 0
    // Predicated region
    $region2: #{tpu_custom_call.1} parent=1 // pred_check
      _
    $region3: #{tpu_custom_call.1} parent=1 // pred_check_branch
      %26 = sbr.rel (0) target = $region5
    $region4: #{tpu_custom_call.1} parent=1 // pred_region
      _
    $region5: #{tpu_custom_call.1} parent=1 // pred_fallthru
      _
    // Predicated region
    $region6: #{tpu_custom_call.1} parent=1 // pred_check
      _
    $region7: #{tpu_custom_call.1} parent=1 // pred_check_branch
      %28 = sbr.rel (0) target = $region9
    $region8: #{tpu_custom_call.1} parent=1 // pred_region
      _
    $region9: #{tpu_custom_call.1} parent=1 // pred_fallthru
      _
    // Predicated region
    $region10: #{tpu_custom_call.1} parent=1 // pred_check
      _
    $region11: #{tpu_custom_call.1} parent=1 // pred_check_branch
      %30 = sbr.rel (0) target = $region13
    $region12: #{tpu_custom_call.1} parent=1 // pred_region
      %s32 = ssub.s32 768, 768
      %33 = vsyncadd [#allocation3], %s32
      %s34 = sshll.u32 [#allocation2], 4
      %s35 = int_to_ptr.vmem [resolvable:$true] %s34
      %40 = dma.hbm_to_vmem [thread:$0]  %s2, 768, %s35, [#allocation3], 384, 384, 24
    $region13: #{tpu_custom_call.1} parent=1 // pred_fallthru
      _
    // Predicated region
    $region14: #{tpu_custom_call.1} parent=1 // pred_check
      _
    $region15: #{tpu_custom_call.1} parent=1 // pred_check_branch
      %42 = sbr.rel (0) target = $region17
    $region16: #{tpu_custom_call.1} parent=1 // pred_region
      _
    $region17: #{tpu_custom_call.1} parent=1 // pred_fallthru
      _
    // Predicated region
    $region18: #{tpu_custom_call.1} parent=1 // pred_check
      _
    $region19: #{tpu_custom_call.1} parent=1 // pred_check_branch
      %44 = sbr.rel (0) target = $region21
    $region20: #{tpu_custom_call.1} parent=1 // pred_region
      %s46 = ssub.s32 30720, 30720
      %47 = vsyncadd [#allocation6], %s46
      %s48 = sshll.u32 [#allocation5], 4
      %s49 = int_to_ptr.vmem [resolvable:$true] %s48
      %54 = dma.hbm_to_vmem [thread:$0]  %s4, 30720, %s49, [#allocation6], 640, 640, 40
    $region21: #{tpu_custom_call.1} parent=1 // pred_fallthru
      _
    // Predicated region
    $region22: #{tpu_custom_call.1} parent=1 // pred_check
      _
    $region23: #{tpu_custom_call.1} parent=1 // pred_check_branch
      %56 = sbr.rel (0) target = $region25
    $region24: #{tpu_custom_call.1} parent=1 // pred_region
      _
    $region25: #{tpu_custom_call.1} parent=1 // pred_fallthru
      _
    // Predicated region
    $region26: #{tpu_custom_call.1} parent=1 // pred_check
      _
    $region27: #{tpu_custom_call.1} parent=1 // pred_check_branch
      %58 = sbr.rel (0) target = $region29
    $region28: #{tpu_custom_call.1} parent=1 // pred_region
      _
    $region29: #{tpu_custom_call.1} parent=1 // pred_fallthru
      _
    // Predicated region
    $region30: #{tpu_custom_call.1} parent=1 // pred_check
      _
    $region31: #{tpu_custom_call.1} parent=1 // pred_check_branch
      %60 = sbr.rel (0) target = $region33
    $region32: #{tpu_custom_call.1} parent=1 // pred_region
      _
    $region33: #{tpu_custom_call.1} parent=1 // pred_fallthru
      _
    // Predicated region
    $region34: #{tpu_custom_call.1} parent=1 // pred_check
      _
    $region35: #{tpu_custom_call.1} parent=1 // pred_check_branch
      %62 = sbr.rel (0) target = $region37
    $region36: #{tpu_custom_call.1} parent=1 // pred_region
      _
    $region37: #{tpu_custom_call.1} parent=1 // pred_fallthru
      _
    // Predicated region
    $region38: #{tpu_custom_call.1} parent=1 // pred_check
      _
    $region39: #{tpu_custom_call.1} parent=1 // pred_check_branch
      %64 = sbr.rel (0) target = $region41
    $region40: #{tpu_custom_call.1} parent=1 // pred_region
      %s66 = ssub.s32 2048, 2048
      %67 = vsyncadd [#allocation6], %s66
      %s68 = sshll.u32 [#allocation7], 4
      %s69 = int_to_ptr.vmem [resolvable:$true] %s68
      %74 = dma.hbm_to_vmem [thread:$0]  %s9, 2048, %s69, [#allocation6], 128, 128, 8
    $region41: #{tpu_custom_call.1} parent=1 // pred_fallthru
      _
    // Predicated region
    $region42: #{tpu_custom_call.1} parent=1 // pred_check
      _
    $region43: #{tpu_custom_call.1} parent=1 // pred_check_branch
      %76 = sbr.rel (0) target = $region45
    $region44: #{tpu_custom_call.1} parent=1 // pred_region
      %s78 = ssub.s32 2048, 2048
      %79 = vsyncadd [#allocation9], %s78
      %s80 = sshll.u32 [#allocation8], 4
      %s81 = int_to_ptr.vmem [resolvable:$true] %s80
      %86 = dma.hbm_to_vmem [thread:$0]  %s10, 2048, %s81, [#allocation9], 128, 128, 8
    $region45: #{tpu_custom_call.1} parent=1 // pred_fallthru
      _
    // Predicated region
    $region46: #{tpu_custom_call.1} parent=1 // pred_check
      _
    $region47: #{tpu_custom_call.1} parent=1 // pred_check_branch
      %88 = sbr.rel (0) target = $region49
    $region48: #{tpu_custom_call.1} parent=1 // pred_region
      _
    $region49: #{tpu_custom_call.1} parent=1 // pred_fallthru
      _
    // Predicated region
    $region50: #{tpu_custom_call.1} parent=1 // pred_check
      _
    $region51: #{tpu_custom_call.1} parent=1 // pred_check_branch
      %90 = sbr.rel (0) target = $region53
    $region52: #{tpu_custom_call.1} parent=1 // pred_region
      _
    $region53: #{tpu_custom_call.1} parent=1 // pred_fallthru
      _
    // Predicated region
    $region54: #{tpu_custom_call.1} parent=1 // pred_check
      _
    $region55: #{tpu_custom_call.1} parent=1 // pred_check_branch
      %92 = sbr.rel (0) target = $region57
    $region56: #{tpu_custom_call.1} parent=1 // pred_region
      _
    $region57: #{tpu_custom_call.1} parent=1 // pred_fallthru
      _
    // Predicated region
    $region58: #{tpu_custom_call.1} parent=1 // pred_check
      _
    $region59: #{tpu_custom_call.1} parent=1 // pred_check_branch
      %94 = sbr.rel (0) target = $region61
    $region60: #{tpu_custom_call.1} parent=1 // pred_region
      %s96 = ssub.s32 4096, 4096
      %97 = vsyncadd [#allocation9], %s96
      %s98 = sshll.u32 [#allocation10], 4
      %s99 = int_to_ptr.vmem [resolvable:$true] %s98
      %104 = dma.hbm_to_vmem [thread:$0]  %s14, 4096, %s99, [#allocation9], 256, 256, 16
    $region61: #{tpu_custom_call.1} parent=1 // pred_fallthru
      _
    // Predicated region
    $region62: #{tpu_custom_call.1} parent=1 // pred_check
      _
    $region63: #{tpu_custom_call.1} parent=1 // pred_check_branch
      %106 = sbr.rel (0) target = $region65
    $region64: #{tpu_custom_call.1} parent=1 // pred_region
      _
    $region65: #{tpu_custom_call.1} parent=1 // pred_fallthru
      _
    // Predicated region
    $region66: #{tpu_custom_call.1} parent=1 // pred_check
      _
    $region67: #{tpu_custom_call.1} parent=1 // pred_check_branch
      %108 = sbr.rel (0) target = $region69
    $region68: #{tpu_custom_call.1} parent=1 // pred_region
      %109 = dma.done [#allocation3], 768
    $region69: #{tpu_custom_call.1} parent=1 // pred_fallthru
      _
    // Predicated region
    $region70: #{tpu_custom_call.1} parent=1 // pred_check
      _
    $region71: #{tpu_custom_call.1} parent=1 // pred_check_branch
      %111 = sbr.rel (0) target = $region73
    $region72: #{tpu_custom_call.1} parent=1 // pred_region
      %112 = dma.done [#allocation6], 30720
    $region73: #{tpu_custom_call.1} parent=1 // pred_fallthru
      _
    // Predicated region
    $region74: #{tpu_custom_call.1} parent=1 // pred_check
      _
    $region75: #{tpu_custom_call.1} parent=1 // pred_check_branch
      %114 = sbr.rel (0) target = $region77
    $region76: #{tpu_custom_call.1} parent=1 // pred_region
      %115 = dma.done [#allocation6], 2048
    $region77: #{tpu_custom_call.1} parent=1 // pred_fallthru
      _
    // Predicated region
    $region78: #{tpu_custom_call.1} parent=1 // pred_check
      _
    $region79: #{tpu_custom_call.1} parent=1 // pred_check_branch
      %117 = sbr.rel (0) target = $region81
    $region80: #{tpu_custom_call.1} parent=1 // pred_region
      %118 = dma.done [#allocation9], 2048
    $region81: #{tpu_custom_call.1} parent=1 // pred_fallthru
      _
    // Predicated region
    $region82: #{tpu_custom_call.1} parent=1 // pred_check
      _
    $region83: #{tpu_custom_call.1} parent=1 // pred_check_branch
      %120 = sbr.rel (0) target = $region85
    $region84: #{tpu_custom_call.1} parent=1 // pred_region
      %121 = dma.done [#allocation9], 4096
    $region85: #{tpu_custom_call.1} parent=1 // pred_fallthru
      _
    %v122 = vld [vmem:[%s0] sm:$0xff]
    %v123 = vld [vmem:[%s0 + $0x8] sm:$0xff]
    %v124 = vld [vmem:[%s0 + $0x10] sm:$0xff]
    %v125 = vld [vmem:[%s0 + $0x18] sm:$0xff]
    %v126 = vld [vmem:[%s0 + $0x20] sm:$0xff]
    %v127 = vld [vmem:[%s0 + $0x28] sm:$0xff]
    %v128 = vld [vmem:[%s0 + $0x30] sm:$0xff]
    %v129 = vld [vmem:[%s0 + $0x38] sm:$0xff]
    %v130 = vld [vmem:[%s0 + $0x40] sm:$0xff]
    %v131 = vld [vmem:[%s0 + $0x48] sm:$0xff]
    %v132 = vld [vmem:[%s0 + $0x50] sm:$0xff]
    %v133 = vld [vmem:[%s0 + $0x58] sm:$0xff]
    %v134 = vld [vmem:[%s0 + $0x60] sm:$0xff]
    %v135 = vld [vmem:[%s0 + $0x68] sm:$0xff]
    %v136 = vld [vmem:[%s0 + $0x70] sm:$0xff]
    %v137 = vld [vmem:[%s0 + $0x78] sm:$0xff]
    %v138 = vcvt.s32.f32 %v122
    %v139 = vcvt.s32.f32 %v123
    %v140 = vcvt.s32.f32 %v124
    %v141 = vcvt.s32.f32 %v125
    %v142 = vcvt.s32.f32 %v126
    %v143 = vcvt.s32.f32 %v127
    %v144 = vcvt.s32.f32 %v128
    %v145 = vcvt.s32.f32 %v129
    %v146 = vcvt.s32.f32 %v130
    %v147 = vcvt.s32.f32 %v131
    %v148 = vcvt.s32.f32 %v132
    %v149 = vcvt.s32.f32 %v133
    %v150 = vcvt.s32.f32 %v134
    %v151 = vcvt.s32.f32 %v135
    %v152 = vcvt.s32.f32 %v136
    %v153 = vcvt.s32.f32 %v137
    %v154 = vld [vmem:[#allocation2] sm:$0xff]
    %v155 = vld [vmem:[#allocation2 + $0x8] sm:$0xff]
    %v156 = vld [vmem:[#allocation2 + $0x10] sm:$0xff]
    %v157 = vld [vmem:[#allocation2 + $0x18] sm:$0xf]
    %v158 = vld [vmem:[#allocation2 + $0x20] sm:$0xf]
    %v159 = vld [vmem:[#allocation2 + $0x28] sm:$0xf]
    %vm160 = vcmask 97280
    %v162 = vsel %vm160, %v138, 0
    %v165 = vsel %vm160, %v139, 0
    %v168 = vsel %vm160, %v140, 0
    %v171 = vsel %vm160, %v141, 0
    %v174 = vsel %vm160, %v142, 0
    %v177 = vsel %vm160, %v143, 0
    %v180 = vsel %vm160, %v144, 0
    %v183 = vsel %vm160, %v145, 0
    %v186 = vsel %vm160, %v146, 0
    %v189 = vsel %vm160, %v147, 0
    %v192 = vsel %vm160, %v148, 0
    %v195 = vsel %vm160, %v149, 0
    %v198 = vsel %vm160, %v150, 0
    %v201 = vsel %vm160, %v151, 0
    %v204 = vsel %vm160, %v152, 0
    %v207 = vsel %vm160, %v153, 0
    %vm209 = vcmask 1043456
    %v211 = vsel %vm209, %v157, 0
    %v214 = vsel %vm209, %v158, 0
    %v217 = vsel %vm209, %v159, 0
    %219 = vmatprep.subr.mxu0 0.0
    %220 = vmatpush1.msra.mxu0 0.0
    %221 = vmatprep.subr.mxu0 0.0
    %222 = vmatpush1.msra.mxu0 0.0
    %223 = vmatprep.subr.mxu0 0.0
    %224 = vmatpush1.msra.mxu0 0.0
    %225 = vmatprep.subr.mxu0 0.0
    %226 = vmatpush1.msra.mxu0 0.0
    %227 = vmatprep.subr.mxu0 0.0
    %228 = vmatpush1.msra.mxu0 0.0
    %229 = vmatprep.subr.mxu0 0.0
    %230 = vmatpush1.msra.mxu0 0.0
    %231 = vmatprep.subr.mxu0 0.0
    %232 = vmatpush1.msra.mxu0 0.0
    %233 = vmatprep.subr.mxu0 0.0
    %234 = vmatpush1.msra.mxu0 0.0
    %235 = vmatprep.subr.mxu0 0.0
    %236 = vmatpush1.msra.mxu0 0.0
    %237 = vmatprep.subr.mxu0 0.0
    %238 = vmatpush1.msra.mxu0 0.0
    %239 = vmatprep.subr.mxu0 0.0
    %240 = vmatpush1.msra.mxu0 0.0
    %241 = vmatprep.subr.mxu0 0.0
    %242 = vmatpush1.msra.mxu0 0.0
    %243 = vmatprep.subr.mxu0 0.0
    %244 = vmatpush1.msra.mxu0 0.0
    %245 = vmatprep.subr.mxu0 0.0
    %246 = vmatpush1.msra.mxu0 0.0
    %247 = vmatprep.subr.mxu0 %v214
    %248 = vmatpush1.msra.mxu0 %v211
    %249 = vmatprep.subr.mxu0 %v155
    %250 = vmatpush1.msra.mxu0 %v154
    %251 = vmatprep.subr.mxu0 0.0
    %252 = vmatpush2.msra.mxu0 0.0
    %253 = vmatprep.subr.mxu0 0.0
    %254 = vmatpush2.msra.mxu0 0.0
    %255 = vmatprep.subr.mxu0 0.0
    %256 = vmatpush2.msra.mxu0 0.0
    %257 = vmatprep.subr.mxu0 0.0
    %258 = vmatpush2.msra.mxu0 0.0
    %259 = vmatprep.subr.mxu0 0.0
    %260 = vmatpush2.msra.mxu0 0.0
    %261 = vmatprep.subr.mxu0 0.0
    %262 = vmatpush2.msra.mxu0 0.0
    %263 = vmatprep.subr.mxu0 0.0
    %264 = vmatpush2.msra.mxu0 0.0
    %265 = vmatprep.subr.mxu0 0.0
    %266 = vmatpush2.msra.mxu0 0.0
    %267 = vmatprep.subr.mxu0 0.0
    %268 = vmatpush2.msra.mxu0 0.0
    %269 = vmatprep.subr.mxu0 0.0
    %270 = vmatpush2.msra.mxu0 0.0
    %271 = vmatprep.subr.mxu0 0.0
    %272 = vmatpush2.msra.mxu0 0.0
    %273 = vmatprep.subr.mxu0 0.0
    %274 = vmatpush2.msra.mxu0 0.0
    %275 = vmatprep.subr.mxu0 0.0
    %276 = vmatpush2.msra.mxu0 0.0
    %277 = vmatprep.subr.mxu0 0.0
    %278 = vmatpush2.msra.mxu0 0.0
    %279 = vmatprep.subr.mxu0 0.0
    %280 = vmatpush2.msra.mxu0 0.0
    %281 = vmatprep.subr.mxu0 0.0
    %282 = vmatpush2.msra.mxu0 0.0
    %283 = vmatprep.mubr.f32.mxu0 0.0
    %284 = vmatmul.mubr.f32.gmra.mxu0 %v162
    %v285 = vpop.f32.mrf.mxu0
    %v286 = vadd.f32 0.0, %v285
    %v287 = vpop.f32.mrf.mxu0
    %v288 = vadd.f32 0.0, %v287
    %289 = vmatprep.mubr.f32.mxu0 0.0
    %290 = vmatmul.mubr.f32.gmra.mxu0 %v165
    %v291 = vpop.f32.mrf.mxu0
    %v292 = vadd.f32 0.0, %v291
    %v293 = vpop.f32.mrf.mxu0
    %v294 = vadd.f32 0.0, %v293
    %295 = vmatprep.mubr.f32.mxu0 0.0
    %296 = vmatmul.mubr.f32.gmra.mxu0 %v168
    %v297 = vpop.f32.mrf.mxu0
    %v298 = vadd.f32 0.0, %v297
    %v299 = vpop.f32.mrf.mxu0
    %v300 = vadd.f32 0.0, %v299
    %301 = vmatprep.mubr.f32.mxu0 0.0
    %302 = vmatmul.mubr.f32.gmra.mxu0 %v171
    %v303 = vpop.f32.mrf.mxu0
    %v304 = vadd.f32 0.0, %v303
    %v305 = vpop.f32.mrf.mxu0
    %v306 = vadd.f32 0.0, %v305
    %307 = vmatprep.mubr.f32.mxu0 0.0
    %308 = vmatmul.mubr.f32.gmra.mxu0 %v174
    %v309 = vpop.f32.mrf.mxu0
    %v310 = vadd.f32 0.0, %v309
    %v311 = vpop.f32.mrf.mxu0
    %v312 = vadd.f32 0.0, %v311
    %313 = vmatprep.mubr.f32.mxu0 0.0
    %314 = vmatmul.mubr.f32.gmra.mxu0 %v177
    %v315 = vpop.f32.mrf.mxu0
    %v316 = vadd.f32 0.0, %v315
    %v317 = vpop.f32.mrf.mxu0
    %v318 = vadd.f32 0.0, %v317
    %319 = vmatprep.mubr.f32.mxu0 0.0
    %320 = vmatmul.mubr.f32.gmra.mxu0 %v180
    %v321 = vpop.f32.mrf.mxu0
    %v322 = vadd.f32 0.0, %v321
    %v323 = vpop.f32.mrf.mxu0
    %v324 = vadd.f32 0.0, %v323
    %325 = vmatprep.mubr.f32.mxu0 0.0
    %326 = vmatmul.mubr.f32.gmra.mxu0 %v183
    %v327 = vpop.f32.mrf.mxu0
    %v328 = vadd.f32 0.0, %v327
    %v329 = vpop.f32.mrf.mxu0
    %v330 = vadd.f32 0.0, %v329
    %331 = vmatprep.mubr.f32.mxu0 0.0
    %332 = vmatmul.mubr.f32.gmra.mxu0 %v186
    %v333 = vpop.f32.mrf.mxu0
    %v334 = vadd.f32 0.0, %v333
    %v335 = vpop.f32.mrf.mxu0
    %v336 = vadd.f32 0.0, %v335
    %337 = vmatprep.mubr.f32.mxu0 0.0
    %338 = vmatmul.mubr.f32.gmra.mxu0 %v189
    %v339 = vpop.f32.mrf.mxu0
    %v340 = vadd.f32 0.0, %v339
    %v341 = vpop.f32.mrf.mxu0
    %v342 = vadd.f32 0.0, %v341
    %343 = vmatprep.mubr.f32.mxu0 0.0
    %344 = vmatmul.mubr.f32.gmra.mxu0 %v192
    %v345 = vpop.f32.mrf.mxu0
    %v346 = vadd.f32 0.0, %v345
    %v347 = vpop.f32.mrf.mxu0
    %v348 = vadd.f32 0.0, %v347
    %349 = vmatprep.mubr.f32.mxu0 0.0
    %350 = vmatmul.mubr.f32.gmra.mxu0 %v195
    %v351 = vpop.f32.mrf.mxu0
    %v352 = vadd.f32 0.0, %v351
    %v353 = vpop.f32.mrf.mxu0
    %v354 = vadd.f32 0.0, %v353
    %355 = vmatprep.mubr.f32.mxu0 0.0
    %356 = vmatmul.mubr.f32.gmra.mxu0 %v198
    %v357 = vpop.f32.mrf.mxu0
    %v358 = vadd.f32 0.0, %v357
    %v359 = vpop.f32.mrf.mxu0
    %v360 = vadd.f32 0.0, %v359
    %361 = vmatprep.mubr.f32.mxu0 0.0
    %362 = vmatmul.mubr.f32.gmra.mxu0 %v201
    %v363 = vpop.f32.mrf.mxu0
    %v364 = vadd.f32 0.0, %v363
    %v365 = vpop.f32.mrf.mxu0
    %v366 = vadd.f32 0.0, %v365
    %367 = vmatprep.mubr.f32.mxu0 0.0
    %368 = vmatmul.mubr.f32.gmra.mxu0 %v204
    %v369 = vpop.f32.mrf.mxu0
    %v370 = vadd.f32 0.0, %v369
    %v371 = vpop.f32.mrf.mxu0
    %v372 = vadd.f32 0.0, %v371
    %373 = vmatprep.mubr.f32.mxu0 0.0
    %374 = vmatmul.mubr.f32.gmra.mxu0 %v207
    %v375 = vpop.f32.mrf.mxu0
    %v376 = vadd.f32 0.0, %v375
    %v377 = vpop.f32.mrf.mxu0
    %v378 = vadd.f32 0.0, %v377
    %379 = vdwg.mxu0
    %380 = vmatprep.subr.mxu0 0.0
    %381 = vmatpush1.msra.mxu0 0.0
    %382 = vmatprep.subr.mxu0 0.0
    %383 = vmatpush1.msra.mxu0 0.0
    %384 = vmatprep.subr.mxu0 0.0
    %385 = vmatpush1.msra.mxu0 0.0
    %386 = vmatprep.subr.mxu0 0.0
    %387 = vmatpush1.msra.mxu0 0.0
    %388 = vmatprep.subr.mxu0 0.0
    %389 = vmatpush1.msra.mxu0 0.0
    %390 = vmatprep.subr.mxu0 0.0
    %391 = vmatpush1.msra.mxu0 0.0
    %392 = vmatprep.subr.mxu0 0.0
    %393 = vmatpush1.msra.mxu0 0.0
    %394 = vmatprep.subr.mxu0 0.0
    %395 = vmatpush1.msra.mxu0 0.0
    %396 = vmatprep.subr.mxu0 0.0
    %397 = vmatpush1.msra.mxu0 0.0
    %398 = vmatprep.subr.mxu0 0.0
    %399 = vmatpush1.msra.mxu0 0.0
    %400 = vmatprep.subr.mxu0 0.0
    %401 = vmatpush1.msra.mxu0 0.0
    %402 = vmatprep.subr.mxu0 0.0
    %403 = vmatpush1.msra.mxu0 0.0
    %404 = vmatprep.subr.mxu0 0.0
    %405 = vmatpush1.msra.mxu0 0.0
    %406 = vmatprep.subr.mxu0 0.0
    %407 = vmatpush1.msra.mxu0 0.0
    %408 = vmatprep.subr.mxu0 0.0
    %409 = vmatpush1.msra.mxu0 %v217
    %410 = vmatprep.subr.mxu0 0.0
    %411 = vmatpush1.msra.mxu0 %v156
    %412 = vmatprep.subr.mxu0 0.0
    %413 = vmatpush2.msra.mxu0 0.0
    %414 = vmatprep.subr.mxu0 0.0
    %415 = vmatpush2.msra.mxu0 0.0
    %416 = vmatprep.subr.mxu0 0.0
    %417 = vmatpush2.msra.mxu0 0.0
    %418 = vmatprep.subr.mxu0 0.0
    %419 = vmatpush2.msra.mxu0 0.0
    %420 = vmatprep.subr.mxu0 0.0
    %421 = vmatpush2.msra.mxu0 0.0
    %422 = vmatprep.subr.mxu0 0.0
    %423 = vmatpush2.msra.mxu0 0.0
    %424 = vmatprep.subr.mxu0 0.0
    %425 = vmatpush2.msra.mxu0 0.0
    %426 = vmatprep.subr.mxu0 0.0
    %427 = vmatpush2.msra.mxu0 0.0
    %428 = vmatprep.subr.mxu0 0.0
    %429 = vmatpush2.msra.mxu0 0.0
    %430 = vmatprep.subr.mxu0 0.0
    %431 = vmatpush2.msra.mxu0 0.0
    %432 = vmatprep.subr.mxu0 0.0
    %433 = vmatpush2.msra.mxu0 0.0
    %434 = vmatprep.subr.mxu0 0.0
    %435 = vmatpush2.msra.mxu0 0.0
    %436 = vmatprep.subr.mxu0 0.0
    %437 = vmatpush2.msra.mxu0 0.0
    %438 = vmatprep.subr.mxu0 0.0
    %439 = vmatpush2.msra.mxu0 0.0
    %440 = vmatprep.subr.mxu0 0.0
    %441 = vmatpush2.msra.mxu0 0.0
    %442 = vmatprep.subr.mxu0 0.0
    %443 = vmatpush2.msra.mxu0 0.0
    %444 = vmatprep.mubr.f32.mxu0 0.0
    %445 = vmatmul.mubr.f32.gmra.mxu0 %v162
    %v446 = vpop.f32.mrf.mxu0
    %v447 = vadd.f32 0.0, %v446
    %v448 = vpop.f32.mrf.mxu0
    %449 = vmatprep.mubr.f32.mxu0 0.0
    %450 = vmatmul.mubr.f32.gmra.mxu0 %v165
    %v451 = vpop.f32.mrf.mxu0
    %v452 = vadd.f32 0.0, %v451
    %v453 = vpop.f32.mrf.mxu0
    %454 = vmatprep.mubr.f32.mxu0 0.0
    %455 = vmatmul.mubr.f32.gmra.mxu0 %v168
    %v456 = vpop.f32.mrf.mxu0
    %v457 = vadd.f32 0.0, %v456
    %v458 = vpop.f32.mrf.mxu0
    %459 = vmatprep.mubr.f32.mxu0 0.0
    %460 = vmatmul.mubr.f32.gmra.mxu0 %v171
    %v461 = vpop.f32.mrf.mxu0
    %v462 = vadd.f32 0.0, %v461
    %v463 = vpop.f32.mrf.mxu0
    %464 = vmatprep.mubr.f32.mxu0 0.0
    %465 = vmatmul.mubr.f32.gmra.mxu0 %v174
    %v466 = vpop.f32.mrf.mxu0
    %v467 = vadd.f32 0.0, %v466
    %v468 = vpop.f32.mrf.mxu0
    %469 = vmatprep.mubr.f32.mxu0 0.0
    %470 = vmatmul.mubr.f32.gmra.mxu0 %v177
    %v471 = vpop.f32.mrf.mxu0
    %v472 = vadd.f32 0.0, %v471
    %v473 = vpop.f32.mrf.mxu0
    %474 = vmatprep.mubr.f32.mxu0 0.0
    %475 = vmatmul.mubr.f32.gmra.mxu0 %v180
    %v476 = vpop.f32.mrf.mxu0
    %v477 = vadd.f32 0.0, %v476
    %v478 = vpop.f32.mrf.mxu0
    %479 = vmatprep.mubr.f32.mxu0 0.0
    %480 = vmatmul.mubr.f32.gmra.mxu0 %v183
    %v481 = vpop.f32.mrf.mxu0
    %v482 = vadd.f32 0.0, %v481
    %v483 = vpop.f32.mrf.mxu0
    %484 = vmatprep.mubr.f32.mxu0 0.0
    %485 = vmatmul.mubr.f32.gmra.mxu0 %v186
    %v486 = vpop.f32.mrf.mxu0
    %v487 = vadd.f32 0.0, %v486
    %v488 = vpop.f32.mrf.mxu0
    %489 = vmatprep.mubr.f32.mxu0 0.0
    %490 = vmatmul.mubr.f32.gmra.mxu0 %v189
    %v491 = vpop.f32.mrf.mxu0
    %v492 = vadd.f32 0.0, %v491
    %v493 = vpop.f32.mrf.mxu0
    %494 = vmatprep.mubr.f32.mxu0 0.0
    %495 = vmatmul.mubr.f32.gmra.mxu0 %v192
    %v496 = vpop.f32.mrf.mxu0
    %v497 = vadd.f32 0.0, %v496
    %v498 = vpop.f32.mrf.mxu0
    %499 = vmatprep.mubr.f32.mxu0 0.0
    %500 = vmatmul.mubr.f32.gmra.mxu0 %v195
    %v501 = vpop.f32.mrf.mxu0
    %v502 = vadd.f32 0.0, %v501
    %v503 = vpop.f32.mrf.mxu0
    %504 = vmatprep.mubr.f32.mxu0 0.0
    %505 = vmatmul.mubr.f32.gmra.mxu0 %v198
    %v506 = vpop.f32.mrf.mxu0
    %v507 = vadd.f32 0.0, %v506
    %v508 = vpop.f32.mrf.mxu0
    %509 = vmatprep.mubr.f32.mxu0 0.0
    %510 = vmatmul.mubr.f32.gmra.mxu0 %v201
    %v511 = vpop.f32.mrf.mxu0
    %v512 = vadd.f32 0.0, %v511
    %v513 = vpop.f32.mrf.mxu0
    %514 = vmatprep.mubr.f32.mxu0 0.0
    %515 = vmatmul.mubr.f32.gmra.mxu0 %v204
    %v516 = vpop.f32.mrf.mxu0
    %v517 = vadd.f32 0.0, %v516
    %v518 = vpop.f32.mrf.mxu0
    %519 = vmatprep.mubr.f32.mxu0 0.0
    %520 = vmatmul.mubr.f32.gmra.mxu0 %v207
    %v521 = vpop.f32.mrf.mxu0
    %v522 = vadd.f32 0.0, %v521
    %v523 = vpop.f32.mrf.mxu0
    %524 = vdwg.mxu0
    %v525 = vld [vmem:[%s3] sm:$0x7]
    %v527 = vlaneseq
    %v528 = vshrl.u32 %v527, 7
    %v529 = vsub.s32 0, %v528
    %v530 = vrot.slane %v525, %v529
    %v531 = vlaneseq
    %v532 = vshrl.u32 %v531, 7
    %v533 = vsub.s32 1, %v532
    %v534 = vrot.slane %v525, %v533
    %v535 = vlaneseq
    %v536 = vshrl.u32 %v535, 7
    %v537 = vsub.s32 2, %v536
    %v538 = vrot.slane %v525, %v537
    %vm542 = vcmp.eq.f32.partialorder %v286, %v530
    %vm543 = vcmp.eq.f32.partialorder %v288, %v534
    %vm544 = vcmp.eq.f32.partialorder %v447, %v538
    %vm545 = vcmp.eq.f32.partialorder %v292, %v530
    %vm546 = vcmp.eq.f32.partialorder %v294, %v534
    %vm547 = vcmp.eq.f32.partialorder %v452, %v538
    %vm548 = vcmp.eq.f32.partialorder %v298, %v530
    %vm549 = vcmp.eq.f32.partialorder %v300, %v534
    %vm550 = vcmp.eq.f32.partialorder %v457, %v538
    %vm551 = vcmp.eq.f32.partialorder %v304, %v530
    %vm552 = vcmp.eq.f32.partialorder %v306, %v534
    %vm553 = vcmp.eq.f32.partialorder %v462, %v538
    %vm554 = vcmp.eq.f32.partialorder %v310, %v530
    %vm555 = vcmp.eq.f32.partialorder %v312, %v534
    %vm556 = vcmp.eq.f32.partialorder %v467, %v538
    %vm557 = vcmp.eq.f32.partialorder %v316, %v530
    %vm558 = vcmp.eq.f32.partialorder %v318, %v534
    %vm559 = vcmp.eq.f32.partialorder %v472, %v538
    %vm560 = vcmp.eq.f32.partialorder %v322, %v530
    %vm561 = vcmp.eq.f32.partialorder %v324, %v534
    %vm562 = vcmp.eq.f32.partialorder %v477, %v538
    %vm563 = vcmp.eq.f32.partialorder %v328, %v530
    %vm564 = vcmp.eq.f32.partialorder %v330, %v534
    %vm565 = vcmp.eq.f32.partialorder %v482, %v538
    %vm566 = vcmp.eq.f32.partialorder %v334, %v530
    %vm567 = vcmp.eq.f32.partialorder %v336, %v534
    %vm568 = vcmp.eq.f32.partialorder %v487, %v538
    %vm569 = vcmp.eq.f32.partialorder %v340, %v530
    %vm570 = vcmp.eq.f32.partialorder %v342, %v534
    %vm571 = vcmp.eq.f32.partialorder %v492, %v538
    %vm572 = vcmp.eq.f32.partialorder %v346, %v530
    %vm573 = vcmp.eq.f32.partialorder %v348, %v534
    %vm574 = vcmp.eq.f32.partialorder %v497, %v538
    %vm575 = vcmp.eq.f32.partialorder %v352, %v530
    %vm576 = vcmp.eq.f32.partialorder %v354, %v534
    %vm577 = vcmp.eq.f32.partialorder %v502, %v538
    %vm578 = vcmp.eq.f32.partialorder %v358, %v530
    %vm579 = vcmp.eq.f32.partialorder %v360, %v534
    %vm580 = vcmp.eq.f32.partialorder %v507, %v538
    %vm581 = vcmp.eq.f32.partialorder %v364, %v530
    %vm582 = vcmp.eq.f32.partialorder %v366, %v534
    %vm583 = vcmp.eq.f32.partialorder %v512, %v538
    %vm584 = vcmp.eq.f32.partialorder %v370, %v530
    %vm585 = vcmp.eq.f32.partialorder %v372, %v534
    %vm586 = vcmp.eq.f32.partialorder %v517, %v538
    %vm587 = vcmp.eq.f32.partialorder %v376, %v530
    %vm588 = vcmp.eq.f32.partialorder %v378, %v534
    %vm589 = vcmp.eq.f32.partialorder %v522, %v538
    %v590 = vsel %vm542, 1, 0
    %v591 = vsel %vm543, 1, 0
    %v592 = vsel %vm544, 1, 0
    %v593 = vsel %vm545, 1, 0
    %v594 = vsel %vm546, 1, 0
    %v595 = vsel %vm547, 1, 0
    %v596 = vsel %vm548, 1, 0
    %v597 = vsel %vm549, 1, 0
    %v598 = vsel %vm550, 1, 0
    %v599 = vsel %vm551, 1, 0
    %v600 = vsel %vm552, 1, 0
    %v601 = vsel %vm553, 1, 0
    %v602 = vsel %vm554, 1, 0
    %v603 = vsel %vm555, 1, 0
    %v604 = vsel %vm556, 1, 0
    %v605 = vsel %vm557, 1, 0
    %v606 = vsel %vm558, 1, 0
    %v607 = vsel %vm559, 1, 0
    %v608 = vsel %vm560, 1, 0
    %v609 = vsel %vm561, 1, 0
    %v610 = vsel %vm562, 1, 0
    %v611 = vsel %vm563, 1, 0
    %v612 = vsel %vm564, 1, 0
    %v613 = vsel %vm565, 1, 0
    %v614 = vsel %vm566, 1, 0
    %v615 = vsel %vm567, 1, 0
    %v616 = vsel %vm568, 1, 0
    %v617 = vsel %vm569, 1, 0
    %v618 = vsel %vm570, 1, 0
    %v619 = vsel %vm571, 1, 0
    %v620 = vsel %vm572, 1, 0
    %v621 = vsel %vm573, 1, 0
    %v622 = vsel %vm574, 1, 0
    %v623 = vsel %vm575, 1, 0
    %v624 = vsel %vm576, 1, 0
    %v625 = vsel %vm577, 1, 0
    %v626 = vsel %vm578, 1, 0
    %v627 = vsel %vm579, 1, 0
    %v628 = vsel %vm580, 1, 0
    %v629 = vsel %vm581, 1, 0
    %v630 = vsel %vm582, 1, 0
    %v631 = vsel %vm583, 1, 0
    %v632 = vsel %vm584, 1, 0
    %v633 = vsel %vm585, 1, 0
    %v634 = vsel %vm586, 1, 0
    %v635 = vsel %vm587, 1, 0
    %v636 = vsel %vm588, 1, 0
    %v637 = vsel %vm589, 1, 0
    %v638 = vcvt.s32.f32 %v590
    %v639 = vcvt.s32.f32 %v591
    %v640 = vcvt.s32.f32 %v592
    %v641 = vcvt.s32.f32 %v593
    %v642 = vcvt.s32.f32 %v594
    %v643 = vcvt.s32.f32 %v595
    %v644 = vcvt.s32.f32 %v596
    %v645 = vcvt.s32.f32 %v597
    %v646 = vcvt.s32.f32 %v598
    %v647 = vcvt.s32.f32 %v599
    %v648 = vcvt.s32.f32 %v600
    %v649 = vcvt.s32.f32 %v601
    %v650 = vcvt.s32.f32 %v602
    %v651 = vcvt.s32.f32 %v603
    %v652 = vcvt.s32.f32 %v604
    %v653 = vcvt.s32.f32 %v605
    %v654 = vcvt.s32.f32 %v606
    %v655 = vcvt.s32.f32 %v607
    %v656 = vcvt.s32.f32 %v608
    %v657 = vcvt.s32.f32 %v609
    %v658 = vcvt.s32.f32 %v610
    %v659 = vcvt.s32.f32 %v611
    %v660 = vcvt.s32.f32 %v612
    %v661 = vcvt.s32.f32 %v613
    %v662 = vcvt.s32.f32 %v614
    %v663 = vcvt.s32.f32 %v615
    %v664 = vcvt.s32.f32 %v616
    %v665 = vcvt.s32.f32 %v617
    %v666 = vcvt.s32.f32 %v618
    %v667 = vcvt.s32.f32 %v619
    %v668 = vcvt.s32.f32 %v620
    %v669 = vcvt.s32.f32 %v621
    %v670 = vcvt.s32.f32 %v622
    %v671 = vcvt.s32.f32 %v623
    %v672 = vcvt.s32.f32 %v624
    %v673 = vcvt.s32.f32 %v625
    %v674 = vcvt.s32.f32 %v626
    %v675 = vcvt.s32.f32 %v627
    %v676 = vcvt.s32.f32 %v628
    %v677 = vcvt.s32.f32 %v629
    %v678 = vcvt.s32.f32 %v630
    %v679 = vcvt.s32.f32 %v631
    %v680 = vcvt.s32.f32 %v632
    %v681 = vcvt.s32.f32 %v633
    %v682 = vcvt.s32.f32 %v634
    %v683 = vcvt.s32.f32 %v635
    %v684 = vcvt.s32.f32 %v636
    %v685 = vcvt.s32.f32 %v637
    %v686 = vld [vmem:[#allocation5] sm:$0xff]
    %v687 = vld [vmem:[#allocation5 + $0x8] sm:$0xff]
    %v688 = vld [vmem:[#allocation5 + $0x10] sm:$0xff]
    %v689 = vld [vmem:[#allocation5 + $0x18] sm:$0xff]
    %v690 = vld [vmem:[#allocation5 + $0x20] sm:$0xff]
    %v691 = vld [vmem:[#allocation5 + $0x28] sm:$0xff]
    %v692 = vld [vmem:[#allocation5 + $0x30] sm:$0xff]
    %v693 = vld [vmem:[#allocation5 + $0x38] sm:$0xff]
    %v694 = vld [vmem:[#allocation5 + $0x40] sm:$0xff]
    %v695 = vld [vmem:[#allocation5 + $0x48] sm:$0xff]
    %v696 = vld [vmem:[#allocation5 + $0x50] sm:$0xff]
    %v697 = vld [vmem:[#allocation5 + $0x58] sm:$0xff]
    %v698 = vld [vmem:[#allocation5 + $0x60] sm:$0xff]
    %v699 = vld [vmem:[#allocation5 + $0x68] sm:$0xff]
    %v700 = vld [vmem:[#allocation5 + $0x70] sm:$0xff]
    %v701 = vld [vmem:[#allocation5 + $0x78] sm:$0xff]
    %v702 = vld [vmem:[#allocation5 + $0x80] sm:$0xff]
    %v703 = vld [vmem:[#allocation5 + $0x88] sm:$0xff]
    %v704 = vld [vmem:[#allocation5 + $0x90] sm:$0xff]
    %v705 = vld [vmem:[#allocation5 + $0x98] sm:$0xff]
    %v706 = vld [vmem:[#allocation5 + $0xa0] sm:$0xff]
    %v707 = vld [vmem:[#allocation5 + $0xa8] sm:$0xff]
    %v708 = vld [vmem:[#allocation5 + $0xb0] sm:$0xff]
    %v709 = vld [vmem:[#allocation5 + $0xb8] sm:$0xff]
    %v710 = vld [vmem:[#allocation5 + $0xc0] sm:$0xff]
    %v711 = vld [vmem:[#allocation5 + $0xc8] sm:$0xff]
    %v712 = vld [vmem:[#allocation5 + $0xd0] sm:$0xff]
    %v713 = vld [vmem:[#allocation5 + $0xd8] sm:$0xff]
    %v714 = vld [vmem:[#allocation5 + $0xe0] sm:$0xff]
    %v715 = vld [vmem:[#allocation5 + $0xe8] sm:$0xff]
    %v716 = vld [vmem:[#allocation5 + $0xf0] sm:$0xff]
    %v717 = vld [vmem:[#allocation5 + $0xf8] sm:$0xff]
    %v718 = vld [vmem:[#allocation5 + $0x100] sm:$0xff]
    %v719 = vld [vmem:[#allocation5 + $0x108] sm:$0xff]
    %v720 = vld [vmem:[#allocation5 + $0x110] sm:$0xff]
    %v721 = vld [vmem:[#allocation5 + $0x118] sm:$0xff]
    %v722 = vld [vmem:[#allocation5 + $0x120] sm:$0xff]
    %v723 = vld [vmem:[#allocation5 + $0x128] sm:$0xff]
    %v724 = vld [vmem:[#allocation5 + $0x130] sm:$0xff]
    %v725 = vld [vmem:[#allocation5 + $0x138] sm:$0xff]
    %v726 = vld [vmem:[#allocation5 + $0x140] sm:$0xff]
    %v727 = vld [vmem:[#allocation5 + $0x148] sm:$0xff]
    %v728 = vld [vmem:[#allocation5 + $0x150] sm:$0xff]
    %v729 = vld [vmem:[#allocation5 + $0x158] sm:$0xff]
    %v730 = vld [vmem:[#allocation5 + $0x160] sm:$0xff]
    %v731 = vld [vmem:[#allocation5 + $0x168] sm:$0xff]
    %v732 = vld [vmem:[#allocation5 + $0x170] sm:$0xff]
    %v733 = vld [vmem:[#allocation5 + $0x178] sm:$0xff]
    %v734 = vld [vmem:[#allocation5 + $0x180] sm:$0xff]
    %v735 = vld [vmem:[#allocation5 + $0x188] sm:$0xff]
    %v736 = vld [vmem:[#allocation5 + $0x190] sm:$0xff]
    %v737 = vld [vmem:[#allocation5 + $0x198] sm:$0xff]
    %v738 = vld [vmem:[#allocation5 + $0x1a0] sm:$0xff]
    %v739 = vld [vmem:[#allocation5 + $0x1a8] sm:$0xff]
    %v740 = vld [vmem:[#allocation5 + $0x1b0] sm:$0xff]
    %v741 = vld [vmem:[#allocation5 + $0x1b8] sm:$0xff]
    %v742 = vld [vmem:[#allocation5 + $0x1c0] sm:$0xff]
    %v743 = vld [vmem:[#allocation5 + $0x1c8] sm:$0xff]
    %v744 = vld [vmem:[#allocation5 + $0x1d0] sm:$0xff]
    %v745 = vld [vmem:[#allocation5 + $0x1d8] sm:$0xff]
    %v746 = vld [vmem:[#allocation5 + $0x1e0] sm:$0xff]
    %v747 = vld [vmem:[#allocation5 + $0x1e8] sm:$0xff]
    %v748 = vld [vmem:[#allocation5 + $0x1f0] sm:$0xff]
    %v749 = vld [vmem:[#allocation5 + $0x1f8] sm:$0xff]
    %v750 = vld [vmem:[#allocation5 + $0x200] sm:$0xff]
    %v751 = vld [vmem:[#allocation5 + $0x208] sm:$0xff]
    %v752 = vld [vmem:[#allocation5 + $0x210] sm:$0xff]
    %v753 = vld [vmem:[#allocation5 + $0x218] sm:$0xff]
    %v754 = vld [vmem:[#allocation5 + $0x220] sm:$0xff]
    %v755 = vld [vmem:[#allocation5 + $0x228] sm:$0xff]
    %v756 = vld [vmem:[#allocation5 + $0x230] sm:$0xff]
    %v757 = vld [vmem:[#allocation5 + $0x238] sm:$0xff]
    %v758 = vld [vmem:[#allocation5 + $0x240] sm:$0xff]
    %v759 = vld [vmem:[#allocation5 + $0x248] sm:$0xff]
    %v760 = vld [vmem:[#allocation5 + $0x250] sm:$0xff]
    %v761 = vld [vmem:[#allocation5 + $0x258] sm:$0xff]
    %v762 = vld [vmem:[#allocation5 + $0x260] sm:$0xff]
    %v763 = vld [vmem:[#allocation5 + $0x268] sm:$0xff]
    %v764 = vld [vmem:[#allocation5 + $0x270] sm:$0xff]
    %v765 = vld [vmem:[#allocation5 + $0x278] sm:$0xff]
    %v766 = vld [vmem:[#allocation5 + $0x280] sm:$0xff]
    %v767 = vld [vmem:[#allocation5 + $0x288] sm:$0xff]
    %v768 = vld [vmem:[#allocation5 + $0x290] sm:$0xff]
    %v769 = vld [vmem:[#allocation5 + $0x298] sm:$0xff]
    %v770 = vld [vmem:[#allocation5 + $0x2a0] sm:$0xff]
    %v771 = vld [vmem:[#allocation5 + $0x2a8] sm:$0xff]
    %v772 = vld [vmem:[#allocation5 + $0x2b0] sm:$0xff]
    %v773 = vld [vmem:[#allocation5 + $0x2b8] sm:$0xff]
    %v774 = vld [vmem:[#allocation5 + $0x2c0] sm:$0xff]
    %v775 = vld [vmem:[#allocation5 + $0x2c8] sm:$0xff]
    %v776 = vld [vmem:[#allocation5 + $0x2d0] sm:$0xff]
    %v777 = vld [vmem:[#allocation5 + $0x2d8] sm:$0xff]
    %v778 = vld [vmem:[#allocation5 + $0x2e0] sm:$0xff]
    %v779 = vld [vmem:[#allocation5 + $0x2e8] sm:$0xff]
    %v780 = vld [vmem:[#allocation5 + $0x2f0] sm:$0xff]
    %v781 = vld [vmem:[#allocation5 + $0x2f8] sm:$0xff]
    %v782 = vld [vmem:[#allocation5 + $0x300] sm:$0xff]
    %v783 = vld [vmem:[#allocation5 + $0x308] sm:$0xff]
    %v784 = vld [vmem:[#allocation5 + $0x310] sm:$0xff]
    %v785 = vld [vmem:[#allocation5 + $0x318] sm:$0xff]
    %v786 = vld [vmem:[#allocation5 + $0x320] sm:$0xff]
    %v787 = vld [vmem:[#allocation5 + $0x328] sm:$0xff]
    %v788 = vld [vmem:[#allocation5 + $0x330] sm:$0xff]
    %v789 = vld [vmem:[#allocation5 + $0x338] sm:$0xff]
    %v790 = vld [vmem:[#allocation5 + $0x340] sm:$0xff]
    %v791 = vld [vmem:[#allocation5 + $0x348] sm:$0xff]
    %v792 = vld [vmem:[#allocation5 + $0x350] sm:$0xff]
    %v793 = vld [vmem:[#allocation5 + $0x358] sm:$0xff]
    %v794 = vld [vmem:[#allocation5 + $0x360] sm:$0xff]
    %v795 = vld [vmem:[#allocation5 + $0x368] sm:$0xff]
    %v796 = vld [vmem:[#allocation5 + $0x370] sm:$0xff]
    %v797 = vld [vmem:[#allocation5 + $0x378] sm:$0xff]
    %v798 = vld [vmem:[#allocation5 + $0x380] sm:$0xff]
    %v799 = vld [vmem:[#allocation5 + $0x388] sm:$0xff]
    %v800 = vld [vmem:[#allocation5 + $0x390] sm:$0xff]
    %v801 = vld [vmem:[#allocation5 + $0x398] sm:$0xff]
    %v802 = vld [vmem:[#allocation5 + $0x3a0] sm:$0xff]
    %v803 = vld [vmem:[#allocation5 + $0x3a8] sm:$0xff]
    %v804 = vld [vmem:[#allocation5 + $0x3b0] sm:$0xff]
    %v805 = vld [vmem:[#allocation5 + $0x3b8] sm:$0xff]
    %v806 = vld [vmem:[#allocation5 + $0x3c0] sm:$0xff]
    %v807 = vld [vmem:[#allocation5 + $0x3c8] sm:$0xff]
    %v808 = vld [vmem:[#allocation5 + $0x3d0] sm:$0xff]
    %v809 = vld [vmem:[#allocation5 + $0x3d8] sm:$0xff]
    %v810 = vld [vmem:[#allocation5 + $0x3e0] sm:$0xff]
    %v811 = vld [vmem:[#allocation5 + $0x3e8] sm:$0xff]
    %v812 = vld [vmem:[#allocation5 + $0x3f0] sm:$0xff]
    %v813 = vld [vmem:[#allocation5 + $0x3f8] sm:$0xff]
    %v814 = vld [vmem:[#allocation5 + $0x400] sm:$0xff]
    %v815 = vld [vmem:[#allocation5 + $0x408] sm:$0xff]
    %v816 = vld [vmem:[#allocation5 + $0x410] sm:$0xff]
    %v817 = vld [vmem:[#allocation5 + $0x418] sm:$0xff]
    %v818 = vld [vmem:[#allocation5 + $0x420] sm:$0xff]
    %v819 = vld [vmem:[#allocation5 + $0x428] sm:$0xff]
    %v820 = vld [vmem:[#allocation5 + $0x430] sm:$0xff]
    %v821 = vld [vmem:[#allocation5 + $0x438] sm:$0xff]
    %v822 = vld [vmem:[#allocation5 + $0x440] sm:$0xff]
    %v823 = vld [vmem:[#allocation5 + $0x448] sm:$0xff]
    %v824 = vld [vmem:[#allocation5 + $0x450] sm:$0xff]
    %v825 = vld [vmem:[#allocation5 + $0x458] sm:$0xff]
    %v826 = vld [vmem:[#allocation5 + $0x460] sm:$0xff]
    %v827 = vld [vmem:[#allocation5 + $0x468] sm:$0xff]
    %v828 = vld [vmem:[#allocation5 + $0x470] sm:$0xff]
    %v829 = vld [vmem:[#allocation5 + $0x478] sm:$0xff]
    %v830 = vld [vmem:[#allocation5 + $0x480] sm:$0xff]
    %v831 = vld [vmem:[#allocation5 + $0x488] sm:$0xff]
    %v832 = vld [vmem:[#allocation5 + $0x490] sm:$0xff]
    %v833 = vld [vmem:[#allocation5 + $0x498] sm:$0xff]
    %v834 = vld [vmem:[#allocation5 + $0x4a0] sm:$0xff]
    %v835 = vld [vmem:[#allocation5 + $0x4a8] sm:$0xff]
    %v836 = vld [vmem:[#allocation5 + $0x4b0] sm:$0xff]
    %v837 = vld [vmem:[#allocation5 + $0x4b8] sm:$0xff]
    %v838 = vld [vmem:[#allocation5 + $0x4c0] sm:$0xff]
    %v839 = vld [vmem:[#allocation5 + $0x4c8] sm:$0xff]
    %v840 = vld [vmem:[#allocation5 + $0x4d0] sm:$0xff]
    %v841 = vld [vmem:[#allocation5 + $0x4d8] sm:$0xff]
    %v842 = vld [vmem:[#allocation5 + $0x4e0] sm:$0xff]
    %v843 = vld [vmem:[#allocation5 + $0x4e8] sm:$0xff]
    %v844 = vld [vmem:[#allocation5 + $0x4f0] sm:$0xff]
    %v845 = vld [vmem:[#allocation5 + $0x4f8] sm:$0xff]
    %v846 = vld [vmem:[#allocation5 + $0x500] sm:$0xff]
    %v847 = vld [vmem:[#allocation5 + $0x508] sm:$0xff]
    %v848 = vld [vmem:[#allocation5 + $0x510] sm:$0xff]
    %v849 = vld [vmem:[#allocation5 + $0x518] sm:$0xff]
    %v850 = vld [vmem:[#allocation5 + $0x520] sm:$0xff]
    %v851 = vld [vmem:[#allocation5 + $0x528] sm:$0xff]
    %v852 = vld [vmem:[#allocation5 + $0x530] sm:$0xff]
    %v853 = vld [vmem:[#allocation5 + $0x538] sm:$0xff]
    %v854 = vld [vmem:[#allocation5 + $0x540] sm:$0xff]
    %v855 = vld [vmem:[#allocation5 + $0x548] sm:$0xff]
    %v856 = vld [vmem:[#allocation5 + $0x550] sm:$0xff]
    %v857 = vld [vmem:[#allocation5 + $0x558] sm:$0xff]
    %v858 = vld [vmem:[#allocation5 + $0x560] sm:$0xff]
    %v859 = vld [vmem:[#allocation5 + $0x568] sm:$0xff]
    %v860 = vld [vmem:[#allocation5 + $0x570] sm:$0xff]
    %v861 = vld [vmem:[#allocation5 + $0x578] sm:$0xff]
    %v862 = vld [vmem:[#allocation5 + $0x580] sm:$0xff]
    %v863 = vld [vmem:[#allocation5 + $0x588] sm:$0xff]
    %v864 = vld [vmem:[#allocation5 + $0x590] sm:$0xff]
    %v865 = vld [vmem:[#allocation5 + $0x598] sm:$0xff]
    %v866 = vld [vmem:[#allocation5 + $0x5a0] sm:$0xff]
    %v867 = vld [vmem:[#allocation5 + $0x5a8] sm:$0xff]
    %v868 = vld [vmem:[#allocation5 + $0x5b0] sm:$0xff]
    %v869 = vld [vmem:[#allocation5 + $0x5b8] sm:$0xff]
    %v870 = vld [vmem:[#allocation5 + $0x5c0] sm:$0xff]
    %v871 = vld [vmem:[#allocation5 + $0x5c8] sm:$0xff]
    %v872 = vld [vmem:[#allocation5 + $0x5d0] sm:$0xff]
    %v873 = vld [vmem:[#allocation5 + $0x5d8] sm:$0xff]
    %v874 = vld [vmem:[#allocation5 + $0x5e0] sm:$0xff]
    %v875 = vld [vmem:[#allocation5 + $0x5e8] sm:$0xff]
    %v876 = vld [vmem:[#allocation5 + $0x5f0] sm:$0xff]
    %v877 = vld [vmem:[#allocation5 + $0x5f8] sm:$0xff]
    %v878 = vld [vmem:[#allocation5 + $0x600] sm:$0xff]
    %v879 = vld [vmem:[#allocation5 + $0x608] sm:$0xff]
    %v880 = vld [vmem:[#allocation5 + $0x610] sm:$0xff]
    %v881 = vld [vmem:[#allocation5 + $0x618] sm:$0xff]
    %v882 = vld [vmem:[#allocation5 + $0x620] sm:$0xff]
    %v883 = vld [vmem:[#allocation5 + $0x628] sm:$0xff]
    %v884 = vld [vmem:[#allocation5 + $0x630] sm:$0xff]
    %v885 = vld [vmem:[#allocation5 + $0x638] sm:$0xff]
    %v886 = vld [vmem:[#allocation5 + $0x640] sm:$0xff]
    %v887 = vld [vmem:[#allocation5 + $0x648] sm:$0xff]
    %v888 = vld [vmem:[#allocation5 + $0x650] sm:$0xff]
    %v889 = vld [vmem:[#allocation5 + $0x658] sm:$0xff]
    %v890 = vld [vmem:[#allocation5 + $0x660] sm:$0xff]
    %v891 = vld [vmem:[#allocation5 + $0x668] sm:$0xff]
    %v892 = vld [vmem:[#allocation5 + $0x670] sm:$0xff]
    %v893 = vld [vmem:[#allocation5 + $0x678] sm:$0xff]
    %v894 = vld [vmem:[#allocation5 + $0x680] sm:$0xff]
    %v895 = vld [vmem:[#allocation5 + $0x688] sm:$0xff]
    %v896 = vld [vmem:[#allocation5 + $0x690] sm:$0xff]
    %v897 = vld [vmem:[#allocation5 + $0x698] sm:$0xff]
    %v898 = vld [vmem:[#allocation5 + $0x6a0] sm:$0xff]
    %v899 = vld [vmem:[#allocation5 + $0x6a8] sm:$0xff]
    %v900 = vld [vmem:[#allocation5 + $0x6b0] sm:$0xff]
    %v901 = vld [vmem:[#allocation5 + $0x6b8] sm:$0xff]
    %v902 = vld [vmem:[#allocation5 + $0x6c0] sm:$0xff]
    %v903 = vld [vmem:[#allocation5 + $0x6c8] sm:$0xff]
    %v904 = vld [vmem:[#allocation5 + $0x6d0] sm:$0xff]
    %v905 = vld [vmem:[#allocation5 + $0x6d8] sm:$0xff]
    %v906 = vld [vmem:[#allocation5 + $0x6e0] sm:$0xff]
    %v907 = vld [vmem:[#allocation5 + $0x6e8] sm:$0xff]
    %v908 = vld [vmem:[#allocation5 + $0x6f0] sm:$0xff]
    %v909 = vld [vmem:[#allocation5 + $0x6f8] sm:$0xff]
    %v910 = vld [vmem:[#allocation5 + $0x700] sm:$0xff]
    %v911 = vld [vmem:[#allocation5 + $0x708] sm:$0xff]
    %v912 = vld [vmem:[#allocation5 + $0x710] sm:$0xff]
    %v913 = vld [vmem:[#allocation5 + $0x718] sm:$0xff]
    %v914 = vld [vmem:[#allocation5 + $0x720] sm:$0xff]
    %v915 = vld [vmem:[#allocation5 + $0x728] sm:$0xff]
    %v916 = vld [vmem:[#allocation5 + $0x730] sm:$0xff]
    %v917 = vld [vmem:[#allocation5 + $0x738] sm:$0xff]
    %v918 = vld [vmem:[#allocation5 + $0x740] sm:$0xff]
    %v919 = vld [vmem:[#allocation5 + $0x748] sm:$0xff]
    %v920 = vld [vmem:[#allocation5 + $0x750] sm:$0xff]
    %v921 = vld [vmem:[#allocation5 + $0x758] sm:$0xff]
    %v922 = vld [vmem:[#allocation5 + $0x760] sm:$0xff]
    %v923 = vld [vmem:[#allocation5 + $0x768] sm:$0xff]
    %v924 = vld [vmem:[#allocation5 + $0x770] sm:$0xff]
    %v925 = vld [vmem:[#allocation5 + $0x778] sm:$0xff]
    %v926 = vld [vmem:[%s5] sm:$0x1f]
    %v928 = vlaneseq
    %v929 = vshrl.u32 %v928, 7
    %v930 = vsub.s32 0, %v929
    %v931 = vrot.slane %v926, %v930
    %v932 = vlaneseq
    %v933 = vshrl.u32 %v932, 7
    %v934 = vsub.s32 1, %v933
    %v935 = vrot.slane %v926, %v934
    %v936 = vlaneseq
    %v937 = vshrl.u32 %v936, 7
    %v938 = vsub.s32 2, %v937
    %v939 = vrot.slane %v926, %v938
    %v940 = vlaneseq
    %v941 = vshrl.u32 %v940, 7
    %v942 = vsub.s32 3, %v941
    %v943 = vrot.slane %v926, %v942
    %v944 = vlaneseq
    %v945 = vshrl.u32 %v944, 7
    %v946 = vsub.s32 4, %v945
    %v947 = vrot.slane %v926, %v946
    %953 = vmatprep.subr.mxu0 %v762
    %954 = vmatpush1.msra.mxu0 %v761
    %955 = vmatprep.subr.mxu0 %v757
    %956 = vmatpush1.msra.mxu0 %v756
    %957 = vmatprep.subr.mxu0 %v752
    %958 = vmatpush1.msra.mxu0 %v751
    %959 = vmatprep.subr.mxu0 %v747
    %960 = vmatpush1.msra.mxu0 %v746
    %961 = vmatprep.subr.mxu0 %v742
    %962 = vmatpush1.msra.mxu0 %v741
    %963 = vmatprep.subr.mxu0 %v737
    %964 = vmatpush1.msra.mxu0 %v736
    %965 = vmatprep.subr.mxu0 %v732
    %966 = vmatpush1.msra.mxu0 %v731
    %967 = vmatprep.subr.mxu0 %v727
    %968 = vmatpush1.msra.mxu0 %v726
    %969 = vmatprep.subr.mxu0 %v722
    %970 = vmatpush1.msra.mxu0 %v721
    %971 = vmatprep.subr.mxu0 %v717
    %972 = vmatpush1.msra.mxu0 %v716
    %973 = vmatprep.subr.mxu0 %v712
    %974 = vmatpush1.msra.mxu0 %v711
    %975 = vmatprep.subr.mxu0 %v707
    %976 = vmatpush1.msra.mxu0 %v706
    %977 = vmatprep.subr.mxu0 %v702
    %978 = vmatpush1.msra.mxu0 %v701
    %979 = vmatprep.subr.mxu0 %v697
    %980 = vmatpush1.msra.mxu0 %v696
    %981 = vmatprep.subr.mxu0 %v692
    %982 = vmatpush1.msra.mxu0 %v691
    %983 = vmatprep.subr.mxu0 %v687
    %984 = vmatpush1.msra.mxu0 %v686
    %985 = vmatprep.subr.mxu0 %v842
    %986 = vmatpush2.msra.mxu0 %v841
    %987 = vmatprep.subr.mxu0 %v837
    %988 = vmatpush2.msra.mxu0 %v836
    %989 = vmatprep.subr.mxu0 %v832
    %990 = vmatpush2.msra.mxu0 %v831
    %991 = vmatprep.subr.mxu0 %v827
    %992 = vmatpush2.msra.mxu0 %v826
    %993 = vmatprep.subr.mxu0 %v822
    %994 = vmatpush2.msra.mxu0 %v821
    %995 = vmatprep.subr.mxu0 %v817
    %996 = vmatpush2.msra.mxu0 %v816
    %997 = vmatprep.subr.mxu0 %v812
    %998 = vmatpush2.msra.mxu0 %v811
    %999 = vmatprep.subr.mxu0 %v807
    %1000 = vmatpush2.msra.mxu0 %v806
    %1001 = vmatprep.subr.mxu0 %v802
    %1002 = vmatpush2.msra.mxu0 %v801
    %1003 = vmatprep.subr.mxu0 %v797
    %1004 = vmatpush2.msra.mxu0 %v796
    %1005 = vmatprep.subr.mxu0 %v792
    %1006 = vmatpush2.msra.mxu0 %v791
    %1007 = vmatprep.subr.mxu0 %v787
    %1008 = vmatpush2.msra.mxu0 %v786
    %1009 = vmatprep.subr.mxu0 %v782
    %1010 = vmatpush2.msra.mxu0 %v781
    %1011 = vmatprep.subr.mxu0 %v777
    %1012 = vmatpush2.msra.mxu0 %v776
    %1013 = vmatprep.subr.mxu0 %v772
    %1014 = vmatpush2.msra.mxu0 %v771
    %1015 = vmatprep.subr.mxu0 %v767
    %1016 = vmatpush2.msra.mxu0 %v766
    %1017 = vmatprep.mubr.f32.mxu0 %v639
    %1018 = vmatmul.mubr.f32.gmra.mxu0 %v638
    %v1019 = vpop.f32.mrf.mxu0
    %v1020 = vadd.f32 %v931, %v1019
    %v1021 = vpop.f32.mrf.mxu0
    %v1022 = vadd.f32 %v935, %v1021
    %1023 = vmatprep.mubr.f32.mxu0 %v642
    %1024 = vmatmul.mubr.f32.gmra.mxu0 %v641
    %v1025 = vpop.f32.mrf.mxu0
    %v1026 = vadd.f32 %v931, %v1025
    %v1027 = vpop.f32.mrf.mxu0
    %v1028 = vadd.f32 %v935, %v1027
    %1029 = vmatprep.mubr.f32.mxu0 %v645
    %1030 = vmatmul.mubr.f32.gmra.mxu0 %v644
    %v1031 = vpop.f32.mrf.mxu0
    %v1032 = vadd.f32 %v931, %v1031
    %v1033 = vpop.f32.mrf.mxu0
    %v1034 = vadd.f32 %v935, %v1033
    %1035 = vmatprep.mubr.f32.mxu0 %v648
    %1036 = vmatmul.mubr.f32.gmra.mxu0 %v647
    %v1037 = vpop.f32.mrf.mxu0
    %v1038 = vadd.f32 %v931, %v1037
    %v1039 = vpop.f32.mrf.mxu0
    %v1040 = vadd.f32 %v935, %v1039
    %1041 = vmatprep.mubr.f32.mxu0 %v651
    %1042 = vmatmul.mubr.f32.gmra.mxu0 %v650
    %v1043 = vpop.f32.mrf.mxu0
    %v1044 = vadd.f32 %v931, %v1043
    %v1045 = vpop.f32.mrf.mxu0
    %v1046 = vadd.f32 %v935, %v1045
    %1047 = vmatprep.mubr.f32.mxu0 %v654
    %1048 = vmatmul.mubr.f32.gmra.mxu0 %v653
    %v1049 = vpop.f32.mrf.mxu0
    %v1050 = vadd.f32 %v931, %v1049
    %v1051 = vpop.f32.mrf.mxu0
    %v1052 = vadd.f32 %v935, %v1051
    %1053 = vmatprep.mubr.f32.mxu0 %v657
    %1054 = vmatmul.mubr.f32.gmra.mxu0 %v656
    %v1055 = vpop.f32.mrf.mxu0
    %v1056 = vadd.f32 %v931, %v1055
    %v1057 = vpop.f32.mrf.mxu0
    %v1058 = vadd.f32 %v935, %v1057
    %1059 = vmatprep.mubr.f32.mxu0 %v660
    %1060 = vmatmul.mubr.f32.gmra.mxu0 %v659
    %v1061 = vpop.f32.mrf.mxu0
    %v1062 = vadd.f32 %v931, %v1061
    %v1063 = vpop.f32.mrf.mxu0
    %v1064 = vadd.f32 %v935, %v1063
    %1065 = vmatprep.mubr.f32.mxu0 %v663
    %1066 = vmatmul.mubr.f32.gmra.mxu0 %v662
    %v1067 = vpop.f32.mrf.mxu0
    %v1068 = vadd.f32 %v931, %v1067
    %v1069 = vpop.f32.mrf.mxu0
    %v1070 = vadd.f32 %v935, %v1069
    %1071 = vmatprep.mubr.f32.mxu0 %v666
    %1072 = vmatmul.mubr.f32.gmra.mxu0 %v665
    %v1073 = vpop.f32.mrf.mxu0
    %v1074 = vadd.f32 %v931, %v1073
    %v1075 = vpop.f32.mrf.mxu0
    %v1076 = vadd.f32 %v935, %v1075
    %1077 = vmatprep.mubr.f32.mxu0 %v669
    %1078 = vmatmul.mubr.f32.gmra.mxu0 %v668
    %v1079 = vpop.f32.mrf.mxu0
    %v1080 = vadd.f32 %v931, %v1079
    %v1081 = vpop.f32.mrf.mxu0
    %v1082 = vadd.f32 %v935, %v1081
    %1083 = vmatprep.mubr.f32.mxu0 %v672
    %1084 = vmatmul.mubr.f32.gmra.mxu0 %v671
    %v1085 = vpop.f32.mrf.mxu0
    %v1086 = vadd.f32 %v931, %v1085
    %v1087 = vpop.f32.mrf.mxu0
    %v1088 = vadd.f32 %v935, %v1087
    %1089 = vmatprep.mubr.f32.mxu0 %v675
    %1090 = vmatmul.mubr.f32.gmra.mxu0 %v674
    %v1091 = vpop.f32.mrf.mxu0
    %v1092 = vadd.f32 %v931, %v1091
    %v1093 = vpop.f32.mrf.mxu0
    %v1094 = vadd.f32 %v935, %v1093
    %1095 = vmatprep.mubr.f32.mxu0 %v678
    %1096 = vmatmul.mubr.f32.gmra.mxu0 %v677
    %v1097 = vpop.f32.mrf.mxu0
    %v1098 = vadd.f32 %v931, %v1097
    %v1099 = vpop.f32.mrf.mxu0
    %v1100 = vadd.f32 %v935, %v1099
    %1101 = vmatprep.mubr.f32.mxu0 %v681
    %1102 = vmatmul.mubr.f32.gmra.mxu0 %v680
    %v1103 = vpop.f32.mrf.mxu0
    %v1104 = vadd.f32 %v931, %v1103
    %v1105 = vpop.f32.mrf.mxu0
    %v1106 = vadd.f32 %v935, %v1105
    %1107 = vmatprep.mubr.f32.mxu0 %v684
    %1108 = vmatmul.mubr.f32.gmra.mxu0 %v683
    %v1109 = vpop.f32.mrf.mxu0
    %v1110 = vadd.f32 %v931, %v1109
    %v1111 = vpop.f32.mrf.mxu0
    %v1112 = vadd.f32 %v935, %v1111
    %1113 = vdwg.mxu0
    %1114 = vmatprep.subr.mxu0 %v922
    %1115 = vmatpush1.msra.mxu0 %v921
    %1116 = vmatprep.subr.mxu0 %v917
    %1117 = vmatpush1.msra.mxu0 %v916
    %1118 = vmatprep.subr.mxu0 %v912
    %1119 = vmatpush1.msra.mxu0 %v911
    %1120 = vmatprep.subr.mxu0 %v907
    %1121 = vmatpush1.msra.mxu0 %v906
    %1122 = vmatprep.subr.mxu0 %v902
    %1123 = vmatpush1.msra.mxu0 %v901
    %1124 = vmatprep.subr.mxu0 %v897
    %1125 = vmatpush1.msra.mxu0 %v896
    %1126 = vmatprep.subr.mxu0 %v892
    %1127 = vmatpush1.msra.mxu0 %v891
    %1128 = vmatprep.subr.mxu0 %v887
    %1129 = vmatpush1.msra.mxu0 %v886
    %1130 = vmatprep.subr.mxu0 %v882
    %1131 = vmatpush1.msra.mxu0 %v881
    %1132 = vmatprep.subr.mxu0 %v877
    %1133 = vmatpush1.msra.mxu0 %v876
    %1134 = vmatprep.subr.mxu0 %v872
    %1135 = vmatpush1.msra.mxu0 %v871
    %1136 = vmatprep.subr.mxu0 %v867
    %1137 = vmatpush1.msra.mxu0 %v866
    %1138 = vmatprep.subr.mxu0 %v862
    %1139 = vmatpush1.msra.mxu0 %v861
    %1140 = vmatprep.subr.mxu0 %v857
    %1141 = vmatpush1.msra.mxu0 %v856
    %1142 = vmatprep.subr.mxu0 %v852
    %1143 = vmatpush1.msra.mxu0 %v851
    %1144 = vmatprep.subr.mxu0 %v847
    %1145 = vmatpush1.msra.mxu0 %v846
    %1146 = vmatprep.subr.mxu0 0.0
    %1147 = vmatpush2.msra.mxu0 0.0
    %1148 = vmatprep.subr.mxu0 0.0
    %1149 = vmatpush2.msra.mxu0 0.0
    %1150 = vmatprep.subr.mxu0 0.0
    %1151 = vmatpush2.msra.mxu0 0.0
    %1152 = vmatprep.subr.mxu0 0.0
    %1153 = vmatpush2.msra.mxu0 0.0
    %1154 = vmatprep.subr.mxu0 0.0
    %1155 = vmatpush2.msra.mxu0 0.0
    %1156 = vmatprep.subr.mxu0 0.0
    %1157 = vmatpush2.msra.mxu0 0.0
    %1158 = vmatprep.subr.mxu0 0.0
    %1159 = vmatpush2.msra.mxu0 0.0
    %1160 = vmatprep.subr.mxu0 0.0
    %1161 = vmatpush2.msra.mxu0 0.0
    %1162 = vmatprep.subr.mxu0 0.0
    %1163 = vmatpush2.msra.mxu0 0.0
    %1164 = vmatprep.subr.mxu0 0.0
    %1165 = vmatpush2.msra.mxu0 0.0
    %1166 = vmatprep.subr.mxu0 0.0
    %1167 = vmatpush2.msra.mxu0 0.0
    %1168 = vmatprep.subr.mxu0 0.0
    %1169 = vmatpush2.msra.mxu0 0.0
    %1170 = vmatprep.subr.mxu0 0.0
    %1171 = vmatpush2.msra.mxu0 0.0
    %1172 = vmatprep.subr.mxu0 0.0
    %1173 = vmatpush2.msra.mxu0 0.0
    %1174 = vmatprep.subr.mxu0 0.0
    %1175 = vmatpush2.msra.mxu0 0.0
    %1176 = vmatprep.subr.mxu0 0.0
    %1177 = vmatpush2.msra.mxu0 0.0
    %1178 = vmatprep.mubr.f32.mxu0 0.0
    %1179 = vmatmul.mubr.f32.gmra.mxu0 %v640
    %v1180 = vpop.f32.mrf.mxu0
    %v1181 = vadd.f32 %v1020, %v1180
    %v1182 = vpop.f32.mrf.mxu0
    %v1183 = vadd.f32 %v1022, %v1182
    %1184 = vmatprep.mubr.f32.mxu0 0.0
    %1185 = vmatmul.mubr.f32.gmra.mxu0 %v643
    %v1186 = vpop.f32.mrf.mxu0
    %v1187 = vadd.f32 %v1026, %v1186
    %v1188 = vpop.f32.mrf.mxu0
    %v1189 = vadd.f32 %v1028, %v1188
    %1190 = vmatprep.mubr.f32.mxu0 0.0
    %1191 = vmatmul.mubr.f32.gmra.mxu0 %v646
    %v1192 = vpop.f32.mrf.mxu0
    %v1193 = vadd.f32 %v1032, %v1192
    %v1194 = vpop.f32.mrf.mxu0
    %v1195 = vadd.f32 %v1034, %v1194
    %1196 = vmatprep.mubr.f32.mxu0 0.0
    %1197 = vmatmul.mubr.f32.gmra.mxu0 %v649
    %v1198 = vpop.f32.mrf.mxu0
    %v1199 = vadd.f32 %v1038, %v1198
    %v1200 = vpop.f32.mrf.mxu0
    %v1201 = vadd.f32 %v1040, %v1200
    %1202 = vmatprep.mubr.f32.mxu0 0.0
    %1203 = vmatmul.mubr.f32.gmra.mxu0 %v652
    %v1204 = vpop.f32.mrf.mxu0
    %v1205 = vadd.f32 %v1044, %v1204
    %v1206 = vpop.f32.mrf.mxu0
    %v1207 = vadd.f32 %v1046, %v1206
    %1208 = vmatprep.mubr.f32.mxu0 0.0
    %1209 = vmatmul.mubr.f32.gmra.mxu0 %v655
    %v1210 = vpop.f32.mrf.mxu0
    %v1211 = vadd.f32 %v1050, %v1210
    %v1212 = vpop.f32.mrf.mxu0
    %v1213 = vadd.f32 %v1052, %v1212
    %1214 = vmatprep.mubr.f32.mxu0 0.0
    %1215 = vmatmul.mubr.f32.gmra.mxu0 %v658
    %v1216 = vpop.f32.mrf.mxu0
    %v1217 = vadd.f32 %v1056, %v1216
    %v1218 = vpop.f32.mrf.mxu0
    %v1219 = vadd.f32 %v1058, %v1218
    %1220 = vmatprep.mubr.f32.mxu0 0.0
    %1221 = vmatmul.mubr.f32.gmra.mxu0 %v661
    %v1222 = vpop.f32.mrf.mxu0
    %v1223 = vadd.f32 %v1062, %v1222
    %v1224 = vpop.f32.mrf.mxu0
    %v1225 = vadd.f32 %v1064, %v1224
    %1226 = vmatprep.mubr.f32.mxu0 0.0
    %1227 = vmatmul.mubr.f32.gmra.mxu0 %v664
    %v1228 = vpop.f32.mrf.mxu0
    %v1229 = vadd.f32 %v1068, %v1228
    %v1230 = vpop.f32.mrf.mxu0
    %v1231 = vadd.f32 %v1070, %v1230
    %1232 = vmatprep.mubr.f32.mxu0 0.0
    %1233 = vmatmul.mubr.f32.gmra.mxu0 %v667
    %v1234 = vpop.f32.mrf.mxu0
    %v1235 = vadd.f32 %v1074, %v1234
    %v1236 = vpop.f32.mrf.mxu0
    %v1237 = vadd.f32 %v1076, %v1236
    %1238 = vmatprep.mubr.f32.mxu0 0.0
    %1239 = vmatmul.mubr.f32.gmra.mxu0 %v670
    %v1240 = vpop.f32.mrf.mxu0
    %v1241 = vadd.f32 %v1080, %v1240
    %v1242 = vpop.f32.mrf.mxu0
    %v1243 = vadd.f32 %v1082, %v1242
    %1244 = vmatprep.mubr.f32.mxu0 0.0
    %1245 = vmatmul.mubr.f32.gmra.mxu0 %v673
    %v1246 = vpop.f32.mrf.mxu0
    %v1247 = vadd.f32 %v1086, %v1246
    %v1248 = vpop.f32.mrf.mxu0
    %v1249 = vadd.f32 %v1088, %v1248
    %1250 = vmatprep.mubr.f32.mxu0 0.0
    %1251 = vmatmul.mubr.f32.gmra.mxu0 %v676
    %v1252 = vpop.f32.mrf.mxu0
    %v1253 = vadd.f32 %v1092, %v1252
    %v1254 = vpop.f32.mrf.mxu0
    %v1255 = vadd.f32 %v1094, %v1254
    %1256 = vmatprep.mubr.f32.mxu0 0.0
    %1257 = vmatmul.mubr.f32.gmra.mxu0 %v679
    %v1258 = vpop.f32.mrf.mxu0
    %v1259 = vadd.f32 %v1098, %v1258
    %v1260 = vpop.f32.mrf.mxu0
    %v1261 = vadd.f32 %v1100, %v1260
    %1262 = vmatprep.mubr.f32.mxu0 0.0
    %1263 = vmatmul.mubr.f32.gmra.mxu0 %v682
    %v1264 = vpop.f32.mrf.mxu0
    %v1265 = vadd.f32 %v1104, %v1264
    %v1266 = vpop.f32.mrf.mxu0
    %v1267 = vadd.f32 %v1106, %v1266
    %1268 = vmatprep.mubr.f32.mxu0 0.0
    %1269 = vmatmul.mubr.f32.gmra.mxu0 %v685
    %v1270 = vpop.f32.mrf.mxu0
    %v1271 = vadd.f32 %v1110, %v1270
    %v1272 = vpop.f32.mrf.mxu0
    %v1273 = vadd.f32 %v1112, %v1272
    %1274 = vdwg.mxu0
    %1275 = vmatprep.subr.mxu0 %v764
    %1276 = vmatpush1.msra.mxu0 %v763
    %1277 = vmatprep.subr.mxu0 %v759
    %1278 = vmatpush1.msra.mxu0 %v758
    %1279 = vmatprep.subr.mxu0 %v754
    %1280 = vmatpush1.msra.mxu0 %v753
    %1281 = vmatprep.subr.mxu0 %v749
    %1282 = vmatpush1.msra.mxu0 %v748
    %1283 = vmatprep.subr.mxu0 %v744
    %1284 = vmatpush1.msra.mxu0 %v743
    %1285 = vmatprep.subr.mxu0 %v739
    %1286 = vmatpush1.msra.mxu0 %v738
    %1287 = vmatprep.subr.mxu0 %v734
    %1288 = vmatpush1.msra.mxu0 %v733
    %1289 = vmatprep.subr.mxu0 %v729
    %1290 = vmatpush1.msra.mxu0 %v728
    %1291 = vmatprep.subr.mxu0 %v724
    %1292 = vmatpush1.msra.mxu0 %v723
    %1293 = vmatprep.subr.mxu0 %v719
    %1294 = vmatpush1.msra.mxu0 %v718
    %1295 = vmatprep.subr.mxu0 %v714
    %1296 = vmatpush1.msra.mxu0 %v713
    %1297 = vmatprep.subr.mxu0 %v709
    %1298 = vmatpush1.msra.mxu0 %v708
    %1299 = vmatprep.subr.mxu0 %v704
    %1300 = vmatpush1.msra.mxu0 %v703
    %1301 = vmatprep.subr.mxu0 %v699
    %1302 = vmatpush1.msra.mxu0 %v698
    %1303 = vmatprep.subr.mxu0 %v694
    %1304 = vmatpush1.msra.mxu0 %v693
    %1305 = vmatprep.subr.mxu0 %v689
    %1306 = vmatpush1.msra.mxu0 %v688
    %1307 = vmatprep.subr.mxu0 %v844
    %1308 = vmatpush2.msra.mxu0 %v843
    %1309 = vmatprep.subr.mxu0 %v839
    %1310 = vmatpush2.msra.mxu0 %v838
    %1311 = vmatprep.subr.mxu0 %v834
    %1312 = vmatpush2.msra.mxu0 %v833
    %1313 = vmatprep.subr.mxu0 %v829
    %1314 = vmatpush2.msra.mxu0 %v828
    %1315 = vmatprep.subr.mxu0 %v824
    %1316 = vmatpush2.msra.mxu0 %v823
    %1317 = vmatprep.subr.mxu0 %v819
    %1318 = vmatpush2.msra.mxu0 %v818
    %1319 = vmatprep.subr.mxu0 %v814
    %1320 = vmatpush2.msra.mxu0 %v813
    %1321 = vmatprep.subr.mxu0 %v809
    %1322 = vmatpush2.msra.mxu0 %v808
    %1323 = vmatprep.subr.mxu0 %v804
    %1324 = vmatpush2.msra.mxu0 %v803
    %1325 = vmatprep.subr.mxu0 %v799
    %1326 = vmatpush2.msra.mxu0 %v798
    %1327 = vmatprep.subr.mxu0 %v794
    %1328 = vmatpush2.msra.mxu0 %v793
    %1329 = vmatprep.subr.mxu0 %v789
    %1330 = vmatpush2.msra.mxu0 %v788
    %1331 = vmatprep.subr.mxu0 %v784
    %1332 = vmatpush2.msra.mxu0 %v783
    %1333 = vmatprep.subr.mxu0 %v779
    %1334 = vmatpush2.msra.mxu0 %v778
    %1335 = vmatprep.subr.mxu0 %v774
    %1336 = vmatpush2.msra.mxu0 %v773
    %1337 = vmatprep.subr.mxu0 %v769
    %1338 = vmatpush2.msra.mxu0 %v768
    %1339 = vmatprep.mubr.f32.mxu0 %v639
    %1340 = vmatmul.mubr.f32.gmra.mxu0 %v638
    %v1341 = vpop.f32.mrf.mxu0
    %v1342 = vadd.f32 %v939, %v1341
    %v1343 = vpop.f32.mrf.mxu0
    %v1344 = vadd.f32 %v943, %v1343
    %1345 = vmatprep.mubr.f32.mxu0 %v642
    %1346 = vmatmul.mubr.f32.gmra.mxu0 %v641
    %v1347 = vpop.f32.mrf.mxu0
    %v1348 = vadd.f32 %v939, %v1347
    %v1349 = vpop.f32.mrf.mxu0
    %v1350 = vadd.f32 %v943, %v1349
    %1351 = vmatprep.mubr.f32.mxu0 %v645
    %1352 = vmatmul.mubr.f32.gmra.mxu0 %v644
    %v1353 = vpop.f32.mrf.mxu0
    %v1354 = vadd.f32 %v939, %v1353
    %v1355 = vpop.f32.mrf.mxu0
    %v1356 = vadd.f32 %v943, %v1355
    %1357 = vmatprep.mubr.f32.mxu0 %v648
    %1358 = vmatmul.mubr.f32.gmra.mxu0 %v647
    %v1359 = vpop.f32.mrf.mxu0
    %v1360 = vadd.f32 %v939, %v1359
    %v1361 = vpop.f32.mrf.mxu0
    %v1362 = vadd.f32 %v943, %v1361
    %1363 = vmatprep.mubr.f32.mxu0 %v651
    %1364 = vmatmul.mubr.f32.gmra.mxu0 %v650
    %v1365 = vpop.f32.mrf.mxu0
    %v1366 = vadd.f32 %v939, %v1365
    %v1367 = vpop.f32.mrf.mxu0
    %v1368 = vadd.f32 %v943, %v1367
    %1369 = vmatprep.mubr.f32.mxu0 %v654
    %1370 = vmatmul.mubr.f32.gmra.mxu0 %v653
    %v1371 = vpop.f32.mrf.mxu0
    %v1372 = vadd.f32 %v939, %v1371
    %v1373 = vpop.f32.mrf.mxu0
    %v1374 = vadd.f32 %v943, %v1373
    %1375 = vmatprep.mubr.f32.mxu0 %v657
    %1376 = vmatmul.mubr.f32.gmra.mxu0 %v656
    %v1377 = vpop.f32.mrf.mxu0
    %v1378 = vadd.f32 %v939, %v1377
    %v1379 = vpop.f32.mrf.mxu0
    %v1380 = vadd.f32 %v943, %v1379
    %1381 = vmatprep.mubr.f32.mxu0 %v660
    %1382 = vmatmul.mubr.f32.gmra.mxu0 %v659
    %v1383 = vpop.f32.mrf.mxu0
    %v1384 = vadd.f32 %v939, %v1383
    %v1385 = vpop.f32.mrf.mxu0
    %v1386 = vadd.f32 %v943, %v1385
    %1387 = vmatprep.mubr.f32.mxu0 %v663
    %1388 = vmatmul.mubr.f32.gmra.mxu0 %v662
    %v1389 = vpop.f32.mrf.mxu0
    %v1390 = vadd.f32 %v939, %v1389
    %v1391 = vpop.f32.mrf.mxu0
    %v1392 = vadd.f32 %v943, %v1391
    %1393 = vmatprep.mubr.f32.mxu0 %v666
    %1394 = vmatmul.mubr.f32.gmra.mxu0 %v665
    %v1395 = vpop.f32.mrf.mxu0
    %v1396 = vadd.f32 %v939, %v1395
    %v1397 = vpop.f32.mrf.mxu0
    %v1398 = vadd.f32 %v943, %v1397
    %1399 = vmatprep.mubr.f32.mxu0 %v669
    %1400 = vmatmul.mubr.f32.gmra.mxu0 %v668
    %v1401 = vpop.f32.mrf.mxu0
    %v1402 = vadd.f32 %v939, %v1401
    %v1403 = vpop.f32.mrf.mxu0
    %v1404 = vadd.f32 %v943, %v1403
    %1405 = vmatprep.mubr.f32.mxu0 %v672
    %1406 = vmatmul.mubr.f32.gmra.mxu0 %v671
    %v1407 = vpop.f32.mrf.mxu0
    %v1408 = vadd.f32 %v939, %v1407
    %v1409 = vpop.f32.mrf.mxu0
    %v1410 = vadd.f32 %v943, %v1409
    %1411 = vmatprep.mubr.f32.mxu0 %v675
    %1412 = vmatmul.mubr.f32.gmra.mxu0 %v674
    %v1413 = vpop.f32.mrf.mxu0
    %v1414 = vadd.f32 %v939, %v1413
    %v1415 = vpop.f32.mrf.mxu0
    %v1416 = vadd.f32 %v943, %v1415
    %1417 = vmatprep.mubr.f32.mxu0 %v678
    %1418 = vmatmul.mubr.f32.gmra.mxu0 %v677
    %v1419 = vpop.f32.mrf.mxu0
    %v1420 = vadd.f32 %v939, %v1419
    %v1421 = vpop.f32.mrf.mxu0
    %v1422 = vadd.f32 %v943, %v1421
    %1423 = vmatprep.mubr.f32.mxu0 %v681
    %1424 = vmatmul.mubr.f32.gmra.mxu0 %v680
    %v1425 = vpop.f32.mrf.mxu0
    %v1426 = vadd.f32 %v939, %v1425
    %v1427 = vpop.f32.mrf.mxu0
    %v1428 = vadd.f32 %v943, %v1427
    %1429 = vmatprep.mubr.f32.mxu0 %v684
    %1430 = vmatmul.mubr.f32.gmra.mxu0 %v683
    %v1431 = vpop.f32.mrf.mxu0
    %v1432 = vadd.f32 %v939, %v1431
    %v1433 = vpop.f32.mrf.mxu0
    %v1434 = vadd.f32 %v943, %v1433
    %1435 = vdwg.mxu0
    %1436 = vmatprep.subr.mxu0 %v924
    %1437 = vmatpush1.msra.mxu0 %v923
    %1438 = vmatprep.subr.mxu0 %v919
    %1439 = vmatpush1.msra.mxu0 %v918
    %1440 = vmatprep.subr.mxu0 %v914
    %1441 = vmatpush1.msra.mxu0 %v913
    %1442 = vmatprep.subr.mxu0 %v909
    %1443 = vmatpush1.msra.mxu0 %v908
    %1444 = vmatprep.subr.mxu0 %v904
    %1445 = vmatpush1.msra.mxu0 %v903
    %1446 = vmatprep.subr.mxu0 %v899
    %1447 = vmatpush1.msra.mxu0 %v898
    %1448 = vmatprep.subr.mxu0 %v894
    %1449 = vmatpush1.msra.mxu0 %v893
    %1450 = vmatprep.subr.mxu0 %v889
    %1451 = vmatpush1.msra.mxu0 %v888
    %1452 = vmatprep.subr.mxu0 %v884
    %1453 = vmatpush1.msra.mxu0 %v883
    %1454 = vmatprep.subr.mxu0 %v879
    %1455 = vmatpush1.msra.mxu0 %v878
    %1456 = vmatprep.subr.mxu0 %v874
    %1457 = vmatpush1.msra.mxu0 %v873
    %1458 = vmatprep.subr.mxu0 %v869
    %1459 = vmatpush1.msra.mxu0 %v868
    %1460 = vmatprep.subr.mxu0 %v864
    %1461 = vmatpush1.msra.mxu0 %v863
    %1462 = vmatprep.subr.mxu0 %v859
    %1463 = vmatpush1.msra.mxu0 %v858
    %1464 = vmatprep.subr.mxu0 %v854
    %1465 = vmatpush1.msra.mxu0 %v853
    %1466 = vmatprep.subr.mxu0 %v849
    %1467 = vmatpush1.msra.mxu0 %v848
    %1468 = vmatprep.subr.mxu0 0.0
    %1469 = vmatpush2.msra.mxu0 0.0
    %1470 = vmatprep.subr.mxu0 0.0
    %1471 = vmatpush2.msra.mxu0 0.0
    %1472 = vmatprep.subr.mxu0 0.0
    %1473 = vmatpush2.msra.mxu0 0.0
    %1474 = vmatprep.subr.mxu0 0.0
    %1475 = vmatpush2.msra.mxu0 0.0
    %1476 = vmatprep.subr.mxu0 0.0
    %1477 = vmatpush2.msra.mxu0 0.0
    %1478 = vmatprep.subr.mxu0 0.0
    %1479 = vmatpush2.msra.mxu0 0.0
    %1480 = vmatprep.subr.mxu0 0.0
    %1481 = vmatpush2.msra.mxu0 0.0
    %1482 = vmatprep.subr.mxu0 0.0
    %1483 = vmatpush2.msra.mxu0 0.0
    %1484 = vmatprep.subr.mxu0 0.0
    %1485 = vmatpush2.msra.mxu0 0.0
    %1486 = vmatprep.subr.mxu0 0.0
    %1487 = vmatpush2.msra.mxu0 0.0
    %1488 = vmatprep.subr.mxu0 0.0
    %1489 = vmatpush2.msra.mxu0 0.0
    %1490 = vmatprep.subr.mxu0 0.0
    %1491 = vmatpush2.msra.mxu0 0.0
    %1492 = vmatprep.subr.mxu0 0.0
    %1493 = vmatpush2.msra.mxu0 0.0
    %1494 = vmatprep.subr.mxu0 0.0
    %1495 = vmatpush2.msra.mxu0 0.0
    %1496 = vmatprep.subr.mxu0 0.0
    %1497 = vmatpush2.msra.mxu0 0.0
    %1498 = vmatprep.subr.mxu0 0.0
    %1499 = vmatpush2.msra.mxu0 0.0
    %1500 = vmatprep.mubr.f32.mxu0 0.0
    %1501 = vmatmul.mubr.f32.gmra.mxu0 %v640
    %v1502 = vpop.f32.mrf.mxu0
    %v1503 = vadd.f32 %v1342, %v1502
    %v1504 = vpop.f32.mrf.mxu0
    %v1505 = vadd.f32 %v1344, %v1504
    %1506 = vmatprep.mubr.f32.mxu0 0.0
    %1507 = vmatmul.mubr.f32.gmra.mxu0 %v643
    %v1508 = vpop.f32.mrf.mxu0
    %v1509 = vadd.f32 %v1348, %v1508
    %v1510 = vpop.f32.mrf.mxu0
    %v1511 = vadd.f32 %v1350, %v1510
    %1512 = vmatprep.mubr.f32.mxu0 0.0
    %1513 = vmatmul.mubr.f32.gmra.mxu0 %v646
    %v1514 = vpop.f32.mrf.mxu0
    %v1515 = vadd.f32 %v1354, %v1514
    %v1516 = vpop.f32.mrf.mxu0
    %v1517 = vadd.f32 %v1356, %v1516
    %1518 = vmatprep.mubr.f32.mxu0 0.0
    %1519 = vmatmul.mubr.f32.gmra.mxu0 %v649
    %v1520 = vpop.f32.mrf.mxu0
    %v1521 = vadd.f32 %v1360, %v1520
    %v1522 = vpop.f32.mrf.mxu0
    %v1523 = vadd.f32 %v1362, %v1522
    %1524 = vmatprep.mubr.f32.mxu0 0.0
    %1525 = vmatmul.mubr.f32.gmra.mxu0 %v652
    %v1526 = vpop.f32.mrf.mxu0
    %v1527 = vadd.f32 %v1366, %v1526
    %v1528 = vpop.f32.mrf.mxu0
    %v1529 = vadd.f32 %v1368, %v1528
    %1530 = vmatprep.mubr.f32.mxu0 0.0
    %1531 = vmatmul.mubr.f32.gmra.mxu0 %v655
    %v1532 = vpop.f32.mrf.mxu0
    %v1533 = vadd.f32 %v1372, %v1532
    %v1534 = vpop.f32.mrf.mxu0
    %v1535 = vadd.f32 %v1374, %v1534
    %1536 = vmatprep.mubr.f32.mxu0 0.0
    %1537 = vmatmul.mubr.f32.gmra.mxu0 %v658
    %v1538 = vpop.f32.mrf.mxu0
    %v1539 = vadd.f32 %v1378, %v1538
    %v1540 = vpop.f32.mrf.mxu0
    %v1541 = vadd.f32 %v1380, %v1540
    %1542 = vmatprep.mubr.f32.mxu0 0.0
    %1543 = vmatmul.mubr.f32.gmra.mxu0 %v661
    %v1544 = vpop.f32.mrf.mxu0
    %v1545 = vadd.f32 %v1384, %v1544
    %v1546 = vpop.f32.mrf.mxu0
    %v1547 = vadd.f32 %v1386, %v1546
    %1548 = vmatprep.mubr.f32.mxu0 0.0
    %1549 = vmatmul.mubr.f32.gmra.mxu0 %v664
    %v1550 = vpop.f32.mrf.mxu0
    %v1551 = vadd.f32 %v1390, %v1550
    %v1552 = vpop.f32.mrf.mxu0
    %v1553 = vadd.f32 %v1392, %v1552
    %1554 = vmatprep.mubr.f32.mxu0 0.0
    %1555 = vmatmul.mubr.f32.gmra.mxu0 %v667
    %v1556 = vpop.f32.mrf.mxu0
    %v1557 = vadd.f32 %v1396, %v1556
    %v1558 = vpop.f32.mrf.mxu0
    %v1559 = vadd.f32 %v1398, %v1558
    %1560 = vmatprep.mubr.f32.mxu0 0.0
    %1561 = vmatmul.mubr.f32.gmra.mxu0 %v670
    %v1562 = vpop.f32.mrf.mxu0
    %v1563 = vadd.f32 %v1402, %v1562
    %v1564 = vpop.f32.mrf.mxu0
    %v1565 = vadd.f32 %v1404, %v1564
    %1566 = vmatprep.mubr.f32.mxu0 0.0
    %1567 = vmatmul.mubr.f32.gmra.mxu0 %v673
    %v1568 = vpop.f32.mrf.mxu0
    %v1569 = vadd.f32 %v1408, %v1568
    %v1570 = vpop.f32.mrf.mxu0
    %v1571 = vadd.f32 %v1410, %v1570
    %1572 = vmatprep.mubr.f32.mxu0 0.0
    %1573 = vmatmul.mubr.f32.gmra.mxu0 %v676
    %v1574 = vpop.f32.mrf.mxu0
    %v1575 = vadd.f32 %v1414, %v1574
    %v1576 = vpop.f32.mrf.mxu0
    %v1577 = vadd.f32 %v1416, %v1576
    %1578 = vmatprep.mubr.f32.mxu0 0.0
    %1579 = vmatmul.mubr.f32.gmra.mxu0 %v679
    %v1580 = vpop.f32.mrf.mxu0
    %v1581 = vadd.f32 %v1420, %v1580
    %v1582 = vpop.f32.mrf.mxu0
    %v1583 = vadd.f32 %v1422, %v1582
    %1584 = vmatprep.mubr.f32.mxu0 0.0
    %1585 = vmatmul.mubr.f32.gmra.mxu0 %v682
    %v1586 = vpop.f32.mrf.mxu0
    %v1587 = vadd.f32 %v1426, %v1586
    %v1588 = vpop.f32.mrf.mxu0
    %v1589 = vadd.f32 %v1428, %v1588
    %1590 = vmatprep.mubr.f32.mxu0 0.0
    %1591 = vmatmul.mubr.f32.gmra.mxu0 %v685
    %v1592 = vpop.f32.mrf.mxu0
    %v1593 = vadd.f32 %v1432, %v1592
    %v1594 = vpop.f32.mrf.mxu0
    %v1595 = vadd.f32 %v1434, %v1594
    %1596 = vdwg.mxu0
    %1597 = vmatprep.subr.mxu0 0.0
    %1598 = vmatpush1.msra.mxu0 %v765
    %1599 = vmatprep.subr.mxu0 0.0
    %1600 = vmatpush1.msra.mxu0 %v760
    %1601 = vmatprep.subr.mxu0 0.0
    %1602 = vmatpush1.msra.mxu0 %v755
    %1603 = vmatprep.subr.mxu0 0.0
    %1604 = vmatpush1.msra.mxu0 %v750
    %1605 = vmatprep.subr.mxu0 0.0
    %1606 = vmatpush1.msra.mxu0 %v745
    %1607 = vmatprep.subr.mxu0 0.0
    %1608 = vmatpush1.msra.mxu0 %v740
    %1609 = vmatprep.subr.mxu0 0.0
    %1610 = vmatpush1.msra.mxu0 %v735
    %1611 = vmatprep.subr.mxu0 0.0
    %1612 = vmatpush1.msra.mxu0 %v730
    %1613 = vmatprep.subr.mxu0 0.0
    %1614 = vmatpush1.msra.mxu0 %v725
    %1615 = vmatprep.subr.mxu0 0.0
    %1616 = vmatpush1.msra.mxu0 %v720
    %1617 = vmatprep.subr.mxu0 0.0
    %1618 = vmatpush1.msra.mxu0 %v715
    %1619 = vmatprep.subr.mxu0 0.0
    %1620 = vmatpush1.msra.mxu0 %v710
    %1621 = vmatprep.subr.mxu0 0.0
    %1622 = vmatpush1.msra.mxu0 %v705
    %1623 = vmatprep.subr.mxu0 0.0
    %1624 = vmatpush1.msra.mxu0 %v700
    %1625 = vmatprep.subr.mxu0 0.0
    %1626 = vmatpush1.msra.mxu0 %v695
    %1627 = vmatprep.subr.mxu0 0.0
    %1628 = vmatpush1.msra.mxu0 %v690
    %1629 = vmatprep.subr.mxu0 0.0
    %1630 = vmatpush2.msra.mxu0 %v845
    %1631 = vmatprep.subr.mxu0 0.0
    %1632 = vmatpush2.msra.mxu0 %v840
    %1633 = vmatprep.subr.mxu0 0.0
    %1634 = vmatpush2.msra.mxu0 %v835
    %1635 = vmatprep.subr.mxu0 0.0
    %1636 = vmatpush2.msra.mxu0 %v830
    %1637 = vmatprep.subr.mxu0 0.0
    %1638 = vmatpush2.msra.mxu0 %v825
    %1639 = vmatprep.subr.mxu0 0.0
    %1640 = vmatpush2.msra.mxu0 %v820
    %1641 = vmatprep.subr.mxu0 0.0
    %1642 = vmatpush2.msra.mxu0 %v815
    %1643 = vmatprep.subr.mxu0 0.0
    %1644 = vmatpush2.msra.mxu0 %v810
    %1645 = vmatprep.subr.mxu0 0.0
    %1646 = vmatpush2.msra.mxu0 %v805
    %1647 = vmatprep.subr.mxu0 0.0
    %1648 = vmatpush2.msra.mxu0 %v800
    %1649 = vmatprep.subr.mxu0 0.0
    %1650 = vmatpush2.msra.mxu0 %v795
    %1651 = vmatprep.subr.mxu0 0.0
    %1652 = vmatpush2.msra.mxu0 %v790
    %1653 = vmatprep.subr.mxu0 0.0
    %1654 = vmatpush2.msra.mxu0 %v785
    %1655 = vmatprep.subr.mxu0 0.0
    %1656 = vmatpush2.msra.mxu0 %v780
    %1657 = vmatprep.subr.mxu0 0.0
    %1658 = vmatpush2.msra.mxu0 %v775
    %1659 = vmatprep.subr.mxu0 0.0
    %1660 = vmatpush2.msra.mxu0 %v770
    %1661 = vmatprep.mubr.f32.mxu0 %v639
    %1662 = vmatmul.mubr.f32.gmra.mxu0 %v638
    %v1663 = vpop.f32.mrf.mxu0
    %v1664 = vadd.f32 %v947, %v1663
    %v1665 = vpop.f32.mrf.mxu0
    %1666 = vmatprep.mubr.f32.mxu0 %v642
    %1667 = vmatmul.mubr.f32.gmra.mxu0 %v641
    %v1668 = vpop.f32.mrf.mxu0
    %v1669 = vadd.f32 %v947, %v1668
    %v1670 = vpop.f32.mrf.mxu0
    %1671 = vmatprep.mubr.f32.mxu0 %v645
    %1672 = vmatmul.mubr.f32.gmra.mxu0 %v644
    %v1673 = vpop.f32.mrf.mxu0
    %v1674 = vadd.f32 %v947, %v1673
    %v1675 = vpop.f32.mrf.mxu0
    %1676 = vmatprep.mubr.f32.mxu0 %v648
    %1677 = vmatmul.mubr.f32.gmra.mxu0 %v647
    %v1678 = vpop.f32.mrf.mxu0
    %v1679 = vadd.f32 %v947, %v1678
    %v1680 = vpop.f32.mrf.mxu0
    %1681 = vmatprep.mubr.f32.mxu0 %v651
    %1682 = vmatmul.mubr.f32.gmra.mxu0 %v650
    %v1683 = vpop.f32.mrf.mxu0
    %v1684 = vadd.f32 %v947, %v1683
    %v1685 = vpop.f32.mrf.mxu0
    %1686 = vmatprep.mubr.f32.mxu0 %v654
    %1687 = vmatmul.mubr.f32.gmra.mxu0 %v653
    %v1688 = vpop.f32.mrf.mxu0
    %v1689 = vadd.f32 %v947, %v1688
    %v1690 = vpop.f32.mrf.mxu0
    %1691 = vmatprep.mubr.f32.mxu0 %v657
    %1692 = vmatmul.mubr.f32.gmra.mxu0 %v656
    %v1693 = vpop.f32.mrf.mxu0
    %v1694 = vadd.f32 %v947, %v1693
    %v1695 = vpop.f32.mrf.mxu0
    %1696 = vmatprep.mubr.f32.mxu0 %v660
    %1697 = vmatmul.mubr.f32.gmra.mxu0 %v659
    %v1698 = vpop.f32.mrf.mxu0
    %v1699 = vadd.f32 %v947, %v1698
    %v1700 = vpop.f32.mrf.mxu0
    %1701 = vmatprep.mubr.f32.mxu0 %v663
    %1702 = vmatmul.mubr.f32.gmra.mxu0 %v662
    %v1703 = vpop.f32.mrf.mxu0
    %v1704 = vadd.f32 %v947, %v1703
    %v1705 = vpop.f32.mrf.mxu0
    %1706 = vmatprep.mubr.f32.mxu0 %v666
    %1707 = vmatmul.mubr.f32.gmra.mxu0 %v665
    %v1708 = vpop.f32.mrf.mxu0
    %v1709 = vadd.f32 %v947, %v1708
    %v1710 = vpop.f32.mrf.mxu0
    %1711 = vmatprep.mubr.f32.mxu0 %v669
    %1712 = vmatmul.mubr.f32.gmra.mxu0 %v668
    %v1713 = vpop.f32.mrf.mxu0
    %v1714 = vadd.f32 %v947, %v1713
    %v1715 = vpop.f32.mrf.mxu0
    %1716 = vmatprep.mubr.f32.mxu0 %v672
    %1717 = vmatmul.mubr.f32.gmra.mxu0 %v671
    %v1718 = vpop.f32.mrf.mxu0
    %v1719 = vadd.f32 %v947, %v1718
    %v1720 = vpop.f32.mrf.mxu0
    %1721 = vmatprep.mubr.f32.mxu0 %v675
    %1722 = vmatmul.mubr.f32.gmra.mxu0 %v674
    %v1723 = vpop.f32.mrf.mxu0
    %v1724 = vadd.f32 %v947, %v1723
    %v1725 = vpop.f32.mrf.mxu0
    %1726 = vmatprep.mubr.f32.mxu0 %v678
    %1727 = vmatmul.mubr.f32.gmra.mxu0 %v677
    %v1728 = vpop.f32.mrf.mxu0
    %v1729 = vadd.f32 %v947, %v1728
    %v1730 = vpop.f32.mrf.mxu0
    %1731 = vmatprep.mubr.f32.mxu0 %v681
    %1732 = vmatmul.mubr.f32.gmra.mxu0 %v680
    %v1733 = vpop.f32.mrf.mxu0
    %v1734 = vadd.f32 %v947, %v1733
    %v1735 = vpop.f32.mrf.mxu0
    %1736 = vmatprep.mubr.f32.mxu0 %v684
    %1737 = vmatmul.mubr.f32.gmra.mxu0 %v683
    %v1738 = vpop.f32.mrf.mxu0
    %v1739 = vadd.f32 %v947, %v1738
    %v1740 = vpop.f32.mrf.mxu0
    %1741 = vdwg.mxu0
    %1742 = vmatprep.subr.mxu0 0.0
    %1743 = vmatpush1.msra.mxu0 %v925
    %1744 = vmatprep.subr.mxu0 0.0
    %1745 = vmatpush1.msra.mxu0 %v920
    %1746 = vmatprep.subr.mxu0 0.0
    %1747 = vmatpush1.msra.mxu0 %v915
    %1748 = vmatprep.subr.mxu0 0.0
    %1749 = vmatpush1.msra.mxu0 %v910
    %1750 = vmatprep.subr.mxu0 0.0
    %1751 = vmatpush1.msra.mxu0 %v905
    %1752 = vmatprep.subr.mxu0 0.0
    %1753 = vmatpush1.msra.mxu0 %v900
    %1754 = vmatprep.subr.mxu0 0.0
    %1755 = vmatpush1.msra.mxu0 %v895
    %1756 = vmatprep.subr.mxu0 0.0
    %1757 = vmatpush1.msra.mxu0 %v890
    %1758 = vmatprep.subr.mxu0 0.0
    %1759 = vmatpush1.msra.mxu0 %v885
    %1760 = vmatprep.subr.mxu0 0.0
    %1761 = vmatpush1.msra.mxu0 %v880
    %1762 = vmatprep.subr.mxu0 0.0
    %1763 = vmatpush1.msra.mxu0 %v875
    %1764 = vmatprep.subr.mxu0 0.0
    %1765 = vmatpush1.msra.mxu0 %v870
    %1766 = vmatprep.subr.mxu0 0.0
    %1767 = vmatpush1.msra.mxu0 %v865
    %1768 = vmatprep.subr.mxu0 0.0
    %1769 = vmatpush1.msra.mxu0 %v860
    %1770 = vmatprep.subr.mxu0 0.0
    %1771 = vmatpush1.msra.mxu0 %v855
    %1772 = vmatprep.subr.mxu0 0.0
    %1773 = vmatpush1.msra.mxu0 %v850
    %1774 = vmatprep.subr.mxu0 0.0
    %1775 = vmatpush2.msra.mxu0 0.0
    %1776 = vmatprep.subr.mxu0 0.0
    %1777 = vmatpush2.msra.mxu0 0.0
    %1778 = vmatprep.subr.mxu0 0.0
    %1779 = vmatpush2.msra.mxu0 0.0
    %1780 = vmatprep.subr.mxu0 0.0
    %1781 = vmatpush2.msra.mxu0 0.0
    %1782 = vmatprep.subr.mxu0 0.0
    %1783 = vmatpush2.msra.mxu0 0.0
    %1784 = vmatprep.subr.mxu0 0.0
    %1785 = vmatpush2.msra.mxu0 0.0
    %1786 = vmatprep.subr.mxu0 0.0
    %1787 = vmatpush2.msra.mxu0 0.0
    %1788 = vmatprep.subr.mxu0 0.0
    %1789 = vmatpush2.msra.mxu0 0.0
    %1790 = vmatprep.subr.mxu0 0.0
    %1791 = vmatpush2.msra.mxu0 0.0
    %1792 = vmatprep.subr.mxu0 0.0
    %1793 = vmatpush2.msra.mxu0 0.0
    %1794 = vmatprep.subr.mxu0 0.0
    %1795 = vmatpush2.msra.mxu0 0.0
    %1796 = vmatprep.subr.mxu0 0.0
    %1797 = vmatpush2.msra.mxu0 0.0
    %1798 = vmatprep.subr.mxu0 0.0
    %1799 = vmatpush2.msra.mxu0 0.0
    %1800 = vmatprep.subr.mxu0 0.0
    %1801 = vmatpush2.msra.mxu0 0.0
    %1802 = vmatprep.subr.mxu0 0.0
    %1803 = vmatpush2.msra.mxu0 0.0
    %1804 = vmatprep.subr.mxu0 0.0
    %1805 = vmatpush2.msra.mxu0 0.0
    %1806 = vmatprep.mubr.f32.mxu0 0.0
    %1807 = vmatmul.mubr.f32.gmra.mxu0 %v640
    %v1808 = vpop.f32.mrf.mxu0
    %v1809 = vadd.f32 %v1664, %v1808
    %v1810 = vpop.f32.mrf.mxu0
    %1811 = vmatprep.mubr.f32.mxu0 0.0
    %1812 = vmatmul.mubr.f32.gmra.mxu0 %v643
    %v1813 = vpop.f32.mrf.mxu0
    %v1814 = vadd.f32 %v1669, %v1813
    %v1815 = vpop.f32.mrf.mxu0
    %1816 = vmatprep.mubr.f32.mxu0 0.0
    %1817 = vmatmul.mubr.f32.gmra.mxu0 %v646
    %v1818 = vpop.f32.mrf.mxu0
    %v1819 = vadd.f32 %v1674, %v1818
    %v1820 = vpop.f32.mrf.mxu0
    %1821 = vmatprep.mubr.f32.mxu0 0.0
    %1822 = vmatmul.mubr.f32.gmra.mxu0 %v649
    %v1823 = vpop.f32.mrf.mxu0
    %v1824 = vadd.f32 %v1679, %v1823
    %v1825 = vpop.f32.mrf.mxu0
    %1826 = vmatprep.mubr.f32.mxu0 0.0
    %1827 = vmatmul.mubr.f32.gmra.mxu0 %v652
    %v1828 = vpop.f32.mrf.mxu0
    %v1829 = vadd.f32 %v1684, %v1828
    %v1830 = vpop.f32.mrf.mxu0
    %1831 = vmatprep.mubr.f32.mxu0 0.0
    %1832 = vmatmul.mubr.f32.gmra.mxu0 %v655
    %v1833 = vpop.f32.mrf.mxu0
    %v1834 = vadd.f32 %v1689, %v1833
    %v1835 = vpop.f32.mrf.mxu0
    %1836 = vmatprep.mubr.f32.mxu0 0.0
    %1837 = vmatmul.mubr.f32.gmra.mxu0 %v658
    %v1838 = vpop.f32.mrf.mxu0
    %v1839 = vadd.f32 %v1694, %v1838
    %v1840 = vpop.f32.mrf.mxu0
    %1841 = vmatprep.mubr.f32.mxu0 0.0
    %1842 = vmatmul.mubr.f32.gmra.mxu0 %v661
    %v1843 = vpop.f32.mrf.mxu0
    %v1844 = vadd.f32 %v1699, %v1843
    %v1845 = vpop.f32.mrf.mxu0
    %1846 = vmatprep.mubr.f32.mxu0 0.0
    %1847 = vmatmul.mubr.f32.gmra.mxu0 %v664
    %v1848 = vpop.f32.mrf.mxu0
    %v1849 = vadd.f32 %v1704, %v1848
    %v1850 = vpop.f32.mrf.mxu0
    %1851 = vmatprep.mubr.f32.mxu0 0.0
    %1852 = vmatmul.mubr.f32.gmra.mxu0 %v667
    %v1853 = vpop.f32.mrf.mxu0
    %v1854 = vadd.f32 %v1709, %v1853
    %v1855 = vpop.f32.mrf.mxu0
    %1856 = vmatprep.mubr.f32.mxu0 0.0
    %1857 = vmatmul.mubr.f32.gmra.mxu0 %v670
    %v1858 = vpop.f32.mrf.mxu0
    %v1859 = vadd.f32 %v1714, %v1858
    %v1860 = vpop.f32.mrf.mxu0
    %1861 = vmatprep.mubr.f32.mxu0 0.0
    %1862 = vmatmul.mubr.f32.gmra.mxu0 %v673
    %v1863 = vpop.f32.mrf.mxu0
    %v1864 = vadd.f32 %v1719, %v1863
    %v1865 = vpop.f32.mrf.mxu0
    %1866 = vmatprep.mubr.f32.mxu0 0.0
    %1867 = vmatmul.mubr.f32.gmra.mxu0 %v676
    %v1868 = vpop.f32.mrf.mxu0
    %v1869 = vadd.f32 %v1724, %v1868
    %v1870 = vpop.f32.mrf.mxu0
    %1871 = vmatprep.mubr.f32.mxu0 0.0
    %1872 = vmatmul.mubr.f32.gmra.mxu0 %v679
    %v1873 = vpop.f32.mrf.mxu0
    %v1874 = vadd.f32 %v1729, %v1873
    %v1875 = vpop.f32.mrf.mxu0
    %1876 = vmatprep.mubr.f32.mxu0 0.0
    %1877 = vmatmul.mubr.f32.gmra.mxu0 %v682
    %v1878 = vpop.f32.mrf.mxu0
    %v1879 = vadd.f32 %v1734, %v1878
    %v1880 = vpop.f32.mrf.mxu0
    %1881 = vmatprep.mubr.f32.mxu0 0.0
    %1882 = vmatmul.mubr.f32.gmra.mxu0 %v685
    %v1883 = vpop.f32.mrf.mxu0
    %v1884 = vadd.f32 %v1739, %v1883
    %v1885 = vpop.f32.mrf.mxu0
    %1886 = vdwg.mxu0
    %v1887 = vmax.f32 %v1181, 0.0
    %v1888 = vmax.f32 %v1183, 0.0
    %v1889 = vmax.f32 %v1503, 0.0
    %v1890 = vmax.f32 %v1505, 0.0
    %v1891 = vmax.f32 %v1809, 0.0
    %v1892 = vmax.f32 %v1187, 0.0
    %v1893 = vmax.f32 %v1189, 0.0
    %v1894 = vmax.f32 %v1509, 0.0
    %v1895 = vmax.f32 %v1511, 0.0
    %v1896 = vmax.f32 %v1814, 0.0
    %v1897 = vmax.f32 %v1193, 0.0
    %v1898 = vmax.f32 %v1195, 0.0
    %v1899 = vmax.f32 %v1515, 0.0
    %v1900 = vmax.f32 %v1517, 0.0
    %v1901 = vmax.f32 %v1819, 0.0
    %v1902 = vmax.f32 %v1199, 0.0
    %v1903 = vmax.f32 %v1201, 0.0
    %v1904 = vmax.f32 %v1521, 0.0
    %v1905 = vmax.f32 %v1523, 0.0
    %v1906 = vmax.f32 %v1824, 0.0
    %v1907 = vmax.f32 %v1205, 0.0
    %v1908 = vmax.f32 %v1207, 0.0
    %v1909 = vmax.f32 %v1527, 0.0
    %v1910 = vmax.f32 %v1529, 0.0
    %v1911 = vmax.f32 %v1829, 0.0
    %v1912 = vmax.f32 %v1211, 0.0
    %v1913 = vmax.f32 %v1213, 0.0
    %v1914 = vmax.f32 %v1533, 0.0
    %v1915 = vmax.f32 %v1535, 0.0
    %v1916 = vmax.f32 %v1834, 0.0
    %v1917 = vmax.f32 %v1217, 0.0
    %v1918 = vmax.f32 %v1219, 0.0
    %v1919 = vmax.f32 %v1539, 0.0
    %v1920 = vmax.f32 %v1541, 0.0
    %v1921 = vmax.f32 %v1839, 0.0
    %v1922 = vmax.f32 %v1223, 0.0
    %v1923 = vmax.f32 %v1225, 0.0
    %v1924 = vmax.f32 %v1545, 0.0
    %v1925 = vmax.f32 %v1547, 0.0
    %v1926 = vmax.f32 %v1844, 0.0
    %v1927 = vmax.f32 %v1229, 0.0
    %v1928 = vmax.f32 %v1231, 0.0
    %v1929 = vmax.f32 %v1551, 0.0
    %v1930 = vmax.f32 %v1553, 0.0
    %v1931 = vmax.f32 %v1849, 0.0
    %v1932 = vmax.f32 %v1235, 0.0
    %v1933 = vmax.f32 %v1237, 0.0
    %v1934 = vmax.f32 %v1557, 0.0
    %v1935 = vmax.f32 %v1559, 0.0
    %v1936 = vmax.f32 %v1854, 0.0
    %v1937 = vmax.f32 %v1241, 0.0
    %v1938 = vmax.f32 %v1243, 0.0
    %v1939 = vmax.f32 %v1563, 0.0
    %v1940 = vmax.f32 %v1565, 0.0
    %v1941 = vmax.f32 %v1859, 0.0
    %v1942 = vmax.f32 %v1247, 0.0
    %v1943 = vmax.f32 %v1249, 0.0
    %v1944 = vmax.f32 %v1569, 0.0
    %v1945 = vmax.f32 %v1571, 0.0
    %v1946 = vmax.f32 %v1864, 0.0
    %v1947 = vmax.f32 %v1253, 0.0
    %v1948 = vmax.f32 %v1255, 0.0
    %v1949 = vmax.f32 %v1575, 0.0
    %v1950 = vmax.f32 %v1577, 0.0
    %v1951 = vmax.f32 %v1869, 0.0
    %v1952 = vmax.f32 %v1259, 0.0
    %v1953 = vmax.f32 %v1261, 0.0
    %v1954 = vmax.f32 %v1581, 0.0
    %v1955 = vmax.f32 %v1583, 0.0
    %v1956 = vmax.f32 %v1874, 0.0
    %v1957 = vmax.f32 %v1265, 0.0
    %v1958 = vmax.f32 %v1267, 0.0
    %v1959 = vmax.f32 %v1587, 0.0
    %v1960 = vmax.f32 %v1589, 0.0
    %v1961 = vmax.f32 %v1879, 0.0
    %v1962 = vmax.f32 %v1271, 0.0
    %v1963 = vmax.f32 %v1273, 0.0
    %v1964 = vmax.f32 %v1593, 0.0
    %v1965 = vmax.f32 %v1595, 0.0
    %v1966 = vmax.f32 %v1884, 0.0
    %v1967 = vmax.f32 %v1887, %v1888
    %v1968 = vmax.f32 %v1892, %v1893
    %v1969 = vmax.f32 %v1897, %v1898
    %v1970 = vmax.f32 %v1902, %v1903
    %v1971 = vmax.f32 %v1907, %v1908
    %v1972 = vmax.f32 %v1912, %v1913
    %v1973 = vmax.f32 %v1917, %v1918
    %v1974 = vmax.f32 %v1922, %v1923
    %v1975 = vmax.f32 %v1927, %v1928
    %v1976 = vmax.f32 %v1932, %v1933
    %v1977 = vmax.f32 %v1937, %v1938
    %v1978 = vmax.f32 %v1942, %v1943
    %v1979 = vmax.f32 %v1947, %v1948
    %v1980 = vmax.f32 %v1952, %v1953
    %v1981 = vmax.f32 %v1957, %v1958
    %v1982 = vmax.f32 %v1962, %v1963
    %v1983 = vmax.f32 %v1967, %v1889
    %v1984 = vmax.f32 %v1968, %v1894
    %v1985 = vmax.f32 %v1969, %v1899
    %v1986 = vmax.f32 %v1970, %v1904
    %v1987 = vmax.f32 %v1971, %v1909
    %v1988 = vmax.f32 %v1972, %v1914
    %v1989 = vmax.f32 %v1973, %v1919
    %v1990 = vmax.f32 %v1974, %v1924
    %v1991 = vmax.f32 %v1975, %v1929
    %v1992 = vmax.f32 %v1976, %v1934
    %v1993 = vmax.f32 %v1977, %v1939
    %v1994 = vmax.f32 %v1978, %v1944
    %v1995 = vmax.f32 %v1979, %v1949
    %v1996 = vmax.f32 %v1980, %v1954
    %v1997 = vmax.f32 %v1981, %v1959
    %v1998 = vmax.f32 %v1982, %v1964
    %1999 = vrot.lane.b32.xlu0 %v1983, 64
    %v2000 = vpop.permute.xlu0 %1999
    %2001 = vrot.lane.b32.xlu0 %v1984, 64
    %v2002 = vpop.permute.xlu0 %2001
    %2003 = vrot.lane.b32.xlu0 %v1985, 64
    %v2004 = vpop.permute.xlu0 %2003
    %2005 = vrot.lane.b32.xlu0 %v1986, 64
    %v2006 = vpop.permute.xlu0 %2005
    %2007 = vrot.lane.b32.xlu0 %v1987, 64
    %v2008 = vpop.permute.xlu0 %2007
    %2009 = vrot.lane.b32.xlu0 %v1988, 64
    %v2010 = vpop.permute.xlu0 %2009
    %2011 = vrot.lane.b32.xlu0 %v1989, 64
    %v2012 = vpop.permute.xlu0 %2011
    %2013 = vrot.lane.b32.xlu0 %v1990, 64
    %v2014 = vpop.permute.xlu0 %2013
    %2015 = vrot.lane.b32.xlu0 %v1991, 64
    %v2016 = vpop.permute.xlu0 %2015
    %2017 = vrot.lane.b32.xlu0 %v1992, 64
    %v2018 = vpop.permute.xlu0 %2017
    %2019 = vrot.lane.b32.xlu0 %v1993, 64
    %v2020 = vpop.permute.xlu0 %2019
    %2021 = vrot.lane.b32.xlu0 %v1994, 64
    %v2022 = vpop.permute.xlu0 %2021
    %2023 = vrot.lane.b32.xlu0 %v1995, 64
    %v2024 = vpop.permute.xlu0 %2023
    %2025 = vrot.lane.b32.xlu0 %v1996, 64
    %v2026 = vpop.permute.xlu0 %2025
    %2027 = vrot.lane.b32.xlu0 %v1997, 64
    %v2028 = vpop.permute.xlu0 %2027
    %2029 = vrot.lane.b32.xlu0 %v1998, 64
    %v2030 = vpop.permute.xlu0 %2029
    %v2031 = vmax.f32 %v1983, %v2000
    %v2032 = vmax.f32 %v1984, %v2002
    %v2033 = vmax.f32 %v1985, %v2004
    %v2034 = vmax.f32 %v1986, %v2006
    %v2035 = vmax.f32 %v1987, %v2008
    %v2036 = vmax.f32 %v1988, %v2010
    %v2037 = vmax.f32 %v1989, %v2012
    %v2038 = vmax.f32 %v1990, %v2014
    %v2039 = vmax.f32 %v1991, %v2016
    %v2040 = vmax.f32 %v1992, %v2018
    %v2041 = vmax.f32 %v1993, %v2020
    %v2042 = vmax.f32 %v1994, %v2022
    %v2043 = vmax.f32 %v1995, %v2024
    %v2044 = vmax.f32 %v1996, %v2026
    %v2045 = vmax.f32 %v1997, %v2028
    %v2046 = vmax.f32 %v1998, %v2030
    %2047 = vrot.lane.b32.xlu0 %v2031, 32
    %v2048 = vpop.permute.xlu0 %2047
    %2049 = vrot.lane.b32.xlu0 %v2032, 32
    %v2050 = vpop.permute.xlu0 %2049
    %2051 = vrot.lane.b32.xlu0 %v2033, 32
    %v2052 = vpop.permute.xlu0 %2051
    %2053 = vrot.lane.b32.xlu0 %v2034, 32
    %v2054 = vpop.permute.xlu0 %2053
    %2055 = vrot.lane.b32.xlu0 %v2035, 32
    %v2056 = vpop.permute.xlu0 %2055
    %2057 = vrot.lane.b32.xlu0 %v2036, 32
    %v2058 = vpop.permute.xlu0 %2057
    %2059 = vrot.lane.b32.xlu0 %v2037, 32
    %v2060 = vpop.permute.xlu0 %2059
    %2061 = vrot.lane.b32.xlu0 %v2038, 32
    %v2062 = vpop.permute.xlu0 %2061
    %2063 = vrot.lane.b32.xlu0 %v2039, 32
    %v2064 = vpop.permute.xlu0 %2063
    %2065 = vrot.lane.b32.xlu0 %v2040, 32
    %v2066 = vpop.permute.xlu0 %2065
    %2067 = vrot.lane.b32.xlu0 %v2041, 32
    %v2068 = vpop.permute.xlu0 %2067
    %2069 = vrot.lane.b32.xlu0 %v2042, 32
    %v2070 = vpop.permute.xlu0 %2069
    %2071 = vrot.lane.b32.xlu0 %v2043, 32
    %v2072 = vpop.permute.xlu0 %2071
    %2073 = vrot.lane.b32.xlu0 %v2044, 32
    %v2074 = vpop.permute.xlu0 %2073
    %2075 = vrot.lane.b32.xlu0 %v2045, 32
    %v2076 = vpop.permute.xlu0 %2075
    %2077 = vrot.lane.b32.xlu0 %v2046, 32
    %v2078 = vpop.permute.xlu0 %2077
    %v2079 = vmax.f32 %v2031, %v2048
    %v2080 = vmax.f32 %v2032, %v2050
    %v2081 = vmax.f32 %v2033, %v2052
    %v2082 = vmax.f32 %v2034, %v2054
    %v2083 = vmax.f32 %v2035, %v2056
    %v2084 = vmax.f32 %v2036, %v2058
    %v2085 = vmax.f32 %v2037, %v2060
    %v2086 = vmax.f32 %v2038, %v2062
    %v2087 = vmax.f32 %v2039, %v2064
    %v2088 = vmax.f32 %v2040, %v2066
    %v2089 = vmax.f32 %v2041, %v2068
    %v2090 = vmax.f32 %v2042, %v2070
    %v2091 = vmax.f32 %v2043, %v2072
    %v2092 = vmax.f32 %v2044, %v2074
    %v2093 = vmax.f32 %v2045, %v2076
    %v2094 = vmax.f32 %v2046, %v2078
    %v2095 = vmax.f32 %v1890, %v1891
    %v2096 = vmax.f32 %v1895, %v1896
    %v2097 = vmax.f32 %v1900, %v1901
    %v2098 = vmax.f32 %v1905, %v1906
    %v2099 = vmax.f32 %v1910, %v1911
    %v2100 = vmax.f32 %v1915, %v1916
    %v2101 = vmax.f32 %v1920, %v1921
    %v2102 = vmax.f32 %v1925, %v1926
    %v2103 = vmax.f32 %v1930, %v1931
    %v2104 = vmax.f32 %v1935, %v1936
    %v2105 = vmax.f32 %v1940, %v1941
    %v2106 = vmax.f32 %v1945, %v1946
    %v2107 = vmax.f32 %v1950, %v1951
    %v2108 = vmax.f32 %v1955, %v1956
    %v2109 = vmax.f32 %v1960, %v1961
    %v2110 = vmax.f32 %v1965, %v1966
    %2111 = vrot.lane.b32.xlu0 %v2095, 64
    %v2112 = vpop.permute.xlu0 %2111
    %2113 = vrot.lane.b32.xlu0 %v2096, 64
    %v2114 = vpop.permute.xlu0 %2113
    %2115 = vrot.lane.b32.xlu0 %v2097, 64
    %v2116 = vpop.permute.xlu0 %2115
    %2117 = vrot.lane.b32.xlu0 %v2098, 64
    %v2118 = vpop.permute.xlu0 %2117
    %2119 = vrot.lane.b32.xlu0 %v2099, 64
    %v2120 = vpop.permute.xlu0 %2119
    %2121 = vrot.lane.b32.xlu0 %v2100, 64
    %v2122 = vpop.permute.xlu0 %2121
    %2123 = vrot.lane.b32.xlu0 %v2101, 64
    %v2124 = vpop.permute.xlu0 %2123
    %2125 = vrot.lane.b32.xlu0 %v2102, 64
    %v2126 = vpop.permute.xlu0 %2125
    %2127 = vrot.lane.b32.xlu0 %v2103, 64
    %v2128 = vpop.permute.xlu0 %2127
    %2129 = vrot.lane.b32.xlu0 %v2104, 64
    %v2130 = vpop.permute.xlu0 %2129
    %2131 = vrot.lane.b32.xlu0 %v2105, 64
    %v2132 = vpop.permute.xlu0 %2131
    %2133 = vrot.lane.b32.xlu0 %v2106, 64
    %v2134 = vpop.permute.xlu0 %2133
    %2135 = vrot.lane.b32.xlu0 %v2107, 64
    %v2136 = vpop.permute.xlu0 %2135
    %2137 = vrot.lane.b32.xlu0 %v2108, 64
    %v2138 = vpop.permute.xlu0 %2137
    %2139 = vrot.lane.b32.xlu0 %v2109, 64
    %v2140 = vpop.permute.xlu0 %2139
    %2141 = vrot.lane.b32.xlu0 %v2110, 64
    %v2142 = vpop.permute.xlu0 %2141
    %v2143 = vmax.f32 %v2095, %v2112
    %v2144 = vmax.f32 %v2096, %v2114
    %v2145 = vmax.f32 %v2097, %v2116
    %v2146 = vmax.f32 %v2098, %v2118
    %v2147 = vmax.f32 %v2099, %v2120
    %v2148 = vmax.f32 %v2100, %v2122
    %v2149 = vmax.f32 %v2101, %v2124
    %v2150 = vmax.f32 %v2102, %v2126
    %v2151 = vmax.f32 %v2103, %v2128
    %v2152 = vmax.f32 %v2104, %v2130
    %v2153 = vmax.f32 %v2105, %v2132
    %v2154 = vmax.f32 %v2106, %v2134
    %v2155 = vmax.f32 %v2107, %v2136
    %v2156 = vmax.f32 %v2108, %v2138
    %v2157 = vmax.f32 %v2109, %v2140
    %v2158 = vmax.f32 %v2110, %v2142
    %2159 = vrot.lane.b32.xlu0 %v2143, 32
    %v2160 = vpop.permute.xlu0 %2159
    %2161 = vrot.lane.b32.xlu0 %v2144, 32
    %v2162 = vpop.permute.xlu0 %2161
    %2163 = vrot.lane.b32.xlu0 %v2145, 32
    %v2164 = vpop.permute.xlu0 %2163
    %2165 = vrot.lane.b32.xlu0 %v2146, 32
    %v2166 = vpop.permute.xlu0 %2165
    %2167 = vrot.lane.b32.xlu0 %v2147, 32
    %v2168 = vpop.permute.xlu0 %2167
    %2169 = vrot.lane.b32.xlu0 %v2148, 32
    %v2170 = vpop.permute.xlu0 %2169
    %2171 = vrot.lane.b32.xlu0 %v2149, 32
    %v2172 = vpop.permute.xlu0 %2171
    %2173 = vrot.lane.b32.xlu0 %v2150, 32
    %v2174 = vpop.permute.xlu0 %2173
    %2175 = vrot.lane.b32.xlu0 %v2151, 32
    %v2176 = vpop.permute.xlu0 %2175
    %2177 = vrot.lane.b32.xlu0 %v2152, 32
    %v2178 = vpop.permute.xlu0 %2177
    %2179 = vrot.lane.b32.xlu0 %v2153, 32
    %v2180 = vpop.permute.xlu0 %2179
    %2181 = vrot.lane.b32.xlu0 %v2154, 32
    %v2182 = vpop.permute.xlu0 %2181
    %2183 = vrot.lane.b32.xlu0 %v2155, 32
    %v2184 = vpop.permute.xlu0 %2183
    %2185 = vrot.lane.b32.xlu0 %v2156, 32
    %v2186 = vpop.permute.xlu0 %2185
    %2187 = vrot.lane.b32.xlu0 %v2157, 32
    %v2188 = vpop.permute.xlu0 %2187
    %2189 = vrot.lane.b32.xlu0 %v2158, 32
    %v2190 = vpop.permute.xlu0 %2189
    %v2191 = vmax.f32 %v2143, %v2160
    %v2192 = vmax.f32 %v2144, %v2162
    %v2193 = vmax.f32 %v2145, %v2164
    %v2194 = vmax.f32 %v2146, %v2166
    %v2195 = vmax.f32 %v2147, %v2168
    %v2196 = vmax.f32 %v2148, %v2170
    %v2197 = vmax.f32 %v2149, %v2172
    %v2198 = vmax.f32 %v2150, %v2174
    %v2199 = vmax.f32 %v2151, %v2176
    %v2200 = vmax.f32 %v2152, %v2178
    %v2201 = vmax.f32 %v2153, %v2180
    %v2202 = vmax.f32 %v2154, %v2182
    %v2203 = vmax.f32 %v2155, %v2184
    %v2204 = vmax.f32 %v2156, %v2186
    %v2205 = vmax.f32 %v2157, %v2188
    %v2206 = vmax.f32 %v2158, %v2190
    %v2207 = vld [vmem:[%s1] sm:$0xff]
    %v2208 = vld [vmem:[%s1 + $0x8] sm:$0xff]
    %v2209 = vld [vmem:[%s1 + $0x10] sm:$0xff]
    %v2210 = vld [vmem:[%s1 + $0x18] sm:$0xff]
    %v2211 = vld [vmem:[%s1 + $0x20] sm:$0xff]
    %v2212 = vld [vmem:[%s1 + $0x28] sm:$0xff]
    %v2213 = vld [vmem:[%s1 + $0x30] sm:$0xff]
    %v2214 = vld [vmem:[%s1 + $0x38] sm:$0xff]
    %v2215 = vld [vmem:[%s1 + $0x40] sm:$0xff]
    %v2216 = vld [vmem:[%s1 + $0x48] sm:$0xff]
    %v2217 = vld [vmem:[%s1 + $0x50] sm:$0xff]
    %v2218 = vld [vmem:[%s1 + $0x58] sm:$0xff]
    %v2219 = vld [vmem:[%s1 + $0x60] sm:$0xff]
    %v2220 = vld [vmem:[%s1 + $0x68] sm:$0xff]
    %v2221 = vld [vmem:[%s1 + $0x70] sm:$0xff]
    %v2222 = vld [vmem:[%s1 + $0x78] sm:$0xff]
    %v2223 = vld [vmem:[%s8] sm:$0xff]
    %v2224 = vld [vmem:[%s8 + $0x8] sm:$0xff]
    %v2225 = vld [vmem:[%s8 + $0x10] sm:$0xff]
    %v2226 = vld [vmem:[%s8 + $0x18] sm:$0xff]
    %v2227 = vld [vmem:[%s8 + $0x20] sm:$0xff]
    %v2228 = vld [vmem:[%s8 + $0x28] sm:$0xff]
    %v2229 = vld [vmem:[%s8 + $0x30] sm:$0xff]
    %v2230 = vld [vmem:[%s8 + $0x38] sm:$0xff]
    %v2231 = vld [vmem:[#allocation7] sm:$0xff]
    %v2232 = vld [vmem:[#allocation7 + $0x8] sm:$0xff]
    %v2233 = vld [vmem:[#allocation7 + $0x10] sm:$0xff]
    %v2234 = vld [vmem:[#allocation7 + $0x18] sm:$0xff]
    %v2235 = vld [vmem:[#allocation7 + $0x20] sm:$0xff]
    %v2236 = vld [vmem:[#allocation7 + $0x28] sm:$0xff]
    %v2237 = vld [vmem:[#allocation7 + $0x30] sm:$0xff]
    %v2238 = vld [vmem:[#allocation7 + $0x38] sm:$0xff]
    %v2239 = vld [vmem:[#allocation7 + $0x40] sm:$0xff]
    %v2240 = vld [vmem:[#allocation7 + $0x48] sm:$0xff]
    %v2241 = vld [vmem:[#allocation7 + $0x50] sm:$0xff]
    %v2242 = vld [vmem:[#allocation7 + $0x58] sm:$0xff]
    %v2243 = vld [vmem:[#allocation7 + $0x60] sm:$0xff]
    %v2244 = vld [vmem:[#allocation7 + $0x68] sm:$0xff]
    %v2245 = vld [vmem:[#allocation7 + $0x70] sm:$0xff]
    %v2246 = vld [vmem:[#allocation7 + $0x78] sm:$0xff]
    %2247 = vmatprep.subr.mxu0 0.0
    %2248 = vmatpush1.msra.mxu0 %v2246
    %2249 = vmatprep.subr.mxu0 0.0
    %2250 = vmatpush1.msra.mxu0 %v2245
    %2251 = vmatprep.subr.mxu0 0.0
    %2252 = vmatpush1.msra.mxu0 %v2244
    %2253 = vmatprep.subr.mxu0 0.0
    %2254 = vmatpush1.msra.mxu0 %v2243
    %2255 = vmatprep.subr.mxu0 0.0
    %2256 = vmatpush1.msra.mxu0 %v2242
    %2257 = vmatprep.subr.mxu0 0.0
    %2258 = vmatpush1.msra.mxu0 %v2241
    %2259 = vmatprep.subr.mxu0 0.0
    %2260 = vmatpush1.msra.mxu0 %v2240
    %2261 = vmatprep.subr.mxu0 0.0
    %2262 = vmatpush1.msra.mxu0 %v2239
    %2263 = vmatprep.subr.mxu0 0.0
    %2264 = vmatpush1.msra.mxu0 %v2238
    %2265 = vmatprep.subr.mxu0 0.0
    %2266 = vmatpush1.msra.mxu0 %v2237
    %2267 = vmatprep.subr.mxu0 0.0
    %2268 = vmatpush1.msra.mxu0 %v2236
    %2269 = vmatprep.subr.mxu0 0.0
    %2270 = vmatpush1.msra.mxu0 %v2235
    %2271 = vmatprep.subr.mxu0 0.0
    %2272 = vmatpush1.msra.mxu0 %v2234
    %2273 = vmatprep.subr.mxu0 0.0
    %2274 = vmatpush1.msra.mxu0 %v2233
    %2275 = vmatprep.subr.mxu0 0.0
    %2276 = vmatpush1.msra.mxu0 %v2232
    %2277 = vmatprep.subr.mxu0 0.0
    %2278 = vmatpush1.msra.mxu0 %v2231
    %2279 = vmatprep.subr.mxu0 0.0
    %2280 = vmatpush2.msra.mxu0 0.0
    %2281 = vmatprep.subr.mxu0 0.0
    %2282 = vmatpush2.msra.mxu0 0.0
    %2283 = vmatprep.subr.mxu0 0.0
    %2284 = vmatpush2.msra.mxu0 0.0
    %2285 = vmatprep.subr.mxu0 0.0
    %2286 = vmatpush2.msra.mxu0 0.0
    %2287 = vmatprep.subr.mxu0 0.0
    %2288 = vmatpush2.msra.mxu0 0.0
    %2289 = vmatprep.subr.mxu0 0.0
    %2290 = vmatpush2.msra.mxu0 0.0
    %2291 = vmatprep.subr.mxu0 0.0
    %2292 = vmatpush2.msra.mxu0 0.0
    %2293 = vmatprep.subr.mxu0 0.0
    %2294 = vmatpush2.msra.mxu0 0.0
    %2295 = vmatprep.subr.mxu0 0.0
    %2296 = vmatpush2.msra.mxu0 0.0
    %2297 = vmatprep.subr.mxu0 0.0
    %2298 = vmatpush2.msra.mxu0 0.0
    %2299 = vmatprep.subr.mxu0 0.0
    %2300 = vmatpush2.msra.mxu0 0.0
    %2301 = vmatprep.subr.mxu0 0.0
    %2302 = vmatpush2.msra.mxu0 0.0
    %2303 = vmatprep.subr.mxu0 0.0
    %2304 = vmatpush2.msra.mxu0 0.0
    %2305 = vmatprep.subr.mxu0 0.0
    %2306 = vmatpush2.msra.mxu0 0.0
    %2307 = vmatprep.subr.mxu0 0.0
    %2308 = vmatpush2.msra.mxu0 0.0
    %2309 = vmatprep.subr.mxu0 0.0
    %2310 = vmatpush2.msra.mxu0 0.0
    %2311 = vmatprep.mubr.f32.mxu0 0.0
    %2312 = vmatmul.mubr.f32.gmra.mxu0 %v2079
    %v2313 = vpop.f32.mrf.mxu0
    %v2314 = vadd.f32 0.0, %v2313
    %v2315 = vpop.f32.mrf.mxu0
    %2316 = vmatprep.mubr.f32.mxu0 0.0
    %2317 = vmatmul.mubr.f32.gmra.mxu0 %v2080
    %v2318 = vpop.f32.mrf.mxu0
    %v2319 = vadd.f32 0.0, %v2318
    %v2320 = vpop.f32.mrf.mxu0
    %2321 = vmatprep.mubr.f32.mxu0 0.0
    %2322 = vmatmul.mubr.f32.gmra.mxu0 %v2081
    %v2323 = vpop.f32.mrf.mxu0
    %v2324 = vadd.f32 0.0, %v2323
    %v2325 = vpop.f32.mrf.mxu0
    %2326 = vmatprep.mubr.f32.mxu0 0.0
    %2327 = vmatmul.mubr.f32.gmra.mxu0 %v2082
    %v2328 = vpop.f32.mrf.mxu0
    %v2329 = vadd.f32 0.0, %v2328
    %v2330 = vpop.f32.mrf.mxu0
    %2331 = vmatprep.mubr.f32.mxu0 0.0
    %2332 = vmatmul.mubr.f32.gmra.mxu0 %v2083
    %v2333 = vpop.f32.mrf.mxu0
    %v2334 = vadd.f32 0.0, %v2333
    %v2335 = vpop.f32.mrf.mxu0
    %2336 = vmatprep.mubr.f32.mxu0 0.0
    %2337 = vmatmul.mubr.f32.gmra.mxu0 %v2084
    %v2338 = vpop.f32.mrf.mxu0
    %v2339 = vadd.f32 0.0, %v2338
    %v2340 = vpop.f32.mrf.mxu0
    %2341 = vmatprep.mubr.f32.mxu0 0.0
    %2342 = vmatmul.mubr.f32.gmra.mxu0 %v2085
    %v2343 = vpop.f32.mrf.mxu0
    %v2344 = vadd.f32 0.0, %v2343
    %v2345 = vpop.f32.mrf.mxu0
    %2346 = vmatprep.mubr.f32.mxu0 0.0
    %2347 = vmatmul.mubr.f32.gmra.mxu0 %v2086
    %v2348 = vpop.f32.mrf.mxu0
    %v2349 = vadd.f32 0.0, %v2348
    %v2350 = vpop.f32.mrf.mxu0
    %2351 = vmatprep.mubr.f32.mxu0 0.0
    %2352 = vmatmul.mubr.f32.gmra.mxu0 %v2087
    %v2353 = vpop.f32.mrf.mxu0
    %v2354 = vadd.f32 0.0, %v2353
    %v2355 = vpop.f32.mrf.mxu0
    %2356 = vmatprep.mubr.f32.mxu0 0.0
    %2357 = vmatmul.mubr.f32.gmra.mxu0 %v2088
    %v2358 = vpop.f32.mrf.mxu0
    %v2359 = vadd.f32 0.0, %v2358
    %v2360 = vpop.f32.mrf.mxu0
    %2361 = vmatprep.mubr.f32.mxu0 0.0
    %2362 = vmatmul.mubr.f32.gmra.mxu0 %v2089
    %v2363 = vpop.f32.mrf.mxu0
    %v2364 = vadd.f32 0.0, %v2363
    %v2365 = vpop.f32.mrf.mxu0
    %2366 = vmatprep.mubr.f32.mxu0 0.0
    %2367 = vmatmul.mubr.f32.gmra.mxu0 %v2090
    %v2368 = vpop.f32.mrf.mxu0
    %v2369 = vadd.f32 0.0, %v2368
    %v2370 = vpop.f32.mrf.mxu0
    %2371 = vmatprep.mubr.f32.mxu0 0.0
    %2372 = vmatmul.mubr.f32.gmra.mxu0 %v2091
    %v2373 = vpop.f32.mrf.mxu0
    %v2374 = vadd.f32 0.0, %v2373
    %v2375 = vpop.f32.mrf.mxu0
    %2376 = vmatprep.mubr.f32.mxu0 0.0
    %2377 = vmatmul.mubr.f32.gmra.mxu0 %v2092
    %v2378 = vpop.f32.mrf.mxu0
    %v2379 = vadd.f32 0.0, %v2378
    %v2380 = vpop.f32.mrf.mxu0
    %2381 = vmatprep.mubr.f32.mxu0 0.0
    %2382 = vmatmul.mubr.f32.gmra.mxu0 %v2093
    %v2383 = vpop.f32.mrf.mxu0
    %v2384 = vadd.f32 0.0, %v2383
    %v2385 = vpop.f32.mrf.mxu0
    %2386 = vmatprep.mubr.f32.mxu0 0.0
    %2387 = vmatmul.mubr.f32.gmra.mxu0 %v2094
    %v2388 = vpop.f32.mrf.mxu0
    %v2389 = vadd.f32 0.0, %v2388
    %v2390 = vpop.f32.mrf.mxu0
    %2391 = vdwg.mxu0
    %vm2392 = vcmask 523264
    %v2394 = vsel %vm2392, %v2207, 0
    %v2397 = vsel %vm2392, %v2208, 0
    %v2400 = vsel %vm2392, %v2209, 0
    %v2403 = vsel %vm2392, %v2210, 0
    %v2406 = vsel %vm2392, %v2211, 0
    %v2409 = vsel %vm2392, %v2212, 0
    %v2412 = vsel %vm2392, %v2213, 0
    %v2415 = vsel %vm2392, %v2214, 0
    %v2418 = vsel %vm2392, %v2215, 0
    %v2421 = vsel %vm2392, %v2216, 0
    %v2424 = vsel %vm2392, %v2217, 0
    %v2427 = vsel %vm2392, %v2218, 0
    %v2430 = vsel %vm2392, %v2219, 0
    %v2433 = vsel %vm2392, %v2220, 0
    %v2436 = vsel %vm2392, %v2221, 0
    %v2439 = vsel %vm2392, %v2222, 0
    %2441 = vmatprep.subr.mxu0 0.0
    %2442 = vmatpush1.msra.mxu0 0.0
    %2443 = vmatprep.subr.mxu0 0.0
    %2444 = vmatpush1.msra.mxu0 0.0
    %2445 = vmatprep.subr.mxu0 0.0
    %2446 = vmatpush1.msra.mxu0 0.0
    %2447 = vmatprep.subr.mxu0 0.0
    %2448 = vmatpush1.msra.mxu0 0.0
    %2449 = vmatprep.subr.mxu0 0.0
    %2450 = vmatpush1.msra.mxu0 0.0
    %2451 = vmatprep.subr.mxu0 0.0
    %2452 = vmatpush1.msra.mxu0 0.0
    %2453 = vmatprep.subr.mxu0 0.0
    %2454 = vmatpush1.msra.mxu0 0.0
    %2455 = vmatprep.subr.mxu0 0.0
    %2456 = vmatpush1.msra.mxu0 0.0
    %2457 = vmatprep.subr.mxu0 0.0
    %2458 = vmatpush1.msra.mxu0 %v2230
    %2459 = vmatprep.subr.mxu0 0.0
    %2460 = vmatpush1.msra.mxu0 %v2229
    %2461 = vmatprep.subr.mxu0 0.0
    %2462 = vmatpush1.msra.mxu0 %v2228
    %2463 = vmatprep.subr.mxu0 0.0
    %2464 = vmatpush1.msra.mxu0 %v2227
    %2465 = vmatprep.subr.mxu0 0.0
    %2466 = vmatpush1.msra.mxu0 %v2226
    %2467 = vmatprep.subr.mxu0 0.0
    %2468 = vmatpush1.msra.mxu0 %v2225
    %2469 = vmatprep.subr.mxu0 0.0
    %2470 = vmatpush1.msra.mxu0 %v2224
    %2471 = vmatprep.subr.mxu0 0.0
    %2472 = vmatpush1.msra.mxu0 %v2223
    %2473 = vmatprep.subr.mxu0 0.0
    %2474 = vmatpush2.msra.mxu0 0.0
    %2475 = vmatprep.subr.mxu0 0.0
    %2476 = vmatpush2.msra.mxu0 0.0
    %2477 = vmatprep.subr.mxu0 0.0
    %2478 = vmatpush2.msra.mxu0 0.0
    %2479 = vmatprep.subr.mxu0 0.0
    %2480 = vmatpush2.msra.mxu0 0.0
    %2481 = vmatprep.subr.mxu0 0.0
    %2482 = vmatpush2.msra.mxu0 0.0
    %2483 = vmatprep.subr.mxu0 0.0
    %2484 = vmatpush2.msra.mxu0 0.0
    %2485 = vmatprep.subr.mxu0 0.0
    %2486 = vmatpush2.msra.mxu0 0.0
    %2487 = vmatprep.subr.mxu0 0.0
    %2488 = vmatpush2.msra.mxu0 0.0
    %2489 = vmatprep.subr.mxu0 0.0
    %2490 = vmatpush2.msra.mxu0 0.0
    %2491 = vmatprep.subr.mxu0 0.0
    %2492 = vmatpush2.msra.mxu0 0.0
    %2493 = vmatprep.subr.mxu0 0.0
    %2494 = vmatpush2.msra.mxu0 0.0
    %2495 = vmatprep.subr.mxu0 0.0
    %2496 = vmatpush2.msra.mxu0 0.0
    %2497 = vmatprep.subr.mxu0 0.0
    %2498 = vmatpush2.msra.mxu0 0.0
    %2499 = vmatprep.subr.mxu0 0.0
    %2500 = vmatpush2.msra.mxu0 0.0
    %2501 = vmatprep.subr.mxu0 0.0
    %2502 = vmatpush2.msra.mxu0 0.0
    %2503 = vmatprep.subr.mxu0 0.0
    %2504 = vmatpush2.msra.mxu0 0.0
    %2505 = vmatprep.mubr.f32.mxu0 0.0
    %2506 = vmatmul.mubr.f32.gmra.mxu0 %v2394
    %v2507 = vpop.f32.mrf.mxu0
    %v2508 = vadd.f32 %v2314, %v2507
    %v2509 = vpop.f32.mrf.mxu0
    %2510 = vmatprep.mubr.f32.mxu0 0.0
    %2511 = vmatmul.mubr.f32.gmra.mxu0 %v2397
    %v2512 = vpop.f32.mrf.mxu0
    %v2513 = vadd.f32 %v2319, %v2512
    %v2514 = vpop.f32.mrf.mxu0
    %2515 = vmatprep.mubr.f32.mxu0 0.0
    %2516 = vmatmul.mubr.f32.gmra.mxu0 %v2400
    %v2517 = vpop.f32.mrf.mxu0
    %v2518 = vadd.f32 %v2324, %v2517
    %v2519 = vpop.f32.mrf.mxu0
    %2520 = vmatprep.mubr.f32.mxu0 0.0
    %2521 = vmatmul.mubr.f32.gmra.mxu0 %v2403
    %v2522 = vpop.f32.mrf.mxu0
    %v2523 = vadd.f32 %v2329, %v2522
    %v2524 = vpop.f32.mrf.mxu0
    %2525 = vmatprep.mubr.f32.mxu0 0.0
    %2526 = vmatmul.mubr.f32.gmra.mxu0 %v2406
    %v2527 = vpop.f32.mrf.mxu0
    %v2528 = vadd.f32 %v2334, %v2527
    %v2529 = vpop.f32.mrf.mxu0
    %2530 = vmatprep.mubr.f32.mxu0 0.0
    %2531 = vmatmul.mubr.f32.gmra.mxu0 %v2409
    %v2532 = vpop.f32.mrf.mxu0
    %v2533 = vadd.f32 %v2339, %v2532
    %v2534 = vpop.f32.mrf.mxu0
    %2535 = vmatprep.mubr.f32.mxu0 0.0
    %2536 = vmatmul.mubr.f32.gmra.mxu0 %v2412
    %v2537 = vpop.f32.mrf.mxu0
    %v2538 = vadd.f32 %v2344, %v2537
    %v2539 = vpop.f32.mrf.mxu0
    %2540 = vmatprep.mubr.f32.mxu0 0.0
    %2541 = vmatmul.mubr.f32.gmra.mxu0 %v2415
    %v2542 = vpop.f32.mrf.mxu0
    %v2543 = vadd.f32 %v2349, %v2542
    %v2544 = vpop.f32.mrf.mxu0
    %2545 = vmatprep.mubr.f32.mxu0 0.0
    %2546 = vmatmul.mubr.f32.gmra.mxu0 %v2418
    %v2547 = vpop.f32.mrf.mxu0
    %v2548 = vadd.f32 %v2354, %v2547
    %v2549 = vpop.f32.mrf.mxu0
    %2550 = vmatprep.mubr.f32.mxu0 0.0
    %2551 = vmatmul.mubr.f32.gmra.mxu0 %v2421
    %v2552 = vpop.f32.mrf.mxu0
    %v2553 = vadd.f32 %v2359, %v2552
    %v2554 = vpop.f32.mrf.mxu0
    %2555 = vmatprep.mubr.f32.mxu0 0.0
    %2556 = vmatmul.mubr.f32.gmra.mxu0 %v2424
    %v2557 = vpop.f32.mrf.mxu0
    %v2558 = vadd.f32 %v2364, %v2557
    %v2559 = vpop.f32.mrf.mxu0
    %2560 = vmatprep.mubr.f32.mxu0 0.0
    %2561 = vmatmul.mubr.f32.gmra.mxu0 %v2427
    %v2562 = vpop.f32.mrf.mxu0
    %v2563 = vadd.f32 %v2369, %v2562
    %v2564 = vpop.f32.mrf.mxu0
    %2565 = vmatprep.mubr.f32.mxu0 0.0
    %2566 = vmatmul.mubr.f32.gmra.mxu0 %v2430
    %v2567 = vpop.f32.mrf.mxu0
    %v2568 = vadd.f32 %v2374, %v2567
    %v2569 = vpop.f32.mrf.mxu0
    %2570 = vmatprep.mubr.f32.mxu0 0.0
    %2571 = vmatmul.mubr.f32.gmra.mxu0 %v2433
    %v2572 = vpop.f32.mrf.mxu0
    %v2573 = vadd.f32 %v2379, %v2572
    %v2574 = vpop.f32.mrf.mxu0
    %2575 = vmatprep.mubr.f32.mxu0 0.0
    %2576 = vmatmul.mubr.f32.gmra.mxu0 %v2436
    %v2577 = vpop.f32.mrf.mxu0
    %v2578 = vadd.f32 %v2384, %v2577
    %v2579 = vpop.f32.mrf.mxu0
    %2580 = vmatprep.mubr.f32.mxu0 0.0
    %2581 = vmatmul.mubr.f32.gmra.mxu0 %v2439
    %v2582 = vpop.f32.mrf.mxu0
    %v2583 = vadd.f32 %v2389, %v2582
    %v2584 = vpop.f32.mrf.mxu0
    %2585 = vdwg.mxu0
    %v2586 = vld [vmem:[#allocation8] sm:$0xff]
    %v2587 = vld [vmem:[#allocation8 + $0x8] sm:$0xff]
    %v2588 = vld [vmem:[#allocation8 + $0x10] sm:$0xff]
    %v2589 = vld [vmem:[#allocation8 + $0x18] sm:$0xff]
    %v2590 = vld [vmem:[#allocation8 + $0x20] sm:$0xff]
    %v2591 = vld [vmem:[#allocation8 + $0x28] sm:$0xff]
    %v2592 = vld [vmem:[#allocation8 + $0x30] sm:$0xff]
    %v2593 = vld [vmem:[#allocation8 + $0x38] sm:$0xff]
    %v2594 = vld [vmem:[#allocation8 + $0x40] sm:$0xff]
    %v2595 = vld [vmem:[#allocation8 + $0x48] sm:$0xff]
    %v2596 = vld [vmem:[#allocation8 + $0x50] sm:$0xff]
    %v2597 = vld [vmem:[#allocation8 + $0x58] sm:$0xff]
    %v2598 = vld [vmem:[#allocation8 + $0x60] sm:$0xff]
    %v2599 = vld [vmem:[#allocation8 + $0x68] sm:$0xff]
    %v2600 = vld [vmem:[#allocation8 + $0x70] sm:$0xff]
    %v2601 = vld [vmem:[#allocation8 + $0x78] sm:$0xff]
    %2602 = vmatprep.subr.mxu0 0.0
    %2603 = vmatpush1.msra.mxu0 %v2601
    %2604 = vmatprep.subr.mxu0 0.0
    %2605 = vmatpush1.msra.mxu0 %v2600
    %2606 = vmatprep.subr.mxu0 0.0
    %2607 = vmatpush1.msra.mxu0 %v2599
    %2608 = vmatprep.subr.mxu0 0.0
    %2609 = vmatpush1.msra.mxu0 %v2598
    %2610 = vmatprep.subr.mxu0 0.0
    %2611 = vmatpush1.msra.mxu0 %v2597
    %2612 = vmatprep.subr.mxu0 0.0
    %2613 = vmatpush1.msra.mxu0 %v2596
    %2614 = vmatprep.subr.mxu0 0.0
    %2615 = vmatpush1.msra.mxu0 %v2595
    %2616 = vmatprep.subr.mxu0 0.0
    %2617 = vmatpush1.msra.mxu0 %v2594
    %2618 = vmatprep.subr.mxu0 0.0
    %2619 = vmatpush1.msra.mxu0 %v2593
    %2620 = vmatprep.subr.mxu0 0.0
    %2621 = vmatpush1.msra.mxu0 %v2592
    %2622 = vmatprep.subr.mxu0 0.0
    %2623 = vmatpush1.msra.mxu0 %v2591
    %2624 = vmatprep.subr.mxu0 0.0
    %2625 = vmatpush1.msra.mxu0 %v2590
    %2626 = vmatprep.subr.mxu0 0.0
    %2627 = vmatpush1.msra.mxu0 %v2589
    %2628 = vmatprep.subr.mxu0 0.0
    %2629 = vmatpush1.msra.mxu0 %v2588
    %2630 = vmatprep.subr.mxu0 0.0
    %2631 = vmatpush1.msra.mxu0 %v2587
    %2632 = vmatprep.subr.mxu0 0.0
    %2633 = vmatpush1.msra.mxu0 %v2586
    %2634 = vmatprep.subr.mxu0 0.0
    %2635 = vmatpush2.msra.mxu0 0.0
    %2636 = vmatprep.subr.mxu0 0.0
    %2637 = vmatpush2.msra.mxu0 0.0
    %2638 = vmatprep.subr.mxu0 0.0
    %2639 = vmatpush2.msra.mxu0 0.0
    %2640 = vmatprep.subr.mxu0 0.0
    %2641 = vmatpush2.msra.mxu0 0.0
    %2642 = vmatprep.subr.mxu0 0.0
    %2643 = vmatpush2.msra.mxu0 0.0
    %2644 = vmatprep.subr.mxu0 0.0
    %2645 = vmatpush2.msra.mxu0 0.0
    %2646 = vmatprep.subr.mxu0 0.0
    %2647 = vmatpush2.msra.mxu0 0.0
    %2648 = vmatprep.subr.mxu0 0.0
    %2649 = vmatpush2.msra.mxu0 0.0
    %2650 = vmatprep.subr.mxu0 0.0
    %2651 = vmatpush2.msra.mxu0 0.0
    %2652 = vmatprep.subr.mxu0 0.0
    %2653 = vmatpush2.msra.mxu0 0.0
    %2654 = vmatprep.subr.mxu0 0.0
    %2655 = vmatpush2.msra.mxu0 0.0
    %2656 = vmatprep.subr.mxu0 0.0
    %2657 = vmatpush2.msra.mxu0 0.0
    %2658 = vmatprep.subr.mxu0 0.0
    %2659 = vmatpush2.msra.mxu0 0.0
    %2660 = vmatprep.subr.mxu0 0.0
    %2661 = vmatpush2.msra.mxu0 0.0
    %2662 = vmatprep.subr.mxu0 0.0
    %2663 = vmatpush2.msra.mxu0 0.0
    %2664 = vmatprep.subr.mxu0 0.0
    %2665 = vmatpush2.msra.mxu0 0.0
    %2666 = vmatprep.mubr.f32.mxu0 0.0
    %2667 = vmatmul.mubr.f32.gmra.mxu0 %v2191
    %v2668 = vpop.f32.mrf.mxu0
    %v2669 = vadd.f32 0.0, %v2668
    %v2670 = vpop.f32.mrf.mxu0
    %2671 = vmatprep.mubr.f32.mxu0 0.0
    %2672 = vmatmul.mubr.f32.gmra.mxu0 %v2192
    %v2673 = vpop.f32.mrf.mxu0
    %v2674 = vadd.f32 0.0, %v2673
    %v2675 = vpop.f32.mrf.mxu0
    %2676 = vmatprep.mubr.f32.mxu0 0.0
    %2677 = vmatmul.mubr.f32.gmra.mxu0 %v2193
    %v2678 = vpop.f32.mrf.mxu0
    %v2679 = vadd.f32 0.0, %v2678
    %v2680 = vpop.f32.mrf.mxu0
    %2681 = vmatprep.mubr.f32.mxu0 0.0
    %2682 = vmatmul.mubr.f32.gmra.mxu0 %v2194
    %v2683 = vpop.f32.mrf.mxu0
    %v2684 = vadd.f32 0.0, %v2683
    %v2685 = vpop.f32.mrf.mxu0
    %2686 = vmatprep.mubr.f32.mxu0 0.0
    %2687 = vmatmul.mubr.f32.gmra.mxu0 %v2195
    %v2688 = vpop.f32.mrf.mxu0
    %v2689 = vadd.f32 0.0, %v2688
    %v2690 = vpop.f32.mrf.mxu0
    %2691 = vmatprep.mubr.f32.mxu0 0.0
    %2692 = vmatmul.mubr.f32.gmra.mxu0 %v2196
    %v2693 = vpop.f32.mrf.mxu0
    %v2694 = vadd.f32 0.0, %v2693
    %v2695 = vpop.f32.mrf.mxu0
    %2696 = vmatprep.mubr.f32.mxu0 0.0
    %2697 = vmatmul.mubr.f32.gmra.mxu0 %v2197
    %v2698 = vpop.f32.mrf.mxu0
    %v2699 = vadd.f32 0.0, %v2698
    %v2700 = vpop.f32.mrf.mxu0
    %2701 = vmatprep.mubr.f32.mxu0 0.0
    %2702 = vmatmul.mubr.f32.gmra.mxu0 %v2198
    %v2703 = vpop.f32.mrf.mxu0
    %v2704 = vadd.f32 0.0, %v2703
    %v2705 = vpop.f32.mrf.mxu0
    %2706 = vmatprep.mubr.f32.mxu0 0.0
    %2707 = vmatmul.mubr.f32.gmra.mxu0 %v2199
    %v2708 = vpop.f32.mrf.mxu0
    %v2709 = vadd.f32 0.0, %v2708
    %v2710 = vpop.f32.mrf.mxu0
    %2711 = vmatprep.mubr.f32.mxu0 0.0
    %2712 = vmatmul.mubr.f32.gmra.mxu0 %v2200
    %v2713 = vpop.f32.mrf.mxu0
    %v2714 = vadd.f32 0.0, %v2713
    %v2715 = vpop.f32.mrf.mxu0
    %2716 = vmatprep.mubr.f32.mxu0 0.0
    %2717 = vmatmul.mubr.f32.gmra.mxu0 %v2201
    %v2718 = vpop.f32.mrf.mxu0
    %v2719 = vadd.f32 0.0, %v2718
    %v2720 = vpop.f32.mrf.mxu0
    %2721 = vmatprep.mubr.f32.mxu0 0.0
    %2722 = vmatmul.mubr.f32.gmra.mxu0 %v2202
    %v2723 = vpop.f32.mrf.mxu0
    %v2724 = vadd.f32 0.0, %v2723
    %v2725 = vpop.f32.mrf.mxu0
    %2726 = vmatprep.mubr.f32.mxu0 0.0
    %2727 = vmatmul.mubr.f32.gmra.mxu0 %v2203
    %v2728 = vpop.f32.mrf.mxu0
    %v2729 = vadd.f32 0.0, %v2728
    %v2730 = vpop.f32.mrf.mxu0
    %2731 = vmatprep.mubr.f32.mxu0 0.0
    %2732 = vmatmul.mubr.f32.gmra.mxu0 %v2204
    %v2733 = vpop.f32.mrf.mxu0
    %v2734 = vadd.f32 0.0, %v2733
    %v2735 = vpop.f32.mrf.mxu0
    %2736 = vmatprep.mubr.f32.mxu0 0.0
    %2737 = vmatmul.mubr.f32.gmra.mxu0 %v2205
    %v2738 = vpop.f32.mrf.mxu0
    %v2739 = vadd.f32 0.0, %v2738
    %v2740 = vpop.f32.mrf.mxu0
    %2741 = vmatprep.mubr.f32.mxu0 0.0
    %2742 = vmatmul.mubr.f32.gmra.mxu0 %v2206
    %v2743 = vpop.f32.mrf.mxu0
    %v2744 = vadd.f32 0.0, %v2743
    %v2745 = vpop.f32.mrf.mxu0
    %2746 = vdwg.mxu0
    %v2747 = vadd.f32 %v2508, %v2669
    %v2748 = vadd.f32 %v2513, %v2674
    %v2749 = vadd.f32 %v2518, %v2679
    %v2750 = vadd.f32 %v2523, %v2684
    %v2751 = vadd.f32 %v2528, %v2689
    %v2752 = vadd.f32 %v2533, %v2694
    %v2753 = vadd.f32 %v2538, %v2699
    %v2754 = vadd.f32 %v2543, %v2704
    %v2755 = vadd.f32 %v2548, %v2709
    %v2756 = vadd.f32 %v2553, %v2714
    %v2757 = vadd.f32 %v2558, %v2719
    %v2758 = vadd.f32 %v2563, %v2724
    %v2759 = vadd.f32 %v2568, %v2729
    %v2760 = vadd.f32 %v2573, %v2734
    %v2761 = vadd.f32 %v2578, %v2739
    %v2762 = vadd.f32 %v2583, %v2744
    %v2763 = vld [vmem:[%s11] sm:$0x1]
    %v2765 = vlaneseq
    %v2766 = vshrl.u32 %v2765, 7
    %v2767 = vsub.s32 0, %v2766
    %v2768 = vrot.slane %v2763, %v2767
    %v2770 = vadd.f32 %v2747, %v2768
    %v2771 = vadd.f32 %v2748, %v2768
    %v2772 = vadd.f32 %v2749, %v2768
    %v2773 = vadd.f32 %v2750, %v2768
    %v2774 = vadd.f32 %v2751, %v2768
    %v2775 = vadd.f32 %v2752, %v2768
    %v2776 = vadd.f32 %v2753, %v2768
    %v2777 = vadd.f32 %v2754, %v2768
    %v2778 = vadd.f32 %v2755, %v2768
    %v2779 = vadd.f32 %v2756, %v2768
    %v2780 = vadd.f32 %v2757, %v2768
    %v2781 = vadd.f32 %v2758, %v2768
    %v2782 = vadd.f32 %v2759, %v2768
    %v2783 = vadd.f32 %v2760, %v2768
    %v2784 = vadd.f32 %v2761, %v2768
    %v2785 = vadd.f32 %v2762, %v2768
    %v2786 = vld [vmem:[%s12] sm:$0xff]
    %v2787 = vld [vmem:[%s12 + $0x8] sm:$0xff]
    %v2788 = vld [vmem:[%s12 + $0x10] sm:$0xff]
    %v2789 = vld [vmem:[%s12 + $0x18] sm:$0xff]
    %v2790 = vld [vmem:[%s12 + $0x20] sm:$0xff]
    %v2791 = vld [vmem:[%s12 + $0x28] sm:$0xff]
    %v2792 = vld [vmem:[%s12 + $0x30] sm:$0xff]
    %v2793 = vld [vmem:[%s12 + $0x38] sm:$0xff]
    %v2794 = vld [vmem:[%s12 + $0x40] sm:$0xff]
    %v2795 = vld [vmem:[%s12 + $0x48] sm:$0xff]
    %v2796 = vld [vmem:[%s12 + $0x50] sm:$0xff]
    %v2797 = vld [vmem:[%s12 + $0x58] sm:$0xff]
    %v2798 = vld [vmem:[%s12 + $0x60] sm:$0xff]
    %v2799 = vld [vmem:[%s12 + $0x68] sm:$0xff]
    %v2800 = vld [vmem:[%s12 + $0x70] sm:$0xff]
    %v2801 = vld [vmem:[%s12 + $0x78] sm:$0xff]
    %v2802 = vld [vmem:[%s12 + $0x80] sm:$0xff]
    %v2803 = vld [vmem:[%s12 + $0x88] sm:$0xff]
    %v2804 = vld [vmem:[%s12 + $0x90] sm:$0xff]
    %v2805 = vld [vmem:[%s12 + $0x98] sm:$0xff]
    %v2806 = vld [vmem:[%s12 + $0xa0] sm:$0xff]
    %v2807 = vld [vmem:[%s12 + $0xa8] sm:$0xff]
    %v2808 = vld [vmem:[%s12 + $0xb0] sm:$0xff]
    %v2809 = vld [vmem:[%s12 + $0xb8] sm:$0xff]
    %v2810 = vld [vmem:[%s12 + $0xc0] sm:$0xff]
    %v2811 = vld [vmem:[%s12 + $0xc8] sm:$0xff]
    %v2812 = vld [vmem:[%s12 + $0xd0] sm:$0xff]
    %v2813 = vld [vmem:[%s12 + $0xd8] sm:$0xff]
    %v2814 = vld [vmem:[%s12 + $0xe0] sm:$0xff]
    %v2815 = vld [vmem:[%s12 + $0xe8] sm:$0xff]
    %v2816 = vld [vmem:[%s12 + $0xf0] sm:$0xff]
    %v2817 = vld [vmem:[%s12 + $0xf8] sm:$0xff]
    %v2818 = vld [vmem:[%s13] sm:$0x3]
    %v2820 = vlaneseq
    %v2821 = vshrl.u32 %v2820, 7
    %v2822 = vsub.s32 0, %v2821
    %v2823 = vrot.slane %v2818, %v2822
    %v2824 = vlaneseq
    %v2825 = vshrl.u32 %v2824, 7
    %v2826 = vsub.s32 1, %v2825
    %v2827 = vrot.slane %v2818, %v2826
    %2830 = vmatprep.subr.mxu0 %v2817
    %2831 = vmatpush1.msra.mxu0 %v2816
    %2832 = vmatprep.subr.mxu0 %v2815
    %2833 = vmatpush1.msra.mxu0 %v2814
    %2834 = vmatprep.subr.mxu0 %v2813
    %2835 = vmatpush1.msra.mxu0 %v2812
    %2836 = vmatprep.subr.mxu0 %v2811
    %2837 = vmatpush1.msra.mxu0 %v2810
    %2838 = vmatprep.subr.mxu0 %v2809
    %2839 = vmatpush1.msra.mxu0 %v2808
    %2840 = vmatprep.subr.mxu0 %v2807
    %2841 = vmatpush1.msra.mxu0 %v2806
    %2842 = vmatprep.subr.mxu0 %v2805
    %2843 = vmatpush1.msra.mxu0 %v2804
    %2844 = vmatprep.subr.mxu0 %v2803
    %2845 = vmatpush1.msra.mxu0 %v2802
    %2846 = vmatprep.subr.mxu0 %v2801
    %2847 = vmatpush1.msra.mxu0 %v2800
    %2848 = vmatprep.subr.mxu0 %v2799
    %2849 = vmatpush1.msra.mxu0 %v2798
    %2850 = vmatprep.subr.mxu0 %v2797
    %2851 = vmatpush1.msra.mxu0 %v2796
    %2852 = vmatprep.subr.mxu0 %v2795
    %2853 = vmatpush1.msra.mxu0 %v2794
    %2854 = vmatprep.subr.mxu0 %v2793
    %2855 = vmatpush1.msra.mxu0 %v2792
    %2856 = vmatprep.subr.mxu0 %v2791
    %2857 = vmatpush1.msra.mxu0 %v2790
    %2858 = vmatprep.subr.mxu0 %v2789
    %2859 = vmatpush1.msra.mxu0 %v2788
    %2860 = vmatprep.subr.mxu0 %v2787
    %2861 = vmatpush1.msra.mxu0 %v2786
    %2862 = vmatprep.subr.mxu0 0.0
    %2863 = vmatpush2.msra.mxu0 0.0
    %2864 = vmatprep.subr.mxu0 0.0
    %2865 = vmatpush2.msra.mxu0 0.0
    %2866 = vmatprep.subr.mxu0 0.0
    %2867 = vmatpush2.msra.mxu0 0.0
    %2868 = vmatprep.subr.mxu0 0.0
    %2869 = vmatpush2.msra.mxu0 0.0
    %2870 = vmatprep.subr.mxu0 0.0
    %2871 = vmatpush2.msra.mxu0 0.0
    %2872 = vmatprep.subr.mxu0 0.0
    %2873 = vmatpush2.msra.mxu0 0.0
    %2874 = vmatprep.subr.mxu0 0.0
    %2875 = vmatpush2.msra.mxu0 0.0
    %2876 = vmatprep.subr.mxu0 0.0
    %2877 = vmatpush2.msra.mxu0 0.0
    %2878 = vmatprep.subr.mxu0 0.0
    %2879 = vmatpush2.msra.mxu0 0.0
    %2880 = vmatprep.subr.mxu0 0.0
    %2881 = vmatpush2.msra.mxu0 0.0
    %2882 = vmatprep.subr.mxu0 0.0
    %2883 = vmatpush2.msra.mxu0 0.0
    %2884 = vmatprep.subr.mxu0 0.0
    %2885 = vmatpush2.msra.mxu0 0.0
    %2886 = vmatprep.subr.mxu0 0.0
    %2887 = vmatpush2.msra.mxu0 0.0
    %2888 = vmatprep.subr.mxu0 0.0
    %2889 = vmatpush2.msra.mxu0 0.0
    %2890 = vmatprep.subr.mxu0 0.0
    %2891 = vmatpush2.msra.mxu0 0.0
    %2892 = vmatprep.subr.mxu0 0.0
    %2893 = vmatpush2.msra.mxu0 0.0
    %2894 = vmatprep.mubr.f32.mxu0 0.0
    %2895 = vmatmul.mubr.f32.gmra.mxu0 %v2770
    %v2896 = vpop.f32.mrf.mxu0
    %v2897 = vadd.f32 %v2823, %v2896
    %v2898 = vpop.f32.mrf.mxu0
    %v2899 = vadd.f32 %v2827, %v2898
    %2900 = vmatprep.mubr.f32.mxu0 0.0
    %2901 = vmatmul.mubr.f32.gmra.mxu0 %v2771
    %v2902 = vpop.f32.mrf.mxu0
    %v2903 = vadd.f32 %v2823, %v2902
    %v2904 = vpop.f32.mrf.mxu0
    %v2905 = vadd.f32 %v2827, %v2904
    %2906 = vmatprep.mubr.f32.mxu0 0.0
    %2907 = vmatmul.mubr.f32.gmra.mxu0 %v2772
    %v2908 = vpop.f32.mrf.mxu0
    %v2909 = vadd.f32 %v2823, %v2908
    %v2910 = vpop.f32.mrf.mxu0
    %v2911 = vadd.f32 %v2827, %v2910
    %2912 = vmatprep.mubr.f32.mxu0 0.0
    %2913 = vmatmul.mubr.f32.gmra.mxu0 %v2773
    %v2914 = vpop.f32.mrf.mxu0
    %v2915 = vadd.f32 %v2823, %v2914
    %v2916 = vpop.f32.mrf.mxu0
    %v2917 = vadd.f32 %v2827, %v2916
    %2918 = vmatprep.mubr.f32.mxu0 0.0
    %2919 = vmatmul.mubr.f32.gmra.mxu0 %v2774
    %v2920 = vpop.f32.mrf.mxu0
    %v2921 = vadd.f32 %v2823, %v2920
    %v2922 = vpop.f32.mrf.mxu0
    %v2923 = vadd.f32 %v2827, %v2922
    %2924 = vmatprep.mubr.f32.mxu0 0.0
    %2925 = vmatmul.mubr.f32.gmra.mxu0 %v2775
    %v2926 = vpop.f32.mrf.mxu0
    %v2927 = vadd.f32 %v2823, %v2926
    %v2928 = vpop.f32.mrf.mxu0
    %v2929 = vadd.f32 %v2827, %v2928
    %2930 = vmatprep.mubr.f32.mxu0 0.0
    %2931 = vmatmul.mubr.f32.gmra.mxu0 %v2776
    %v2932 = vpop.f32.mrf.mxu0
    %v2933 = vadd.f32 %v2823, %v2932
    %v2934 = vpop.f32.mrf.mxu0
    %v2935 = vadd.f32 %v2827, %v2934
    %2936 = vmatprep.mubr.f32.mxu0 0.0
    %2937 = vmatmul.mubr.f32.gmra.mxu0 %v2777
    %v2938 = vpop.f32.mrf.mxu0
    %v2939 = vadd.f32 %v2823, %v2938
    %v2940 = vpop.f32.mrf.mxu0
    %v2941 = vadd.f32 %v2827, %v2940
    %2942 = vmatprep.mubr.f32.mxu0 0.0
    %2943 = vmatmul.mubr.f32.gmra.mxu0 %v2778
    %v2944 = vpop.f32.mrf.mxu0
    %v2945 = vadd.f32 %v2823, %v2944
    %v2946 = vpop.f32.mrf.mxu0
    %v2947 = vadd.f32 %v2827, %v2946
    %2948 = vmatprep.mubr.f32.mxu0 0.0
    %2949 = vmatmul.mubr.f32.gmra.mxu0 %v2779
    %v2950 = vpop.f32.mrf.mxu0
    %v2951 = vadd.f32 %v2823, %v2950
    %v2952 = vpop.f32.mrf.mxu0
    %v2953 = vadd.f32 %v2827, %v2952
    %2954 = vmatprep.mubr.f32.mxu0 0.0
    %2955 = vmatmul.mubr.f32.gmra.mxu0 %v2780
    %v2956 = vpop.f32.mrf.mxu0
    %v2957 = vadd.f32 %v2823, %v2956
    %v2958 = vpop.f32.mrf.mxu0
    %v2959 = vadd.f32 %v2827, %v2958
    %2960 = vmatprep.mubr.f32.mxu0 0.0
    %2961 = vmatmul.mubr.f32.gmra.mxu0 %v2781
    %v2962 = vpop.f32.mrf.mxu0
    %v2963 = vadd.f32 %v2823, %v2962
    %v2964 = vpop.f32.mrf.mxu0
    %v2965 = vadd.f32 %v2827, %v2964
    %2966 = vmatprep.mubr.f32.mxu0 0.0
    %2967 = vmatmul.mubr.f32.gmra.mxu0 %v2782
    %v2968 = vpop.f32.mrf.mxu0
    %v2969 = vadd.f32 %v2823, %v2968
    %v2970 = vpop.f32.mrf.mxu0
    %v2971 = vadd.f32 %v2827, %v2970
    %2972 = vmatprep.mubr.f32.mxu0 0.0
    %2973 = vmatmul.mubr.f32.gmra.mxu0 %v2783
    %v2974 = vpop.f32.mrf.mxu0
    %v2975 = vadd.f32 %v2823, %v2974
    %v2976 = vpop.f32.mrf.mxu0
    %v2977 = vadd.f32 %v2827, %v2976
    %2978 = vmatprep.mubr.f32.mxu0 0.0
    %2979 = vmatmul.mubr.f32.gmra.mxu0 %v2784
    %v2980 = vpop.f32.mrf.mxu0
    %v2981 = vadd.f32 %v2823, %v2980
    %v2982 = vpop.f32.mrf.mxu0
    %v2983 = vadd.f32 %v2827, %v2982
    %2984 = vmatprep.mubr.f32.mxu0 0.0
    %2985 = vmatmul.mubr.f32.gmra.mxu0 %v2785
    %v2986 = vpop.f32.mrf.mxu0
    %v2987 = vadd.f32 %v2823, %v2986
    %v2988 = vpop.f32.mrf.mxu0
    %v2989 = vadd.f32 %v2827, %v2988
    %2990 = vdwg.mxu0
    %v2991 = vxor.u32 %v2897, 2147483648
    %v2992 = vxor.u32 %v2903, 2147483648
    %v2993 = vxor.u32 %v2909, 2147483648
    %v2994 = vxor.u32 %v2915, 2147483648
    %v2995 = vxor.u32 %v2921, 2147483648
    %v2996 = vxor.u32 %v2927, 2147483648
    %v2997 = vxor.u32 %v2933, 2147483648
    %v2998 = vxor.u32 %v2939, 2147483648
    %v2999 = vxor.u32 %v2945, 2147483648
    %v3000 = vxor.u32 %v2951, 2147483648
    %v3001 = vxor.u32 %v2957, 2147483648
    %v3002 = vxor.u32 %v2963, 2147483648
    %v3003 = vxor.u32 %v2969, 2147483648
    %v3004 = vxor.u32 %v2975, 2147483648
    %v3005 = vxor.u32 %v2981, 2147483648
    %v3006 = vxor.u32 %v2987, 2147483648
    %v3007 = vmul.f32 %v2991, 1.442695
    %v3008 = vpow.pop %v3007
    %v3009 = vmul.f32 %v2992, 1.442695
    %v3010 = vpow.pop %v3009
    %v3011 = vmul.f32 %v2993, 1.442695
    %v3012 = vpow.pop %v3011
    %v3013 = vmul.f32 %v2994, 1.442695
    %v3014 = vpow.pop %v3013
    %v3015 = vmul.f32 %v2995, 1.442695
    %v3016 = vpow.pop %v3015
    %v3017 = vmul.f32 %v2996, 1.442695
    %v3018 = vpow.pop %v3017
    %v3019 = vmul.f32 %v2997, 1.442695
    %v3020 = vpow.pop %v3019
    %v3021 = vmul.f32 %v2998, 1.442695
    %v3022 = vpow.pop %v3021
    %v3023 = vmul.f32 %v2999, 1.442695
    %v3024 = vpow.pop %v3023
    %v3025 = vmul.f32 %v3000, 1.442695
    %v3026 = vpow.pop %v3025
    %v3027 = vmul.f32 %v3001, 1.442695
    %v3028 = vpow.pop %v3027
    %v3029 = vmul.f32 %v3002, 1.442695
    %v3030 = vpow.pop %v3029
    %v3031 = vmul.f32 %v3003, 1.442695
    %v3032 = vpow.pop %v3031
    %v3033 = vmul.f32 %v3004, 1.442695
    %v3034 = vpow.pop %v3033
    %v3035 = vmul.f32 %v3005, 1.442695
    %v3036 = vpow.pop %v3035
    %v3037 = vmul.f32 %v3006, 1.442695
    %v3038 = vpow.pop %v3037
    %v3039 = vadd.f32 %v3008, 1.0
    %v3040 = vadd.f32 %v3010, 1.0
    %v3041 = vadd.f32 %v3012, 1.0
    %v3042 = vadd.f32 %v3014, 1.0
    %v3043 = vadd.f32 %v3016, 1.0
    %v3044 = vadd.f32 %v3018, 1.0
    %v3045 = vadd.f32 %v3020, 1.0
    %v3046 = vadd.f32 %v3022, 1.0
    %v3047 = vadd.f32 %v3024, 1.0
    %v3048 = vadd.f32 %v3026, 1.0
    %v3049 = vadd.f32 %v3028, 1.0
    %v3050 = vadd.f32 %v3030, 1.0
    %v3051 = vadd.f32 %v3032, 1.0
    %v3052 = vadd.f32 %v3034, 1.0
    %v3053 = vadd.f32 %v3036, 1.0
    %v3054 = vadd.f32 %v3038, 1.0
    %v3055 = vrcp.pop %v3039
    %v3056 = vmul.f32 1.0, %v3055
    %v3057 = vrcp.pop %v3040
    %v3058 = vmul.f32 1.0, %v3057
    %v3059 = vrcp.pop %v3041
    %v3060 = vmul.f32 1.0, %v3059
    %v3061 = vrcp.pop %v3042
    %v3062 = vmul.f32 1.0, %v3061
    %v3063 = vrcp.pop %v3043
    %v3064 = vmul.f32 1.0, %v3063
    %v3065 = vrcp.pop %v3044
    %v3066 = vmul.f32 1.0, %v3065
    %v3067 = vrcp.pop %v3045
    %v3068 = vmul.f32 1.0, %v3067
    %v3069 = vrcp.pop %v3046
    %v3070 = vmul.f32 1.0, %v3069
    %v3071 = vrcp.pop %v3047
    %v3072 = vmul.f32 1.0, %v3071
    %v3073 = vrcp.pop %v3048
    %v3074 = vmul.f32 1.0, %v3073
    %v3075 = vrcp.pop %v3049
    %v3076 = vmul.f32 1.0, %v3075
    %v3077 = vrcp.pop %v3050
    %v3078 = vmul.f32 1.0, %v3077
    %v3079 = vrcp.pop %v3051
    %v3080 = vmul.f32 1.0, %v3079
    %v3081 = vrcp.pop %v3052
    %v3082 = vmul.f32 1.0, %v3081
    %v3083 = vrcp.pop %v3053
    %v3084 = vmul.f32 1.0, %v3083
    %v3085 = vrcp.pop %v3054
    %v3086 = vmul.f32 1.0, %v3085
    %v3087 = vmax.f32 %v2899, 0.0
    %v3088 = vmax.f32 %v2905, 0.0
    %v3089 = vmax.f32 %v2911, 0.0
    %v3090 = vmax.f32 %v2917, 0.0
    %v3091 = vmax.f32 %v2923, 0.0
    %v3092 = vmax.f32 %v2929, 0.0
    %v3093 = vmax.f32 %v2935, 0.0
    %v3094 = vmax.f32 %v2941, 0.0
    %v3095 = vmax.f32 %v2947, 0.0
    %v3096 = vmax.f32 %v2953, 0.0
    %v3097 = vmax.f32 %v2959, 0.0
    %v3098 = vmax.f32 %v2965, 0.0
    %v3099 = vmax.f32 %v2971, 0.0
    %v3100 = vmax.f32 %v2977, 0.0
    %v3101 = vmax.f32 %v2983, 0.0
    %v3102 = vmax.f32 %v2989, 0.0
    %v3103 = vmul.f32 %v3056, %v3087
    %v3104 = vmul.f32 %v3058, %v3088
    %v3105 = vmul.f32 %v3060, %v3089
    %v3106 = vmul.f32 %v3062, %v3090
    %v3107 = vmul.f32 %v3064, %v3091
    %v3108 = vmul.f32 %v3066, %v3092
    %v3109 = vmul.f32 %v3068, %v3093
    %v3110 = vmul.f32 %v3070, %v3094
    %v3111 = vmul.f32 %v3072, %v3095
    %v3112 = vmul.f32 %v3074, %v3096
    %v3113 = vmul.f32 %v3076, %v3097
    %v3114 = vmul.f32 %v3078, %v3098
    %v3115 = vmul.f32 %v3080, %v3099
    %v3116 = vmul.f32 %v3082, %v3100
    %v3117 = vmul.f32 %v3084, %v3101
    %v3118 = vmul.f32 %v3086, %v3102
    %v3119 = vsub.f32 1.0, %v3056
    %v3120 = vsub.f32 1.0, %v3058
    %v3121 = vsub.f32 1.0, %v3060
    %v3122 = vsub.f32 1.0, %v3062
    %v3123 = vsub.f32 1.0, %v3064
    %v3124 = vsub.f32 1.0, %v3066
    %v3125 = vsub.f32 1.0, %v3068
    %v3126 = vsub.f32 1.0, %v3070
    %v3127 = vsub.f32 1.0, %v3072
    %v3128 = vsub.f32 1.0, %v3074
    %v3129 = vsub.f32 1.0, %v3076
    %v3130 = vsub.f32 1.0, %v3078
    %v3131 = vsub.f32 1.0, %v3080
    %v3132 = vsub.f32 1.0, %v3082
    %v3133 = vsub.f32 1.0, %v3084
    %v3134 = vsub.f32 1.0, %v3086
    %v3135 = vmul.f32 %v3119, %v2770
    %v3136 = vmul.f32 %v3120, %v2771
    %v3137 = vmul.f32 %v3121, %v2772
    %v3138 = vmul.f32 %v3122, %v2773
    %v3139 = vmul.f32 %v3123, %v2774
    %v3140 = vmul.f32 %v3124, %v2775
    %v3141 = vmul.f32 %v3125, %v2776
    %v3142 = vmul.f32 %v3126, %v2777
    %v3143 = vmul.f32 %v3127, %v2778
    %v3144 = vmul.f32 %v3128, %v2779
    %v3145 = vmul.f32 %v3129, %v2780
    %v3146 = vmul.f32 %v3130, %v2781
    %v3147 = vmul.f32 %v3131, %v2782
    %v3148 = vmul.f32 %v3132, %v2783
    %v3149 = vmul.f32 %v3133, %v2784
    %v3150 = vmul.f32 %v3134, %v2785
    %v3151 = vadd.f32 %v3103, %v3135
    %v3152 = vadd.f32 %v3104, %v3136
    %v3153 = vadd.f32 %v3105, %v3137
    %v3154 = vadd.f32 %v3106, %v3138
    %v3155 = vadd.f32 %v3107, %v3139
    %v3156 = vadd.f32 %v3108, %v3140
    %v3157 = vadd.f32 %v3109, %v3141
    %v3158 = vadd.f32 %v3110, %v3142
    %v3159 = vadd.f32 %v3111, %v3143
    %v3160 = vadd.f32 %v3112, %v3144
    %v3161 = vadd.f32 %v3113, %v3145
    %v3162 = vadd.f32 %v3114, %v3146
    %v3163 = vadd.f32 %v3115, %v3147
    %v3164 = vadd.f32 %v3116, %v3148
    %v3165 = vadd.f32 %v3117, %v3149
    %v3166 = vadd.f32 %v3118, %v3150
    %v3167 = vld [vmem:[#allocation10] sm:$0xff]
    %v3168 = vld [vmem:[#allocation10 + $0x8] sm:$0xff]
    %v3169 = vld [vmem:[#allocation10 + $0x10] sm:$0xff]
    %v3170 = vld [vmem:[#allocation10 + $0x18] sm:$0xff]
    %v3171 = vld [vmem:[#allocation10 + $0x20] sm:$0xff]
    %v3172 = vld [vmem:[#allocation10 + $0x28] sm:$0xff]
    %v3173 = vld [vmem:[#allocation10 + $0x30] sm:$0xff]
    %v3174 = vld [vmem:[#allocation10 + $0x38] sm:$0xff]
    %v3175 = vld [vmem:[#allocation10 + $0x40] sm:$0xff]
    %v3176 = vld [vmem:[#allocation10 + $0x48] sm:$0xff]
    %v3177 = vld [vmem:[#allocation10 + $0x50] sm:$0xff]
    %v3178 = vld [vmem:[#allocation10 + $0x58] sm:$0xff]
    %v3179 = vld [vmem:[#allocation10 + $0x60] sm:$0xff]
    %v3180 = vld [vmem:[#allocation10 + $0x68] sm:$0xff]
    %v3181 = vld [vmem:[#allocation10 + $0x70] sm:$0xff]
    %v3182 = vld [vmem:[#allocation10 + $0x78] sm:$0xff]
    %v3183 = vld [vmem:[#allocation10 + $0x80] sm:$0xff]
    %v3184 = vld [vmem:[#allocation10 + $0x88] sm:$0xff]
    %v3185 = vld [vmem:[#allocation10 + $0x90] sm:$0xff]
    %v3186 = vld [vmem:[#allocation10 + $0x98] sm:$0xff]
    %v3187 = vld [vmem:[#allocation10 + $0xa0] sm:$0xff]
    %v3188 = vld [vmem:[#allocation10 + $0xa8] sm:$0xff]
    %v3189 = vld [vmem:[#allocation10 + $0xb0] sm:$0xff]
    %v3190 = vld [vmem:[#allocation10 + $0xb8] sm:$0xff]
    %v3191 = vld [vmem:[#allocation10 + $0xc0] sm:$0xff]
    %v3192 = vld [vmem:[#allocation10 + $0xc8] sm:$0xff]
    %v3193 = vld [vmem:[#allocation10 + $0xd0] sm:$0xff]
    %v3194 = vld [vmem:[#allocation10 + $0xd8] sm:$0xff]
    %v3195 = vld [vmem:[#allocation10 + $0xe0] sm:$0xff]
    %v3196 = vld [vmem:[#allocation10 + $0xe8] sm:$0xff]
    %v3197 = vld [vmem:[#allocation10 + $0xf0] sm:$0xff]
    %v3198 = vld [vmem:[#allocation10 + $0xf8] sm:$0xff]
    %v3199 = vld [vmem:[%s15] sm:$0x3]
    %v3201 = vlaneseq
    %v3202 = vshrl.u32 %v3201, 7
    %v3203 = vsub.s32 0, %v3202
    %v3204 = vrot.slane %v3199, %v3203
    %v3205 = vlaneseq
    %v3206 = vshrl.u32 %v3205, 7
    %v3207 = vsub.s32 1, %v3206
    %v3208 = vrot.slane %v3199, %v3207
    %3211 = vmatprep.subr.mxu0 %v3198
    %3212 = vmatpush1.msra.mxu0 %v3197
    %3213 = vmatprep.subr.mxu0 %v3196
    %3214 = vmatpush1.msra.mxu0 %v3195
    %3215 = vmatprep.subr.mxu0 %v3194
    %3216 = vmatpush1.msra.mxu0 %v3193
    %3217 = vmatprep.subr.mxu0 %v3192
    %3218 = vmatpush1.msra.mxu0 %v3191
    %3219 = vmatprep.subr.mxu0 %v3190
    %3220 = vmatpush1.msra.mxu0 %v3189
    %3221 = vmatprep.subr.mxu0 %v3188
    %3222 = vmatpush1.msra.mxu0 %v3187
    %3223 = vmatprep.subr.mxu0 %v3186
    %3224 = vmatpush1.msra.mxu0 %v3185
    %3225 = vmatprep.subr.mxu0 %v3184
    %3226 = vmatpush1.msra.mxu0 %v3183
    %3227 = vmatprep.subr.mxu0 %v3182
    %3228 = vmatpush1.msra.mxu0 %v3181
    %3229 = vmatprep.subr.mxu0 %v3180
    %3230 = vmatpush1.msra.mxu0 %v3179
    %3231 = vmatprep.subr.mxu0 %v3178
    %3232 = vmatpush1.msra.mxu0 %v3177
    %3233 = vmatprep.subr.mxu0 %v3176
    %3234 = vmatpush1.msra.mxu0 %v3175
    %3235 = vmatprep.subr.mxu0 %v3174
    %3236 = vmatpush1.msra.mxu0 %v3173
    %3237 = vmatprep.subr.mxu0 %v3172
    %3238 = vmatpush1.msra.mxu0 %v3171
    %3239 = vmatprep.subr.mxu0 %v3170
    %3240 = vmatpush1.msra.mxu0 %v3169
    %3241 = vmatprep.subr.mxu0 %v3168
    %3242 = vmatpush1.msra.mxu0 %v3167
    %3243 = vmatprep.subr.mxu0 0.0
    %3244 = vmatpush2.msra.mxu0 0.0
    %3245 = vmatprep.subr.mxu0 0.0
    %3246 = vmatpush2.msra.mxu0 0.0
    %3247 = vmatprep.subr.mxu0 0.0
    %3248 = vmatpush2.msra.mxu0 0.0
    %3249 = vmatprep.subr.mxu0 0.0
    %3250 = vmatpush2.msra.mxu0 0.0
    %3251 = vmatprep.subr.mxu0 0.0
    %3252 = vmatpush2.msra.mxu0 0.0
    %3253 = vmatprep.subr.mxu0 0.0
    %3254 = vmatpush2.msra.mxu0 0.0
    %3255 = vmatprep.subr.mxu0 0.0
    %3256 = vmatpush2.msra.mxu0 0.0
    %3257 = vmatprep.subr.mxu0 0.0
    %3258 = vmatpush2.msra.mxu0 0.0
    %3259 = vmatprep.subr.mxu0 0.0
    %3260 = vmatpush2.msra.mxu0 0.0
    %3261 = vmatprep.subr.mxu0 0.0
    %3262 = vmatpush2.msra.mxu0 0.0
    %3263 = vmatprep.subr.mxu0 0.0
    %3264 = vmatpush2.msra.mxu0 0.0
    %3265 = vmatprep.subr.mxu0 0.0
    %3266 = vmatpush2.msra.mxu0 0.0
    %3267 = vmatprep.subr.mxu0 0.0
    %3268 = vmatpush2.msra.mxu0 0.0
    %3269 = vmatprep.subr.mxu0 0.0
    %3270 = vmatpush2.msra.mxu0 0.0
    %3271 = vmatprep.subr.mxu0 0.0
    %3272 = vmatpush2.msra.mxu0 0.0
    %3273 = vmatprep.subr.mxu0 0.0
    %3274 = vmatpush2.msra.mxu0 0.0
    %3275 = vmatprep.mubr.f32.mxu0 0.0
    %3276 = vmatmul.mubr.f32.gmra.mxu0 %v3151
    %v3277 = vpop.f32.mrf.mxu0
    %v3278 = vadd.f32 %v3204, %v3277
    %v3279 = vpop.f32.mrf.mxu0
    %v3280 = vadd.f32 %v3208, %v3279
    %3281 = vmatprep.mubr.f32.mxu0 0.0
    %3282 = vmatmul.mubr.f32.gmra.mxu0 %v3152
    %v3283 = vpop.f32.mrf.mxu0
    %v3284 = vadd.f32 %v3204, %v3283
    %v3285 = vpop.f32.mrf.mxu0
    %v3286 = vadd.f32 %v3208, %v3285
    %3287 = vmatprep.mubr.f32.mxu0 0.0
    %3288 = vmatmul.mubr.f32.gmra.mxu0 %v3153
    %v3289 = vpop.f32.mrf.mxu0
    %v3290 = vadd.f32 %v3204, %v3289
    %v3291 = vpop.f32.mrf.mxu0
    %v3292 = vadd.f32 %v3208, %v3291
    %3293 = vmatprep.mubr.f32.mxu0 0.0
    %3294 = vmatmul.mubr.f32.gmra.mxu0 %v3154
    %v3295 = vpop.f32.mrf.mxu0
    %v3296 = vadd.f32 %v3204, %v3295
    %v3297 = vpop.f32.mrf.mxu0
    %v3298 = vadd.f32 %v3208, %v3297
    %3299 = vmatprep.mubr.f32.mxu0 0.0
    %3300 = vmatmul.mubr.f32.gmra.mxu0 %v3155
    %v3301 = vpop.f32.mrf.mxu0
    %v3302 = vadd.f32 %v3204, %v3301
    %v3303 = vpop.f32.mrf.mxu0
    %v3304 = vadd.f32 %v3208, %v3303
    %3305 = vmatprep.mubr.f32.mxu0 0.0
    %3306 = vmatmul.mubr.f32.gmra.mxu0 %v3156
    %v3307 = vpop.f32.mrf.mxu0
    %v3308 = vadd.f32 %v3204, %v3307
    %v3309 = vpop.f32.mrf.mxu0
    %v3310 = vadd.f32 %v3208, %v3309
    %3311 = vmatprep.mubr.f32.mxu0 0.0
    %3312 = vmatmul.mubr.f32.gmra.mxu0 %v3157
    %v3313 = vpop.f32.mrf.mxu0
    %v3314 = vadd.f32 %v3204, %v3313
    %v3315 = vpop.f32.mrf.mxu0
    %v3316 = vadd.f32 %v3208, %v3315
    %3317 = vmatprep.mubr.f32.mxu0 0.0
    %3318 = vmatmul.mubr.f32.gmra.mxu0 %v3158
    %v3319 = vpop.f32.mrf.mxu0
    %v3320 = vadd.f32 %v3204, %v3319
    %v3321 = vpop.f32.mrf.mxu0
    %v3322 = vadd.f32 %v3208, %v3321
    %3323 = vmatprep.mubr.f32.mxu0 0.0
    %3324 = vmatmul.mubr.f32.gmra.mxu0 %v3159
    %v3325 = vpop.f32.mrf.mxu0
    %v3326 = vadd.f32 %v3204, %v3325
    %v3327 = vpop.f32.mrf.mxu0
    %v3328 = vadd.f32 %v3208, %v3327
    %3329 = vmatprep.mubr.f32.mxu0 0.0
    %3330 = vmatmul.mubr.f32.gmra.mxu0 %v3160
    %v3331 = vpop.f32.mrf.mxu0
    %v3332 = vadd.f32 %v3204, %v3331
    %v3333 = vpop.f32.mrf.mxu0
    %v3334 = vadd.f32 %v3208, %v3333
    %3335 = vmatprep.mubr.f32.mxu0 0.0
    %3336 = vmatmul.mubr.f32.gmra.mxu0 %v3161
    %v3337 = vpop.f32.mrf.mxu0
    %v3338 = vadd.f32 %v3204, %v3337
    %v3339 = vpop.f32.mrf.mxu0
    %v3340 = vadd.f32 %v3208, %v3339
    %3341 = vmatprep.mubr.f32.mxu0 0.0
    %3342 = vmatmul.mubr.f32.gmra.mxu0 %v3162
    %v3343 = vpop.f32.mrf.mxu0
    %v3344 = vadd.f32 %v3204, %v3343
    %v3345 = vpop.f32.mrf.mxu0
    %v3346 = vadd.f32 %v3208, %v3345
    %3347 = vmatprep.mubr.f32.mxu0 0.0
    %3348 = vmatmul.mubr.f32.gmra.mxu0 %v3163
    %v3349 = vpop.f32.mrf.mxu0
    %v3350 = vadd.f32 %v3204, %v3349
    %v3351 = vpop.f32.mrf.mxu0
    %v3352 = vadd.f32 %v3208, %v3351
    %3353 = vmatprep.mubr.f32.mxu0 0.0
    %3354 = vmatmul.mubr.f32.gmra.mxu0 %v3164
    %v3355 = vpop.f32.mrf.mxu0
    %v3356 = vadd.f32 %v3204, %v3355
    %v3357 = vpop.f32.mrf.mxu0
    %v3358 = vadd.f32 %v3208, %v3357
    %3359 = vmatprep.mubr.f32.mxu0 0.0
    %3360 = vmatmul.mubr.f32.gmra.mxu0 %v3165
    %v3361 = vpop.f32.mrf.mxu0
    %v3362 = vadd.f32 %v3204, %v3361
    %v3363 = vpop.f32.mrf.mxu0
    %v3364 = vadd.f32 %v3208, %v3363
    %3365 = vmatprep.mubr.f32.mxu0 0.0
    %3366 = vmatmul.mubr.f32.gmra.mxu0 %v3166
    %v3367 = vpop.f32.mrf.mxu0
    %v3368 = vadd.f32 %v3204, %v3367
    %v3369 = vpop.f32.mrf.mxu0
    %v3370 = vadd.f32 %v3208, %v3369
    %3371 = vdwg.mxu0
    %v3372 = vxor.u32 %v3278, 2147483648
    %v3373 = vxor.u32 %v3284, 2147483648
    %v3374 = vxor.u32 %v3290, 2147483648
    %v3375 = vxor.u32 %v3296, 2147483648
    %v3376 = vxor.u32 %v3302, 2147483648
    %v3377 = vxor.u32 %v3308, 2147483648
    %v3378 = vxor.u32 %v3314, 2147483648
    %v3379 = vxor.u32 %v3320, 2147483648
    %v3380 = vxor.u32 %v3326, 2147483648
    %v3381 = vxor.u32 %v3332, 2147483648
    %v3382 = vxor.u32 %v3338, 2147483648
    %v3383 = vxor.u32 %v3344, 2147483648
    %v3384 = vxor.u32 %v3350, 2147483648
    %v3385 = vxor.u32 %v3356, 2147483648
    %v3386 = vxor.u32 %v3362, 2147483648
    %v3387 = vxor.u32 %v3368, 2147483648
    %v3388 = vmul.f32 %v3372, 1.442695
    %v3389 = vpow.pop %v3388
    %v3390 = vmul.f32 %v3373, 1.442695
    %v3391 = vpow.pop %v3390
    %v3392 = vmul.f32 %v3374, 1.442695
    %v3393 = vpow.pop %v3392
    %v3394 = vmul.f32 %v3375, 1.442695
    %v3395 = vpow.pop %v3394
    %v3396 = vmul.f32 %v3376, 1.442695
    %v3397 = vpow.pop %v3396
    %v3398 = vmul.f32 %v3377, 1.442695
    %v3399 = vpow.pop %v3398
    %v3400 = vmul.f32 %v3378, 1.442695
    %v3401 = vpow.pop %v3400
    %v3402 = vmul.f32 %v3379, 1.442695
    %v3403 = vpow.pop %v3402
    %v3404 = vmul.f32 %v3380, 1.442695
    %v3405 = vpow.pop %v3404
    %v3406 = vmul.f32 %v3381, 1.442695
    %v3407 = vpow.pop %v3406
    %v3408 = vmul.f32 %v3382, 1.442695
    %v3409 = vpow.pop %v3408
    %v3410 = vmul.f32 %v3383, 1.442695
    %v3411 = vpow.pop %v3410
    %v3412 = vmul.f32 %v3384, 1.442695
    %v3413 = vpow.pop %v3412
    %v3414 = vmul.f32 %v3385, 1.442695
    %v3415 = vpow.pop %v3414
    %v3416 = vmul.f32 %v3386, 1.442695
    %v3417 = vpow.pop %v3416
    %v3418 = vmul.f32 %v3387, 1.442695
    %v3419 = vpow.pop %v3418
    %v3420 = vadd.f32 %v3389, 1.0
    %v3421 = vadd.f32 %v3391, 1.0
    %v3422 = vadd.f32 %v3393, 1.0
    %v3423 = vadd.f32 %v3395, 1.0
    %v3424 = vadd.f32 %v3397, 1.0
    %v3425 = vadd.f32 %v3399, 1.0
    %v3426 = vadd.f32 %v3401, 1.0
    %v3427 = vadd.f32 %v3403, 1.0
    %v3428 = vadd.f32 %v3405, 1.0
    %v3429 = vadd.f32 %v3407, 1.0
    %v3430 = vadd.f32 %v3409, 1.0
    %v3431 = vadd.f32 %v3411, 1.0
    %v3432 = vadd.f32 %v3413, 1.0
    %v3433 = vadd.f32 %v3415, 1.0
    %v3434 = vadd.f32 %v3417, 1.0
    %v3435 = vadd.f32 %v3419, 1.0
    %v3436 = vrcp.pop %v3420
    %v3437 = vmul.f32 1.0, %v3436
    %v3438 = vrcp.pop %v3421
    %v3439 = vmul.f32 1.0, %v3438
    %v3440 = vrcp.pop %v3422
    %v3441 = vmul.f32 1.0, %v3440
    %v3442 = vrcp.pop %v3423
    %v3443 = vmul.f32 1.0, %v3442
    %v3444 = vrcp.pop %v3424
    %v3445 = vmul.f32 1.0, %v3444
    %v3446 = vrcp.pop %v3425
    %v3447 = vmul.f32 1.0, %v3446
    %v3448 = vrcp.pop %v3426
    %v3449 = vmul.f32 1.0, %v3448
    %v3450 = vrcp.pop %v3427
    %v3451 = vmul.f32 1.0, %v3450
    %v3452 = vrcp.pop %v3428
    %v3453 = vmul.f32 1.0, %v3452
    %v3454 = vrcp.pop %v3429
    %v3455 = vmul.f32 1.0, %v3454
    %v3456 = vrcp.pop %v3430
    %v3457 = vmul.f32 1.0, %v3456
    %v3458 = vrcp.pop %v3431
    %v3459 = vmul.f32 1.0, %v3458
    %v3460 = vrcp.pop %v3432
    %v3461 = vmul.f32 1.0, %v3460
    %v3462 = vrcp.pop %v3433
    %v3463 = vmul.f32 1.0, %v3462
    %v3464 = vrcp.pop %v3434
    %v3465 = vmul.f32 1.0, %v3464
    %v3466 = vrcp.pop %v3435
    %v3467 = vmul.f32 1.0, %v3466
    %v3468 = vmax.f32 %v3280, 0.0
    %v3469 = vmax.f32 %v3286, 0.0
    %v3470 = vmax.f32 %v3292, 0.0
    %v3471 = vmax.f32 %v3298, 0.0
    %v3472 = vmax.f32 %v3304, 0.0
    %v3473 = vmax.f32 %v3310, 0.0
    %v3474 = vmax.f32 %v3316, 0.0
    %v3475 = vmax.f32 %v3322, 0.0
    %v3476 = vmax.f32 %v3328, 0.0
    %v3477 = vmax.f32 %v3334, 0.0
    %v3478 = vmax.f32 %v3340, 0.0
    %v3479 = vmax.f32 %v3346, 0.0
    %v3480 = vmax.f32 %v3352, 0.0
    %v3481 = vmax.f32 %v3358, 0.0
    %v3482 = vmax.f32 %v3364, 0.0
    %v3483 = vmax.f32 %v3370, 0.0
    %v3484 = vmul.f32 %v3437, %v3468
    %v3485 = vmul.f32 %v3439, %v3469
    %v3486 = vmul.f32 %v3441, %v3470
    %v3487 = vmul.f32 %v3443, %v3471
    %v3488 = vmul.f32 %v3445, %v3472
    %v3489 = vmul.f32 %v3447, %v3473
    %v3490 = vmul.f32 %v3449, %v3474
    %v3491 = vmul.f32 %v3451, %v3475
    %v3492 = vmul.f32 %v3453, %v3476
    %v3493 = vmul.f32 %v3455, %v3477
    %v3494 = vmul.f32 %v3457, %v3478
    %v3495 = vmul.f32 %v3459, %v3479
    %v3496 = vmul.f32 %v3461, %v3480
    %v3497 = vmul.f32 %v3463, %v3481
    %v3498 = vmul.f32 %v3465, %v3482
    %v3499 = vmul.f32 %v3467, %v3483
    %v3500 = vsub.f32 1.0, %v3437
    %v3501 = vsub.f32 1.0, %v3439
    %v3502 = vsub.f32 1.0, %v3441
    %v3503 = vsub.f32 1.0, %v3443
    %v3504 = vsub.f32 1.0, %v3445
    %v3505 = vsub.f32 1.0, %v3447
    %v3506 = vsub.f32 1.0, %v3449
    %v3507 = vsub.f32 1.0, %v3451
    %v3508 = vsub.f32 1.0, %v3453
    %v3509 = vsub.f32 1.0, %v3455
    %v3510 = vsub.f32 1.0, %v3457
    %v3511 = vsub.f32 1.0, %v3459
    %v3512 = vsub.f32 1.0, %v3461
    %v3513 = vsub.f32 1.0, %v3463
    %v3514 = vsub.f32 1.0, %v3465
    %v3515 = vsub.f32 1.0, %v3467
    %v3516 = vmul.f32 %v3500, %v3151
    %v3517 = vmul.f32 %v3501, %v3152
    %v3518 = vmul.f32 %v3502, %v3153
    %v3519 = vmul.f32 %v3503, %v3154
    %v3520 = vmul.f32 %v3504, %v3155
    %v3521 = vmul.f32 %v3505, %v3156
    %v3522 = vmul.f32 %v3506, %v3157
    %v3523 = vmul.f32 %v3507, %v3158
    %v3524 = vmul.f32 %v3508, %v3159
    %v3525 = vmul.f32 %v3509, %v3160
    %v3526 = vmul.f32 %v3510, %v3161
    %v3527 = vmul.f32 %v3511, %v3162
    %v3528 = vmul.f32 %v3512, %v3163
    %v3529 = vmul.f32 %v3513, %v3164
    %v3530 = vmul.f32 %v3514, %v3165
    %v3531 = vmul.f32 %v3515, %v3166
    %v3532 = vadd.f32 %v3484, %v3516
    %v3533 = vadd.f32 %v3485, %v3517
    %v3534 = vadd.f32 %v3486, %v3518
    %v3535 = vadd.f32 %v3487, %v3519
    %v3536 = vadd.f32 %v3488, %v3520
    %v3537 = vadd.f32 %v3489, %v3521
    %v3538 = vadd.f32 %v3490, %v3522
    %v3539 = vadd.f32 %v3491, %v3523
    %v3540 = vadd.f32 %v3492, %v3524
    %v3541 = vadd.f32 %v3493, %v3525
    %v3542 = vadd.f32 %v3494, %v3526
    %v3543 = vadd.f32 %v3495, %v3527
    %v3544 = vadd.f32 %v3496, %v3528
    %v3545 = vadd.f32 %v3497, %v3529
    %v3546 = vadd.f32 %v3498, %v3530
    %v3547 = vadd.f32 %v3499, %v3531
    %3548 = vst [vmem:[#allocation11] sm:$0xff] %v3532
    %3549 = vst [vmem:[#allocation11 + $0x8] sm:$0xff] %v3533
    %3550 = vst [vmem:[#allocation11 + $0x10] sm:$0xff] %v3534
    %3551 = vst [vmem:[#allocation11 + $0x18] sm:$0xff] %v3535
    %3552 = vst [vmem:[#allocation11 + $0x20] sm:$0xff] %v3536
    %3553 = vst [vmem:[#allocation11 + $0x28] sm:$0xff] %v3537
    %3554 = vst [vmem:[#allocation11 + $0x30] sm:$0xff] %v3538
    %3555 = vst [vmem:[#allocation11 + $0x38] sm:$0xff] %v3539
    %3556 = vst [vmem:[#allocation11 + $0x40] sm:$0xff] %v3540
    %3557 = vst [vmem:[#allocation11 + $0x48] sm:$0xff] %v3541
    %3558 = vst [vmem:[#allocation11 + $0x50] sm:$0xff] %v3542
    %3559 = vst [vmem:[#allocation11 + $0x58] sm:$0xff] %v3543
    %3560 = vst [vmem:[#allocation11 + $0x60] sm:$0xff] %v3544
    %3561 = vst [vmem:[#allocation11 + $0x68] sm:$0xff] %v3545
    %3562 = vst [vmem:[#allocation11 + $0x70] sm:$0xff] %v3546
    %3563 = vst [vmem:[#allocation11 + $0x78] sm:$0xff] %v3547
    // Predicated region
    $region86: #{tpu_custom_call.1} parent=1 // pred_check
      _
    $region87: #{tpu_custom_call.1} parent=1 // pred_check_branch
      %3565 = sbr.rel (0) target = $region89
    $region88: #{tpu_custom_call.1} parent=1 // pred_region
      %s3567 = ssub.s32 2048, 2048
      %3568 = vsyncadd [#allocation4], %s3567
      %s3569 = sshll.u32 [#allocation11], 4
      %s3570 = int_to_ptr.vmem [resolvable:$true] %s3569
      %3575 = dma.vmem_to_hbm [thread:$0]  %s3570, 2048, %s16, [#allocation4], 128, 128, 8
    $region89: #{tpu_custom_call.1} parent=1 // pred_fallthru
      _
    // Predicated region
    $region90: #{tpu_custom_call.1} parent=1 // pred_check
      _
    $region91: #{tpu_custom_call.1} parent=1 // pred_check_branch
      %3577 = sbr.rel (0) target = $region93
    $region92: #{tpu_custom_call.1} parent=1 // pred_region
      %3578 = dma.done [#allocation4], 2048
    $region93: #{tpu_custom_call.1} parent=1 // pred_fallthru
      _
    %3579 = vsyncpa [#allocation3], 1
    %3580 = vsyncpa [#allocation6], 1
    %3581 = vsyncpa [#allocation9], 1
    %3582 = vsyncpa [#allocation4], 1

</llo_original>
